<compile_context>
chip_gen: v5e
topology: v5e:2x2
jax: 0.10.0
libtpu: 0.0.40
codegen_flags: <defaults>
</compile_context>

<pallas_src>
import functools
import math

import jax
import jax.numpy as jnp
from jax import lax
from jax.experimental import pallas as pl
from jax.experimental.pallas import tpu as pltpu

MASK_THRESH = 0.5
COMPETE_THRESH = 0.2
MASK_BETA = 10.0
SELECTION_STRENGTH = 100.0
HOMING_STRENGTH = 10.0


# ---------------------------------------------------------------------------
# Pallas kernel 1 (init): masks[m, n] = <l2norm(phenotypes[m]), plateau[n]> and the
# initial unharvested map.  plateau is pre-normalized in the wrapper, so queries are
# not re-normalized here.
# ---------------------------------------------------------------------------
def _init_masks_kernel(plateau_ref, phen_ref, masks_ref, unharv_ref, *, eps_attn):
    plateau = plateau_ref[0]                                         # [N, Q]
    ph = phen_ref[0]                                                 # [M, Q]
    kn = ph / jnp.maximum(jnp.sqrt(jnp.sum(ph * ph, axis=-1, keepdims=True)), eps_attn)
    masks = lax.dot_general(kn.astype(jnp.bfloat16), plateau.astype(jnp.bfloat16),
                            (((1,), (1,)), ((), ())),
                            preferred_element_type=jnp.float32)      # [M, N] lane-dense
    masks_ref[0] = masks
    covered = jnp.minimum(jnp.max(masks, axis=0, keepdims=True), 1.0)  # [1, N]
    unharv_ref[0] = 1.0 - covered


def init_masks(plateau_flat, phenotypes, eps_attn=1e-8):
    B, N, Q = plateau_flat.shape
    M = phenotypes.shape[1]
    return pl.pallas_call(
        functools.partial(_init_masks_kernel, eps_attn=eps_attn),
        out_shape=(jax.ShapeDtypeStruct((B, M, N), jnp.float32),
                   jax.ShapeDtypeStruct((B, 1, N), jnp.float32)),
        grid=(B,),
        in_specs=[pl.BlockSpec((1, N, Q), lambda b: (b, 0, 0)),
                  pl.BlockSpec((1, M, Q), lambda b: (b, 0, 0))],
        out_specs=(pl.BlockSpec((1, M, N), lambda b: (b, 0, 0)),
                   pl.BlockSpec((1, 1, N), lambda b: (b, 0, 0))),
        compiler_params=pltpu.CompilerParams(dimension_semantics=("parallel",)),
    )(plateau_flat, phenotypes)


# ---------------------------------------------------------------------------
# Pallas kernel 2 (fused round): mask prediction + compete + unharvested +
# availability for the next round + winner-phenotype selection update.
# ---------------------------------------------------------------------------
def _round_kernel(plateau_ref, occ_ref, fit_ref, alive_ref, inb_ref, phen_ref,
                  masks_ref, alive_out_ref, unharv_ref, avail_ref, phen_out_ref, *,
                  mask_thresh, compete_thresh, sticky_winners, selection_strength,
                  eps_attn):
    plateau = plateau_ref[0]                                         # [N, Q] (pre-normalized)
    occ = occ_ref[0]                                                 # [M, Q]
    kn = occ / jnp.maximum(jnp.sqrt(jnp.sum(occ * occ, axis=-1, keepdims=True)), eps_attn)

    # --- mask prediction, lane-dense [M, N] ---
    masks = lax.dot_general(kn.astype(jnp.bfloat16), plateau.astype(jnp.bfloat16),
                            (((1,), (1,)), ((), ())),
                            preferred_element_type=jnp.float32)      # [M, N]
    masks_ref[0] = masks

    M = masks.shape[0]
    N = masks.shape[1]
    row = lax.broadcasted_iota(jnp.int32, (M, M), 0)
    col = lax.broadcasted_iota(jnp.int32, (M, M), 1)
    eye = row == col
    eyef = eye.astype(jnp.float32)

    # --- pairwise IoU competition (binary products are exact in bf16) ---
    mbin = (masks > mask_thresh).astype(jnp.float32)                 # [M, N]
    mb16 = mbin.astype(jnp.bfloat16)
    inter = lax.dot_general(mb16, mb16, (((1,), (1,)), ((), ())),
                            preferred_element_type=jnp.float32)      # [M, M]
    counts_col = jnp.sum(mbin, axis=1, keepdims=True)                # [M, 1]
    counts_row = jnp.sum(counts_col * eyef, axis=0, keepdims=True)   # [1, M]
    union = counts_col + counts_row - inter
    iou = inter / jnp.maximum(union, 1e-6)
    disputes = jnp.logical_and(iou > compete_thresh, jnp.logical_not(eye))

    f_col = fit_ref[0]                                               # [M, 1]
    f_row = jnp.sum(f_col * eyef, axis=0, keepdims=True)             # [1, M]
    killed = jnp.logical_and(disputes, f_col < f_row)
    a_col_in = alive_ref[0]                                          # [M, 1]
    if sticky_winners:
        a_row_in = jnp.sum(a_col_in * eyef, axis=0, keepdims=True)   # [1, M]
        winners_c = a_col_in > 0.5
        winners_r = a_row_in > 0.5
        losers_c = jnp.logical_not(winners_c)
        losers_r = jnp.logical_not(winners_r)
        killed = jnp.logical_and(
            killed, jnp.logical_not(jnp.logical_and(winners_c, losers_r)))
        killed = jnp.logical_or(
            killed, jnp.logical_and(jnp.logical_and(losers_c, winners_r), disputes))
    killed_any = jnp.any(killed, axis=1, keepdims=True)              # [M, 1]
    alive_new = jnp.logical_not(killed_any).astype(jnp.float32)
    alive_new = alive_new * inb_ref[0]                               # in-bounds gate
    alive_out_ref[0] = alive_new

    # --- unharvested map, lane-dense [1, N] ---
    covered = jnp.max(masks * alive_new, axis=0, keepdims=True)
    unharv = 1.0 - jnp.minimum(covered, 1.0)
    unharv_ref[0] = unharv

    # --- availability for the next round, [M, N] ---
    avail_ref[0] = alive_new * masks + (1.0 - alive_new) * unharv

    # --- winner phenotypes (mean over N of thresholded mask * plateau) + selection ---
    wp = lax.dot_general(mb16, plateau.astype(jnp.bfloat16), (((1,), (0,)), ((), ())),
                         preferred_element_type=jnp.float32) * (1.0 / N)      # [M, Q]
    wpn = wp / jnp.maximum(jnp.sqrt(jnp.sum(wp * wp, axis=-1, keepdims=True)), 1e-6)
    phen_out_ref[0] = phen_ref[0] + alive_new * wpn * selection_strength


def competition_round(plateau_flat, occupied, fitnesses, alive, in_bounds, phenotypes,
                      mask_thresh=MASK_THRESH, compete_thresh=COMPETE_THRESH,
                      sticky_winners=True, selection_strength=SELECTION_STRENGTH,
                      eps_attn=1e-8):
    B, N, Q = plateau_flat.shape
    M = occupied.shape[1]
    out_shape = (
        jax.ShapeDtypeStruct((B, M, N), jnp.float32),   # masks (lane-dense)
        jax.ShapeDtypeStruct((B, M, 1), jnp.float32),   # alive
        jax.ShapeDtypeStruct((B, 1, N), jnp.float32),   # unharvested (lane-dense)
        jax.ShapeDtypeStruct((B, M, N), jnp.float32),   # availability (lane-dense)
        jax.ShapeDtypeStruct((B, M, Q), jnp.float32),   # phenotypes after selection
    )
    out_specs = (
        pl.BlockSpec((1, M, N), lambda b: (b, 0, 0)),
        pl.BlockSpec((1, M, 1), lambda b: (b, 0, 0)),
        pl.BlockSpec((1, 1, N), lambda b: (b, 0, 0)),
        pl.BlockSpec((1, M, N), lambda b: (b, 0, 0)),
        pl.BlockSpec((1, M, Q), lambda b: (b, 0, 0)),
    )
    in_specs = [
        pl.BlockSpec((1, N, Q), lambda b: (b, 0, 0)),
        pl.BlockSpec((1, M, Q), lambda b: (b, 0, 0)),
        pl.BlockSpec((1, M, 1), lambda b: (b, 0, 0)),
        pl.BlockSpec((1, M, 1), lambda b: (b, 0, 0)),
        pl.BlockSpec((1, M, 1), lambda b: (b, 0, 0)),
        pl.BlockSpec((1, M, Q), lambda b: (b, 0, 0)),
    ]
    return pl.pallas_call(
        functools.partial(_round_kernel, mask_thresh=mask_thresh,
                          compete_thresh=compete_thresh, sticky_winners=sticky_winners,
                          selection_strength=selection_strength, eps_attn=eps_attn),
        out_shape=out_shape,
        grid=(B,),
        in_specs=in_specs,
        out_specs=out_specs,
        compiler_params=pltpu.CompilerParams(dimension_semantics=("parallel",)),
    )(plateau_flat, occupied, fitnesses, alive, in_bounds, phenotypes)


# ---------------------------------------------------------------------------
# Pallas kernel 3 (homing): distance-weighted vectors (softmax over N + MXU weighted
# sum) fused with the loser-phenotype mix and final l2 normalization.
# ---------------------------------------------------------------------------
def _homing_kernel(pos_ref, unharv_ref, plateau_ref, grid_ref, phen_ref, alive_ref,
                   out_ref, *, beta, eps):
    pos = pos_ref[0]                                 # [M, 2]
    ph = pos[:, 0:1]                                 # [M, 1]
    pw = pos[:, 1:2]
    gh = grid_ref[0:1, :]                            # [1, N]
    gw = grid_ref[1:2, :]
    dh = gh - ph                                     # [M, N]
    dw = gw - pw
    dist = jnp.sqrt(dh * dh + dw * dw + eps)
    inv = (2.0 * math.sqrt(2.0)) * pl.reciprocal(dist + eps, approx=True)
    logits = beta * inv * unharv_ref[0]              # [M, N]
    logits = logits - jnp.max(logits, axis=-1, keepdims=True)
    e = jnp.exp(logits)
    w = e * pl.reciprocal(jnp.sum(e, axis=-1, keepdims=True), approx=True)
    dwv = lax.dot_general(w.astype(jnp.bfloat16), plateau_ref[0].astype(jnp.bfloat16),
                          (((1,), (0,)), ((), ())),
                          preferred_element_type=jnp.float32)        # [M, Q]
    loser = dwv / jnp.maximum(jnp.sqrt(jnp.sum(dwv * dwv, axis=-1, keepdims=True)), 1e-6)
    am = (alive_ref[0] > 0.5).astype(jnp.float32)    # [M, 1]
    phen = am * phen_ref[0] + (1.0 - am) * loser
    out_ref[0] = phen / jnp.maximum(
        jnp.sqrt(jnp.sum(phen * phen, axis=-1, keepdims=True)), 1e-6)


def homing_phenotypes(plateau_flat, positions, unharv_row, grid2, phen_sel, alive,
                      beta=HOMING_STRENGTH, eps=1e-8):
    B, N, Q = plateau_flat.shape
    M = positions.shape[1]
    return pl.pallas_call(
        functools.partial(_homing_kernel, beta=beta, eps=eps),
        out_shape=jax.ShapeDtypeStruct((B, M, Q), jnp.float32),
        grid=(B,),
        in_specs=[pl.BlockSpec((1, M, 2), lambda b: (b, 0, 0)),
                  pl.BlockSpec((1, 1, N), lambda b: (b, 0, 0)),
                  pl.BlockSpec((1, N, Q), lambda b: (b, 0, 0)),
                  pl.BlockSpec((2, N), lambda b: (0, 0)),
                  pl.BlockSpec((1, M, Q), lambda b: (b, 0, 0)),
                  pl.BlockSpec((1, M, 1), lambda b: (b, 0, 0))],
        out_specs=pl.BlockSpec((1, M, Q), lambda b: (b, 0, 0)),
        compiler_params=pltpu.CompilerParams(dimension_semantics=("parallel",)),
    )(positions, unharv_row, plateau_flat, grid2, phen_sel, alive)


# ---------------------------------------------------------------------------
# Plain-JAX glue (bilinear gathers, sobel edges, categorical sampling, norms).
# TODO(synk): border sampling / soft_index are data-dependent gathers; kept in XLA.
# ---------------------------------------------------------------------------
def l2_normalize(x, eps=1e-6):
    n = jnp.sqrt(jnp.sum(x * x, axis=-1, keepdims=True))
    return x / jnp.maximum(n, eps)


def index_into_images(images, indices):
    # images: [B,C,H,W], indices: [B,P,2] (non-negative floats) -> [B,P,C]
    B = images.shape[0]
    imgs = jnp.transpose(images, (0, 2, 3, 1))
    inds_h = indices[..., 0].astype(jnp.int32)
    inds_w = indices[..., 1].astype(jnp.int32)
    b_idx = jnp.arange(B, dtype=jnp.int32)[:, None]
    return imgs[b_idx, inds_h, inds_w]


def soft_index(images, indices, scale_by_imsize=True):
    # images: [B,C,H,W], indices: [B,P,2] normalized coords -> [B,P,C]
    B, C, H, W = images.shape
    h_inds = indices[..., 0]
    w_inds = indices[..., 1]
    if scale_by_imsize:
        h_inds = (h_inds + 1.0) * H * 0.5
        w_inds = (w_inds + 1.0) * W * 0.5
    h_inds = jnp.clip(h_inds, 0.0, float(H - 1))
    w_inds = jnp.clip(w_inds, 0.0, float(W - 1))
    h_floor = jnp.floor(h_inds); w_floor = jnp.floor(w_inds)
    h_ceil = jnp.ceil(h_inds);   w_ceil = jnp.ceil(w_inds)
    br = (h_inds - h_floor) * (w_inds - w_floor)
    bl = (h_inds - h_floor) * (w_ceil - w_inds)
    tr = (h_ceil - h_inds) * (w_inds - w_floor)
    tl = (h_ceil - h_inds) * (w_ceil - w_inds)
    tl_v = index_into_images(images, jnp.stack([h_floor, w_floor], -1))
    tr_v = index_into_images(images, jnp.stack([h_floor, w_ceil], -1))
    bl_v = index_into_images(images, jnp.stack([h_ceil, w_floor], -1))
    br_v = index_into_images(images, jnp.stack([h_ceil, w_ceil], -1))
    vals = (tl_v * tl[..., None] + tr_v * tr[..., None]
            + bl_v * bl[..., None] + br_v * br[..., None])
    return vals.reshape(B, indices.shape[1], C)


_SOBEL_X = jnp.array([[-1., 0., 1.], [-2., 0., 2.], [-1., 0., 1.]], jnp.float32) / 8.0
_SOBEL_Y = _SOBEL_X.T


def get_gradient_image(image):
    # image: [B,C,H,W] -> [B,C,2,H,W] (normalized sobel, replicate padding)
    B, C, H, W = image.shape
    x = image.reshape(B * C, H, W)
    xp = jnp.pad(x, ((0, 0), (1, 1), (1, 1)), mode="edge")

    def corr(k):
        out = jnp.zeros((B * C, H, W), jnp.float32)
        for i in range(3):
            for j in range(3):
                out = out + k[i, j] * xp[:, i:i + H, j:j + W]
        return out

    gx = corr(_SOBEL_X)
    gy = corr(_SOBEL_Y)
    return jnp.stack([gx, gy], axis=1).reshape(B, C, 2, H, W)


def sample_image_inds_from_probs(key, probs, num_points, eps=1e-8):
    B, H, W = probs.shape
    N = H * W
    probs = probs.reshape(B, N)
    probs_n = jnp.maximum(probs + eps, 0.0) / (jnp.sum(probs, axis=-1, keepdims=True) + eps)
    indices = jax.random.categorical(key, jnp.log(probs_n), axis=-1,
                                     shape=(num_points, B))
    indices = jnp.transpose(indices).astype(jnp.int32)          # [B,P]
    inds_h = jnp.clip(indices // W, 0, H - 1)
    inds_w = jnp.clip(indices % W, 0, W - 1)
    return jnp.stack([inds_h, inds_w], axis=-1)


def sample_coordinates_at_borders(key, image, num_points, mask=None, sum_edges=True):
    B, C, H, W = image.shape
    if mask is None:
        mask = jnp.ones((B, 1, H, W), jnp.float32)
    grad = get_gradient_image(image * mask)
    grad_mag = jnp.sqrt(jnp.sum(jnp.square(grad), axis=2))      # [B,C,H,W]
    edges = jnp.sum(grad_mag, axis=1) if sum_edges else jnp.max(grad_mag, axis=1)
    edges = edges * mask[:, 0]
    coords = sample_image_inds_from_probs(key, edges, num_points).astype(jnp.float32)
    coords = coords / jnp.array([H - 1, W - 1], jnp.float32)[None, None]
    return 2.0 * coords - 1.0


def compute_compatibility(key, positions, plateau_chw, phenotypes, avail_mn=None,
                          noise=0.1):
    # plateau_chw: [B,Q,H,W]; avail_mn: [B,A,N] (lane-dense availability) or None
    B, Q, H, W = plateau_chw.shape
    P = positions.shape[1]
    if avail_mn is not None:
        A = avail_mn.shape[1]
        S = P // A
        avail_img = avail_mn.reshape(B, A, H, W)
        plateau_a = (avail_img[:, :, None, :, :]
                     * plateau_chw[:, None, :, :, :]).reshape(B, A * Q, H, W)
    else:
        plateau_a = plateau_chw
    vals = soft_index(plateau_a, positions, scale_by_imsize=True)
    if noise > 0:
        vals = vals + noise * jax.random.uniform(key, vals.shape, jnp.float32)
    if avail_mn is not None:
        pv = l2_normalize(vals.reshape(B, P, A, Q))
        inds = jnp.tile(jnp.eye(A, dtype=jnp.float32), (S, 1))[None, :, :, None]
        vals = jnp.sum(pv * inds, axis=-2)
    else:
        vals = l2_normalize(vals)
    return jnp.sum(l2_normalize(phenotypes) * vals, axis=-1, keepdims=True)


def coordinate_grid(H, W):
    h = 2.0 * (jnp.arange(H, dtype=jnp.float32) / float(H - 1) - 0.5)
    w = 2.0 * (jnp.arange(W, dtype=jnp.float32) / float(W - 1) - 0.5)
    hh = jnp.broadcast_to(h[:, None], (H, W))
    ww = jnp.broadcast_to(w[None, :], (H, W))
    return jnp.stack([hh, ww], -1)          # [H,W,2]


# ---------------------------------------------------------------------------
# Competition.forward  (no learnable parameters; config matches nn.Module defaults)
# ---------------------------------------------------------------------------
def competition_forward(plateau, key, num_masks=16, num_competition_rounds=5,
                        mask_beta=MASK_BETA, mask_thresh=MASK_THRESH,
                        compete_thresh=COMPETE_THRESH, sticky_winners=True,
                        selection_strength=SELECTION_STRENGTH,
                        homing_strength=HOMING_STRENGTH, sum_edges=True):
    B, H, W, Q = plateau.shape
    M = num_masks
    N = H * W
    keys = jax.random.split(key, 2 + 2 * num_competition_rounds)
    kc = 0

    plateau = l2_normalize(plateau)
    plateau_chw = jnp.transpose(plateau, (0, 3, 1, 2))
    plateau_flat = plateau.reshape(B, N, Q)
    grid2 = jnp.transpose(coordinate_grid(H, W).reshape(N, 2))   # [2, N]

    agents = sample_coordinates_at_borders(keys[kc], plateau_chw, M, mask=None,
                                           sum_edges=sum_edges); kc += 1
    alive = jnp.ones((B, M, 1), jnp.float32)
    phenotypes = lax.stop_gradient(
        l2_normalize(soft_index(plateau_chw, agents, scale_by_imsize=True)))
    # (reference computes initial fitnesses here; they are overwritten inside the loop)
    fitnesses = compute_compatibility(keys[kc], agents, plateau_chw, phenotypes,
                                      avail_mn=None, noise=0.1); kc += 1

    masks_mn, unharv_row = init_masks(plateau_flat, phenotypes)     # [B,M,N], [B,1,N]
    avail_mn = masks_mn                                             # alive == 1 at init

    for _ in range(num_competition_rounds):
        fitnesses = compute_compatibility(keys[kc], agents, plateau_chw, phenotypes,
                                          avail_mn=avail_mn, noise=0.1); kc += 1
        in_bounds = jnp.all(jnp.logical_and(agents < 1.0, agents > -1.0),
                            axis=-1, keepdims=True).astype(jnp.float32)     # [B,M,1]
        fitnesses = fitnesses * in_bounds
        fitnesses = fitnesses - 0.001 * jnp.arange(M, dtype=jnp.float32)[None, :, None]

        occupied = lax.stop_gradient(
            soft_index(plateau_chw, agents, scale_by_imsize=True))          # [B,M,Q]

        # fused: masks + compete + unharvested + availability + selection update
        masks_mn, alive, unharv_row, avail_mn, phen_sel = competition_round(
            plateau_flat, occupied, fitnesses, alive, in_bounds, phenotypes,
            mask_thresh=mask_thresh, compete_thresh=compete_thresh,
            sticky_winners=sticky_winners, selection_strength=selection_strength)

        alive_mask = (alive > 0.5).astype(jnp.float32)
        loser_agents = sample_coordinates_at_borders(
            keys[kc], plateau_chw, M, mask=unharv_row.reshape(B, 1, H, W),
            sum_edges=sum_edges); kc += 1
        agents = agents * alive_mask + loser_agents * (1.0 - alive_mask)

        # fused: distance-weighted homing vectors + loser-phenotype mix + l2 norm
        phenotypes = homing_phenotypes(plateau_flat, agents, unharv_row, grid2,
                                       phen_sel, alive, beta=homing_strength)

    logits = mask_beta * masks_mn * alive - mask_beta * (1.0 - alive)       # [B,M,N]
    masks_output = jax.nn.softmax(logits, axis=1)
    masks_output = jnp.transpose(masks_output, (0, 2, 1)).reshape(B, H, W, M)
    unharvested = jnp.transpose(unharv_row, (0, 2, 1)).reshape(B, H, W, 1)
    return masks_output, agents, alive, phenotypes, unharvested


if __name__ == "__main__":
    key = jax.random.PRNGKey(0)
    k_plateau, k_fwd = jax.random.split(key)
    B, H, W, Q, M = 2, 16, 16, 8, 16
    plateau = jax.random.normal(k_plateau, (B, H, W, Q), dtype=jnp.float32)

    fwd = jax.jit(functools.partial(competition_forward, num_masks=M,
                                    num_competition_rounds=5))
    masks_output, agents, alive, phenotypes, unharvested = fwd(plateau, k_fwd)
    jax.block_until_ready((masks_output, agents, alive, phenotypes, unharvested))

    assert masks_output.shape == (B, H, W, M)
    assert agents.shape == (B, M, 2)
    assert alive.shape == (B, M, 1)
    assert phenotypes.shape == (B, M, Q)
    assert unharvested.shape == (B, H, W, 1)
    assert bool(jnp.all(jnp.isfinite(masks_output)))
    print("KERNEL_OK")
</pallas_src>

<mosaic_0001>
module attributes {stable_mosaic.version = 11 : i64} {
  func.func @_init_masks_kernel(%arg0: i32, %arg1: memref<1x256x8xf32, #tpu.memory_space<vmem>>, %arg2: memref<1x16x8xf32, #tpu.memory_space<vmem>>, %arg3: memref<1x16x256xf32, #tpu.memory_space<vmem>>, %arg4: memref<1x1x256xf32, #tpu.memory_space<vmem>>) attributes {dimension_semantics = [#tpu.dimension_semantics<parallel>], iteration_bounds = array<i64: 2>, scalar_prefetch = 0 : i64, scratch_operands = 0 : i64, tpu.core_type = #tpu.core_type<tc>, window_params = [{transform_indices = @transform_0, window_bounds = array<i64: 1, 256, 8>}, {transform_indices = @transform_1, window_bounds = array<i64: 1, 16, 8>}, {transform_indices = @transform_2, window_bounds = array<i64: 1, 16, 256>}, {transform_indices = @transform_3, window_bounds = array<i64: 1, 1, 256>}]} {
    %c0 = arith.constant 0 : index
    %c0_0 = arith.constant 0 : index
    %c0_1 = arith.constant 0 : index
    %0 = vector.load %arg1[%c0, %c0_0, %c0_1] : memref<1x256x8xf32, #tpu.memory_space<vmem>>, vector<1x256x8xf32>
    %1 = vector.shape_cast %0 : vector<1x256x8xf32> to vector<256x8xf32>
    %c0_2 = arith.constant 0 : index
    %c0_3 = arith.constant 0 : index
    %c0_4 = arith.constant 0 : index
    %2 = vector.load %arg2[%c0_2, %c0_3, %c0_4] : memref<1x16x8xf32, #tpu.memory_space<vmem>>, vector<1x16x8xf32>
    %3 = vector.shape_cast %2 : vector<1x16x8xf32> to vector<16x8xf32>
    %4 = arith.mulf %3, %3 : vector<16x8xf32>
    %cst = arith.constant dense<0.000000e+00> : vector<16xf32>
    %5 = vector.multi_reduction <add>, %4, %cst [1] : vector<16x8xf32> to vector<16xf32>
    %6 = vector.shape_cast %5 : vector<16xf32> to vector<16x1xf32>
    %7 = math.sqrt %6 : vector<16x1xf32>
    %cst_5 = arith.constant 9.99999993E-9 : f32
    %8 = vector.broadcast %cst_5 : f32 to vector<16x1xf32>
    %9 = arith.maximumf %7, %8 : vector<16x1xf32>
    %10 = vector.broadcast %9 : vector<16x1xf32> to vector<16x8xf32>
    %11 = arith.divf %3, %10 : vector<16x8xf32>
    %12 = arith.truncf %11 : vector<16x8xf32> to vector<16x8xbf16>
    %13 = arith.truncf %1 : vector<256x8xf32> to vector<256x8xbf16>
    %cst_6 = arith.constant dense<0.000000e+00> : vector<16x256xf32>
    %14 = tpu.matmul %12, %13, %cst_6 {dimension_numbers = #tpu.dot_dimension_numbers<[1], [1], [0], [0], [0, 0, 1, 0], [], []>} : vector<16x8xbf16>, vector<256x8xbf16>, vector<16x256xf32> -> vector<16x256xf32>
    %c0_7 = arith.constant 0 : index
    %c0_8 = arith.constant 0 : index
    %c0_9 = arith.constant 0 : index
    %15 = vector.load %arg3[%c0_7, %c0_8, %c0_9] : memref<1x16x256xf32, #tpu.memory_space<vmem>>, vector<1x16x256xf32>
    %16 = vector.shape_cast %15 : vector<1x16x256xf32> to vector<16x256xf32>
    %17 = vector.shape_cast %14 : vector<16x256xf32> to vector<1x16x256xf32>
    tpu.vector_store %arg3[%c0_7, %c0_8, %c0_9], %17 {strides = array<i32>} : memref<1x16x256xf32, #tpu.memory_space<vmem>>, vector<1x16x256xf32>,
    %cst_10 = arith.constant dense<0xFF800000> : vector<256xf32>
    %18 = vector.multi_reduction <maximumf>, %14, %cst_10 [0] : vector<16x256xf32> to vector<256xf32>
    %19 = vector.shape_cast %18 : vector<256xf32> to vector<1x256xf32>
    %cst_11 = arith.constant 1.000000e+00 : f32
    %20 = vector.broadcast %cst_11 : f32 to vector<1x256xf32>
    %21 = arith.minimumf %19, %20 : vector<1x256xf32>
    %cst_12 = arith.constant 1.000000e+00 : f32
    %22 = vector.broadcast %cst_12 : f32 to vector<1x256xf32>
    %23 = arith.subf %22, %21 : vector<1x256xf32>
    %c0_13 = arith.constant 0 : index
    %c0_14 = arith.constant 0 : index
    %c0_15 = arith.constant 0 : index
    %24 = vector.load %arg4[%c0_13, %c0_14, %c0_15] : memref<1x1x256xf32, #tpu.memory_space<vmem>>, vector<1x1x256xf32>
    %25 = vector.shape_cast %24 : vector<1x1x256xf32> to vector<1x256xf32>
    %26 = vector.shape_cast %23 : vector<1x256xf32> to vector<1x1x256xf32>
    tpu.vector_store %arg4[%c0_13, %c0_14, %c0_15], %26 {strides = array<i32>} : memref<1x1x256xf32, #tpu.memory_space<vmem>>, vector<1x1x256xf32>,
    return
  }
  func.func @transform_0(%arg0: i32) -> (i32, i32, i32) {
    %c0_i32 = arith.constant 0 : i32
    %c0_i32_0 = arith.constant 0 : i32
    %c0_i32_1 = arith.constant 0 : i32
    return %arg0, %c0_i32, %c0_i32_0 : i32, i32, i32
  }
  func.func @transform_1(%arg0: i32) -> (i32, i32, i32) {
    %c0_i32 = arith.constant 0 : i32
    %c0_i32_0 = arith.constant 0 : i32
    %c0_i32_1 = arith.constant 0 : i32
    return %arg0, %c0_i32, %c0_i32_0 : i32, i32, i32
  }
  func.func @transform_2(%arg0: i32) -> (i32, i32, i32) {
    %c0_i32 = arith.constant 0 : i32
    %c0_i32_0 = arith.constant 0 : i32
    %c0_i32_1 = arith.constant 0 : i32
    return %arg0, %c0_i32, %c0_i32_0 : i32, i32, i32
  }
  func.func @transform_3(%arg0: i32) -> (i32, i32, i32) {
    %c0_i32 = arith.constant 0 : i32
    %c0_i32_0 = arith.constant 0 : i32
    %c0_i32_1 = arith.constant 0 : i32
    return %arg0, %c0_i32, %c0_i32_0 : i32, i32, i32
  }
}

module attributes {stable_mosaic.version = 11 : i64} {
  func.func @_round_kernel(%arg0: i32, %arg1: memref<1x256x8xf32, #tpu.memory_space<vmem>>, %arg2: memref<1x16x8xf32, #tpu.memory_space<vmem>>, %arg3: memref<1x16x1xf32, #tpu.memory_space<vmem>>, %arg4: memref<1x16x1xf32, #tpu.memory_space<vmem>>, %arg5: memref<1x16x1xf32, #tpu.memory_space<vmem>>, %arg6: memref<1x16x8xf32, #tpu.memory_space<vmem>>, %arg7: memref<1x16x256xf32, #tpu.memory_space<vmem>>, %arg8: memref<1x16x1xf32, #tpu.memory_space<vmem>>, %arg9: memref<1x1x256xf32, #tpu.memory_space<vmem>>, %arg10: memref<1x16x256xf32, #tpu.memory_space<vmem>>, %arg11: memref<1x16x8xf32, #tpu.memory_space<vmem>>) attributes {dimension_semantics = [#tpu.dimension_semantics<parallel>], iteration_bounds = array<i64: 2>, scalar_prefetch = 0 : i64, scratch_operands = 0 : i64, tpu.core_type = #tpu.core_type<tc>, window_params = [{transform_indices = @transform_0, window_bounds = array<i64: 1, 256, 8>}, {transform_indices = @transform_1, window_bounds = array<i64: 1, 16, 8>}, {transform_indices = @transform_2, window_bounds = array<i64: 1, 16, 1>}, {transform_indices = @transform_3, window_bounds = array<i64: 1, 16, 1>}, {transform_indices = @transform_4, window_bounds = array<i64: 1, 16, 1>}, {transform_indices = @transform_5, window_bounds = array<i64: 1, 16, 8>}, {transform_indices = @transform_6, window_bounds = array<i64: 1, 16, 256>}, {transform_indices = @transform_7, window_bounds = array<i64: 1, 16, 1>}, {transform_indices = @transform_8, window_bounds = array<i64: 1, 1, 256>}, {transform_indices = @transform_9, window_bounds = array<i64: 1, 16, 256>}, {transform_indices = @transform_10, window_bounds = array<i64: 1, 16, 8>}]} {
    %c0 = arith.constant 0 : index
    %c0_0 = arith.constant 0 : index
    %c0_1 = arith.constant 0 : index
    %0 = vector.load %arg1[%c0, %c0_0, %c0_1] : memref<1x256x8xf32, #tpu.memory_space<vmem>>, vector<1x256x8xf32>
    %1 = vector.shape_cast %0 : vector<1x256x8xf32> to vector<256x8xf32>
    %c0_2 = arith.constant 0 : index
    %c0_3 = arith.constant 0 : index
    %c0_4 = arith.constant 0 : index
    %2 = vector.load %arg2[%c0_2, %c0_3, %c0_4] : memref<1x16x8xf32, #tpu.memory_space<vmem>>, vector<1x16x8xf32>
    %3 = vector.shape_cast %2 : vector<1x16x8xf32> to vector<16x8xf32>
    %4 = arith.mulf %3, %3 : vector<16x8xf32>
    %cst = arith.constant dense<0.000000e+00> : vector<16xf32>
    %5 = vector.multi_reduction <add>, %4, %cst [1] : vector<16x8xf32> to vector<16xf32>
    %6 = vector.shape_cast %5 : vector<16xf32> to vector<16x1xf32>
    %7 = math.sqrt %6 : vector<16x1xf32>
    %cst_5 = arith.constant 9.99999993E-9 : f32
    %8 = vector.broadcast %cst_5 : f32 to vector<16x1xf32>
    %9 = arith.maximumf %7, %8 : vector<16x1xf32>
    %10 = vector.broadcast %9 : vector<16x1xf32> to vector<16x8xf32>
    %11 = arith.divf %3, %10 : vector<16x8xf32>
    %12 = arith.truncf %11 : vector<16x8xf32> to vector<16x8xbf16>
    %13 = arith.truncf %1 : vector<256x8xf32> to vector<256x8xbf16>
    %cst_6 = arith.constant dense<0.000000e+00> : vector<16x256xf32>
    %14 = tpu.matmul %12, %13, %cst_6 {dimension_numbers = #tpu.dot_dimension_numbers<[1], [1], [0], [0], [0, 0, 1, 0], [], []>} : vector<16x8xbf16>, vector<256x8xbf16>, vector<16x256xf32> -> vector<16x256xf32>
    %c0_7 = arith.constant 0 : index
    %c0_8 = arith.constant 0 : index
    %c0_9 = arith.constant 0 : index
    %15 = vector.load %arg7[%c0_7, %c0_8, %c0_9] : memref<1x16x256xf32, #tpu.memory_space<vmem>>, vector<1x16x256xf32>
    %16 = vector.shape_cast %15 : vector<1x16x256xf32> to vector<16x256xf32>
    %17 = vector.shape_cast %14 : vector<16x256xf32> to vector<1x16x256xf32>
    tpu.vector_store %arg7[%c0_7, %c0_8, %c0_9], %17 {strides = array<i32>} : memref<1x16x256xf32, #tpu.memory_space<vmem>>, vector<1x16x256xf32>,
    %18 = tpu.iota {dimensions = array<i32: 0>} : vector<16x16xi32>
    %19 = tpu.iota {dimensions = array<i32: 1>} : vector<16x16xi32>
    %20 = arith.cmpi eq, %18, %19 : vector<16x16xi32>
    %21 = arith.extui %20 : vector<16x16xi1> to vector<16x16xi32>
    %22 = arith.sitofp %21 : vector<16x16xi32> to vector<16x16xf32>
    %cst_10 = arith.constant 5.000000e-01 : f32
    %23 = vector.broadcast %cst_10 : f32 to vector<16x256xf32>
    %24 = arith.cmpf ogt, %14, %23 : vector<16x256xf32>
    %25 = arith.extui %24 : vector<16x256xi1> to vector<16x256xi32>
    %26 = arith.sitofp %25 : vector<16x256xi32> to vector<16x256xf32>
    %27 = arith.truncf %26 : vector<16x256xf32> to vector<16x256xbf16>
    %cst_11 = arith.constant dense<0.000000e+00> : vector<16x16xf32>
    %28 = tpu.matmul %27, %27, %cst_11 {dimension_numbers = #tpu.dot_dimension_numbers<[1], [1], [0], [0], [0, 0, 1, 0], [], []>} : vector<16x256xbf16>, vector<16x256xbf16>, vector<16x16xf32> -> vector<16x16xf32>
    %cst_12 = arith.constant dense<0.000000e+00> : vector<16xf32>
    %29 = vector.multi_reduction <add>, %26, %cst_12 [1] : vector<16x256xf32> to vector<16xf32>
    %30 = vector.shape_cast %29 : vector<16xf32> to vector<16x1xf32>
    %31 = vector.broadcast %30 : vector<16x1xf32> to vector<16x16xf32>
    %32 = arith.mulf %31, %22 : vector<16x16xf32>
    %cst_13 = arith.constant dense<0.000000e+00> : vector<16xf32>
    %33 = vector.multi_reduction <add>, %32, %cst_13 [0] : vector<16x16xf32> to vector<16xf32>
    %34 = vector.shape_cast %33 : vector<16xf32> to vector<1x16xf32>
    %35 = vector.broadcast %30 : vector<16x1xf32> to vector<16x16xf32>
    %36 = vector.broadcast %34 : vector<1x16xf32> to vector<16x16xf32>
    %37 = arith.addf %35, %36 : vector<16x16xf32>
    %38 = arith.subf %37, %28 : vector<16x16xf32>
    %cst_14 = arith.constant 9.99999997E-7 : f32
    %39 = vector.broadcast %cst_14 : f32 to vector<16x16xf32>
    %40 = arith.maximumf %38, %39 : vector<16x16xf32>
    %41 = arith.divf %28, %40 : vector<16x16xf32>
    %cst_15 = arith.constant 2.000000e-01 : f32
    %42 = vector.broadcast %cst_15 : f32 to vector<16x16xf32>
    %43 = arith.cmpf ogt, %41, %42 : vector<16x16xf32>
    %cst_16 = arith.constant dense<true> : vector<16x16xi1>
    %44 = arith.xori %20, %cst_16 : vector<16x16xi1>
    %45 = arith.andi %43, %44 : vector<16x16xi1>
    %c0_17 = arith.constant 0 : index
    %c0_18 = arith.constant 0 : index
    %c0_19 = arith.constant 0 : index
    %46 = vector.load %arg3[%c0_17, %c0_18, %c0_19] : memref<1x16x1xf32, #tpu.memory_space<vmem>>, vector<1x16x1xf32>
    %47 = vector.shape_cast %46 : vector<1x16x1xf32> to vector<16x1xf32>
    %48 = vector.broadcast %47 : vector<16x1xf32> to vector<16x16xf32>
    %49 = arith.mulf %48, %22 : vector<16x16xf32>
    %cst_20 = arith.constant dense<0.000000e+00> : vector<16xf32>
    %50 = vector.multi_reduction <add>, %49, %cst_20 [0] : vector<16x16xf32> to vector<16xf32>
    %51 = vector.shape_cast %50 : vector<16xf32> to vector<1x16xf32>
    %52 = vector.broadcast %47 : vector<16x1xf32> to vector<16x16xf32>
    %53 = vector.broadcast %51 : vector<1x16xf32> to vector<16x16xf32>
    %54 = arith.cmpf olt, %52, %53 : vector<16x16xf32>
    %55 = arith.andi %45, %54 : vector<16x16xi1>
    %c0_21 = arith.constant 0 : index
    %c0_22 = arith.constant 0 : index
    %c0_23 = arith.constant 0 : index
    %56 = vector.load %arg4[%c0_21, %c0_22, %c0_23] : memref<1x16x1xf32, #tpu.memory_space<vmem>>, vector<1x16x1xf32>
    %57 = vector.shape_cast %56 : vector<1x16x1xf32> to vector<16x1xf32>
    %58 = vector.broadcast %57 : vector<16x1xf32> to vector<16x16xf32>
    %59 = arith.mulf %58, %22 : vector<16x16xf32>
    %cst_24 = arith.constant dense<0.000000e+00> : vector<16xf32>
    %60 = vector.multi_reduction <add>, %59, %cst_24 [0] : vector<16x16xf32> to vector<16xf32>
    %61 = vector.shape_cast %60 : vector<16xf32> to vector<1x16xf32>
    %cst_25 = arith.constant 5.000000e-01 : f32
    %62 = vector.broadcast %cst_25 : f32 to vector<16x1xf32>
    %63 = arith.cmpf ogt, %57, %62 : vector<16x1xf32>
    %cst_26 = arith.constant 5.000000e-01 : f32
    %64 = vector.broadcast %cst_26 : f32 to vector<1x16xf32>
    %65 = arith.cmpf ogt, %61, %64 : vector<1x16xf32>
    %cst_27 = arith.constant dense<true> : vector<16x1xi1>
    %66 = arith.xori %63, %cst_27 : vector<16x1xi1>
    %cst_28 = arith.constant dense<true> : vector<1x16xi1>
    %67 = arith.xori %65, %cst_28 : vector<1x16xi1>
    %68 = vector.broadcast %63 : vector<16x1xi1> to vector<16x16xi1>
    %69 = vector.broadcast %67 : vector<1x16xi1> to vector<16x16xi1>
    %70 = arith.andi %68, %69 : vector<16x16xi1>
    %cst_29 = arith.constant dense<true> : vector<16x16xi1>
    %71 = arith.xori %70, %cst_29 : vector<16x16xi1>
    %72 = arith.andi %55, %71 : vector<16x16xi1>
    %73 = vector.broadcast %66 : vector<16x1xi1> to vector<16x16xi1>
    %74 = vector.broadcast %65 : vector<1x16xi1> to vector<16x16xi1>
    %75 = arith.andi %73, %74 : vector<16x16xi1>
    %76 = arith.andi %75, %45 : vector<16x16xi1>
    %77 = arith.ori %72, %76 : vector<16x16xi1>
    %cst_30 = arith.constant 1.000000e+00 : f32
    %cst_31 = arith.constant 0.000000e+00 : f32
    %78 = vector.broadcast %cst_30 : f32 to vector<16x16xf32>
    %79 = vector.broadcast %cst_31 : f32 to vector<16x16xf32>
    %80 = arith.select %77, %78, %79 : vector<16x16xi1>, vector<16x16xf32>
    %cst_32 = arith.constant dense<0xFF800000> : vector<16xf32>
    %81 = vector.multi_reduction <maximumf>, %80, %cst_32 [1] : vector<16x16xf32> to vector<16xf32>
    %cst_33 = arith.constant 0.000000e+00 : f32
    %82 = vector.broadcast %cst_33 : f32 to vector<16xf32>
    %83 = arith.cmpf ogt, %81, %82 : vector<16xf32>
    %84 = vector.shape_cast %83 : vector<16xi1> to vector<16x1xi1>
    %cst_34 = arith.constant dense<true> : vector<16x1xi1>
    %85 = arith.xori %84, %cst_34 : vector<16x1xi1>
    %86 = arith.extui %85 : vector<16x1xi1> to vector<16x1xi32>
    %87 = arith.sitofp %86 : vector<16x1xi32> to vector<16x1xf32>
    %c0_35 = arith.constant 0 : index
    %c0_36 = arith.constant 0 : index
    %c0_37 = arith.constant 0 : index
    %88 = vector.load %arg5[%c0_35, %c0_36, %c0_37] : memref<1x16x1xf32, #tpu.memory_space<vmem>>, vector<1x16x1xf32>
    %89 = vector.shape_cast %88 : vector<1x16x1xf32> to vector<16x1xf32>
    %90 = arith.mulf %87, %89 : vector<16x1xf32>
    %c0_38 = arith.constant 0 : index
    %c0_39 = arith.constant 0 : index
    %c0_40 = arith.constant 0 : index
    %91 = vector.load %arg8[%c0_38, %c0_39, %c0_40] : memref<1x16x1xf32, #tpu.memory_space<vmem>>, vector<1x16x1xf32>
    %92 = vector.shape_cast %91 : vector<1x16x1xf32> to vector<16x1xf32>
    %93 = vector.shape_cast %90 : vector<16x1xf32> to vector<1x16x1xf32>
    tpu.vector_store %arg8[%c0_38, %c0_39, %c0_40], %93 {strides = array<i32>} : memref<1x16x1xf32, #tpu.memory_space<vmem>>, vector<1x16x1xf32>,
    %94 = vector.broadcast %90 : vector<16x1xf32> to vector<16x256xf32>
    %95 = arith.mulf %14, %94 : vector<16x256xf32>
    %cst_41 = arith.constant dense<0xFF800000> : vector<256xf32>
    %96 = vector.multi_reduction <maximumf>, %95, %cst_41 [0] : vector<16x256xf32> to vector<256xf32>
    %97 = vector.shape_cast %96 : vector<256xf32> to vector<1x256xf32>
    %cst_42 = arith.constant 1.000000e+00 : f32
    %98 = vector.broadcast %cst_42 : f32 to vector<1x256xf32>
    %99 = arith.minimumf %97, %98 : vector<1x256xf32>
    %cst_43 = arith.constant 1.000000e+00 : f32
    %100 = vector.broadcast %cst_43 : f32 to vector<1x256xf32>
    %101 = arith.subf %100, %99 : vector<1x256xf32>
    %c0_44 = arith.constant 0 : index
    %c0_45 = arith.constant 0 : index
    %c0_46 = arith.constant 0 : index
    %102 = vector.load %arg9[%c0_44, %c0_45, %c0_46] : memref<1x1x256xf32, #tpu.memory_space<vmem>>, vector<1x1x256xf32>
    %103 = vector.shape_cast %102 : vector<1x1x256xf32> to vector<1x256xf32>
    %104 = vector.shape_cast %101 : vector<1x256xf32> to vector<1x1x256xf32>
    tpu.vector_store %arg9[%c0_44, %c0_45, %c0_46], %104 {strides = array<i32>} : memref<1x1x256xf32, #tpu.memory_space<vmem>>, vector<1x1x256xf32>,
    %105 = vector.broadcast %90 : vector<16x1xf32> to vector<16x256xf32>
    %106 = arith.mulf %105, %14 : vector<16x256xf32>
    %cst_47 = arith.constant 1.000000e+00 : f32
    %107 = vector.broadcast %cst_47 : f32 to vector<16x1xf32>
    %108 = arith.subf %107, %90 : vector<16x1xf32>
    %109 = vector.broadcast %108 : vector<16x1xf32> to vector<16x256xf32>
    %110 = vector.broadcast %101 : vector<1x256xf32> to vector<16x256xf32>
    %111 = arith.mulf %109, %110 : vector<16x256xf32>
    %112 = arith.addf %106, %111 : vector<16x256xf32>
    %c0_48 = arith.constant 0 : index
    %c0_49 = arith.constant 0 : index
    %c0_50 = arith.constant 0 : index
    %113 = vector.load %arg10[%c0_48, %c0_49, %c0_50] : memref<1x16x256xf32, #tpu.memory_space<vmem>>, vector<1x16x256xf32>
    %114 = vector.shape_cast %113 : vector<1x16x256xf32> to vector<16x256xf32>
    %115 = vector.shape_cast %112 : vector<16x256xf32> to vector<1x16x256xf32>
    tpu.vector_store %arg10[%c0_48, %c0_49, %c0_50], %115 {strides = array<i32>} : memref<1x16x256xf32, #tpu.memory_space<vmem>>, vector<1x16x256xf32>,
    %116 = arith.truncf %1 : vector<256x8xf32> to vector<256x8xbf16>
    %cst_51 = arith.constant dense<0.000000e+00> : vector<16x8xf32>
    %117 = tpu.matmul %27, %116, %cst_51 {dimension_numbers = #tpu.dot_dimension_numbers<[1], [0], [0], [1], [0, 0, 1, 1], [], []>} : vector<16x256xbf16>, vector<256x8xbf16>, vector<16x8xf32> -> vector<16x8xf32>
    %cst_52 = arith.constant 3.906250e-03 : f32
    %118 = vector.broadcast %cst_52 : f32 to vector<16x8xf32>
    %119 = arith.mulf %117, %118 : vector<16x8xf32>
    %120 = arith.mulf %119, %119 : vector<16x8xf32>
    %cst_53 = arith.constant dense<0.000000e+00> : vector<16xf32>
    %121 = vector.multi_reduction <add>, %120, %cst_53 [1] : vector<16x8xf32> to vector<16xf32>
    %122 = vector.shape_cast %121 : vector<16xf32> to vector<16x1xf32>
    %123 = math.sqrt %122 : vector<16x1xf32>
    %cst_54 = arith.constant 9.99999997E-7 : f32
    %124 = vector.broadcast %cst_54 : f32 to vector<16x1xf32>
    %125 = arith.maximumf %123, %124 : vector<16x1xf32>
    %126 = vector.broadcast %125 : vector<16x1xf32> to vector<16x8xf32>
    %127 = arith.divf %119, %126 : vector<16x8xf32>
    %c0_55 = arith.constant 0 : index
    %c0_56 = arith.constant 0 : index
    %c0_57 = arith.constant 0 : index
    %128 = vector.load %arg6[%c0_55, %c0_56, %c0_57] : memref<1x16x8xf32, #tpu.memory_space<vmem>>, vector<1x16x8xf32>
    %129 = vector.shape_cast %128 : vector<1x16x8xf32> to vector<16x8xf32>
    %130 = vector.broadcast %90 : vector<16x1xf32> to vector<16x8xf32>
    %131 = arith.mulf %130, %127 : vector<16x8xf32>
    %cst_58 = arith.constant 1.000000e+02 : f32
    %132 = vector.broadcast %cst_58 : f32 to vector<16x8xf32>
    %133 = arith.mulf %131, %132 : vector<16x8xf32>
    %134 = arith.addf %129, %133 : vector<16x8xf32>
    %c0_59 = arith.constant 0 : index
    %c0_60 = arith.constant 0 : index
    %c0_61 = arith.constant 0 : index
    %135 = vector.load %arg11[%c0_59, %c0_60, %c0_61] : memref<1x16x8xf32, #tpu.memory_space<vmem>>, vector<1x16x8xf32>
    %136 = vector.shape_cast %135 : vector<1x16x8xf32> to vector<16x8xf32>
    %137 = vector.shape_cast %134 : vector<16x8xf32> to vector<1x16x8xf32>
    tpu.vector_store %arg11[%c0_59, %c0_60, %c0_61], %137 {strides = array<i32>} : memref<1x16x8xf32, #tpu.memory_space<vmem>>, vector<1x16x8xf32>,
    return
  }
  func.func @transform_0(%arg0: i32) -> (i32, i32, i32) {
    %c0_i32 = arith.constant 0 : i32
    %c0_i32_0 = arith.constant 0 : i32
    %c0_i32_1 = arith.constant 0 : i32
    return %arg0, %c0_i32, %c0_i32_0 : i32, i32, i32
  }
  func.func @transform_1(%arg0: i32) -> (i32, i32, i32) {
    %c0_i32 = arith.constant 0 : i32
    %c0_i32_0 = arith.constant 0 : i32
    %c0_i32_1 = arith.constant 0 : i32
    return %arg0, %c0_i32, %c0_i32_0 : i32, i32, i32
  }
  func.func @transform_2(%arg0: i32) -> (i32, i32, i32) {
    %c0_i32 = arith.constant 0 : i32
    %c0_i32_0 = arith.constant 0 : i32
    %c0_i32_1 = arith.constant 0 : i32
    return %arg0, %c0_i32, %c0_i32_0 : i32, i32, i32
  }
  func.func @transform_3(%arg0: i32) -> (i32, i32, i32) {
    %c0_i32 = arith.constant 0 : i32
    %c0_i32_0 = arith.constant 0 : i32
    %c0_i32_1 = arith.constant 0 : i32
    return %arg0, %c0_i32, %c0_i32_0 : i32, i32, i32
  }
  func.func @transform_4(%arg0: i32) -> (i32, i32, i32) {
    %c0_i32 = arith.constant 0 : i32
    %c0_i32_0 = arith.constant 0 : i32
    %c0_i32_1 = arith.constant 0 : i32
    return %arg0, %c0_i32, %c0_i32_0 : i32, i32, i32
  }
  func.func @transform_5(%arg0: i32) -> (i32, i32, i32) {
    %c0_i32 = arith.constant 0 : i32
    %c0_i32_0 = arith.constant 0 : i32
    %c0_i32_1 = arith.constant 0 : i32
    return %arg0, %c0_i32, %c0_i32_0 : i32, i32, i32
  }
  func.func @transform_6(%arg0: i32) -> (i32, i32, i32) {
    %c0_i32 = arith.constant 0 : i32
    %c0_i32_0 = arith.constant 0 : i32
    %c0_i32_1 = arith.constant 0 : i32
    return %arg0, %c0_i32, %c0_i32_0 : i32, i32, i32
  }
  func.func @transform_7(%arg0: i32) -> (i32, i32, i32) {
    %c0_i32 = arith.constant 0 : i32
    %c0_i32_0 = arith.constant 0 : i32
    %c0_i32_1 = arith.constant 0 : i32
    return %arg0, %c0_i32, %c0_i32_0 : i32, i32, i32
  }
  func.func @transform_8(%arg0: i32) -> (i32, i32, i32) {
    %c0_i32 = arith.constant 0 : i32
    %c0_i32_0 = arith.constant 0 : i32
    %c0_i32_1 = arith.constant 0 : i32
    return %arg0, %c0_i32, %c0_i32_0 : i32, i32, i32
  }
  func.func @transform_9(%arg0: i32) -> (i32, i32, i32) {
    %c0_i32 = arith.constant 0 : i32
    %c0_i32_0 = arith.constant 0 : i32
    %c0_i32_1 = arith.constant 0 : i32
    return %arg0, %c0_i32, %c0_i32_0 : i32, i32, i32
  }
  func.func @transform_10(%arg0: i32) -> (i32, i32, i32) {
    %c0_i32 = arith.constant 0 : i32
    %c0_i32_0 = arith.constant 0 : i32
    %c0_i32_1 = arith.constant 0 : i32
    return %arg0, %c0_i32, %c0_i32_0 : i32, i32, i32
  }
}

module attributes {stable_mosaic.version = 11 : i64} {
  func.func @_homing_kernel(%arg0: i32, %arg1: memref<1x16x2xf32, #tpu.memory_space<vmem>>, %arg2: memref<1x1x256xf32, #tpu.memory_space<vmem>>, %arg3: memref<1x256x8xf32, #tpu.memory_space<vmem>>, %arg4: memref<2x256xf32, #tpu.memory_space<vmem>>, %arg5: memref<1x16x8xf32, #tpu.memory_space<vmem>>, %arg6: memref<1x16x1xf32, #tpu.memory_space<vmem>>, %arg7: memref<1x16x8xf32, #tpu.memory_space<vmem>>) attributes {dimension_semantics = [#tpu.dimension_semantics<parallel>], iteration_bounds = array<i64: 2>, scalar_prefetch = 0 : i64, scratch_operands = 0 : i64, tpu.core_type = #tpu.core_type<tc>, window_params = [{transform_indices = @transform_0, window_bounds = array<i64: 1, 16, 2>}, {transform_indices = @transform_1, window_bounds = array<i64: 1, 1, 256>}, {transform_indices = @transform_2, window_bounds = array<i64: 1, 256, 8>}, {pipeline_mode = #tpu.pipeline_mode<synchronous>, transform_indices = @transform_3, window_bounds = array<i64: 2, 256>}, {transform_indices = @transform_4, window_bounds = array<i64: 1, 16, 8>}, {transform_indices = @transform_5, window_bounds = array<i64: 1, 16, 1>}, {transform_indices = @transform_6, window_bounds = array<i64: 1, 16, 8>}]} {
    %c0 = arith.constant 0 : index
    %c0_0 = arith.constant 0 : index
    %c0_1 = arith.constant 0 : index
    %0 = vector.load %arg1[%c0, %c0_0, %c0_1] : memref<1x16x2xf32, #tpu.memory_space<vmem>>, vector<1x16x2xf32>
    %1 = vector.shape_cast %0 : vector<1x16x2xf32> to vector<16x2xf32>
    %2 = vector.extract_strided_slice %1 {offsets = [0, 0], sizes = [16, 1], strides = [1, 1]} : vector<16x2xf32> to vector<16x1xf32>
    %3 = vector.extract_strided_slice %1 {offsets = [0, 1], sizes = [16, 1], strides = [1, 1]} : vector<16x2xf32> to vector<16x1xf32>
    %c0_2 = arith.constant 0 : index
    %c0_3 = arith.constant 0 : index
    %4 = vector.load %arg4[%c0_2, %c0_3] : memref<2x256xf32, #tpu.memory_space<vmem>>, vector<1x256xf32>
    %c1 = arith.constant 1 : index
    %c0_4 = arith.constant 0 : index
    %5 = vector.load %arg4[%c1, %c0_4] : memref<2x256xf32, #tpu.memory_space<vmem>>, vector<1x256xf32>
    %6 = vector.broadcast %4 : vector<1x256xf32> to vector<16x256xf32>
    %7 = vector.broadcast %2 : vector<16x1xf32> to vector<16x256xf32>
    %8 = arith.subf %6, %7 : vector<16x256xf32>
    %9 = vector.broadcast %5 : vector<1x256xf32> to vector<16x256xf32>
    %10 = vector.broadcast %3 : vector<16x1xf32> to vector<16x256xf32>
    %11 = arith.subf %9, %10 : vector<16x256xf32>
    %12 = arith.mulf %8, %8 : vector<16x256xf32>
    %13 = arith.mulf %11, %11 : vector<16x256xf32>
    %14 = arith.addf %12, %13 : vector<16x256xf32>
    %cst = arith.constant 9.99999993E-9 : f32
    %15 = vector.broadcast %cst : f32 to vector<16x256xf32>
    %16 = arith.addf %14, %15 : vector<16x256xf32>
    %17 = math.sqrt %16 : vector<16x256xf32>
    %cst_5 = arith.constant 9.99999993E-9 : f32
    %18 = vector.broadcast %cst_5 : f32 to vector<16x256xf32>
    %19 = arith.addf %17, %18 : vector<16x256xf32>
    %20 = tpu.reciprocal %19 {approx = true} : vector<16x256xf32> -> vector<16x256xf32>
    %cst_6 = arith.constant 2.82842708 : f32
    %21 = vector.broadcast %cst_6 : f32 to vector<16x256xf32>
    %22 = arith.mulf %21, %20 : vector<16x256xf32>
    %cst_7 = arith.constant 1.000000e+01 : f32
    %23 = vector.broadcast %cst_7 : f32 to vector<16x256xf32>
    %24 = arith.mulf %23, %22 : vector<16x256xf32>
    %c0_8 = arith.constant 0 : index
    %c0_9 = arith.constant 0 : index
    %c0_10 = arith.constant 0 : index
    %25 = vector.load %arg2[%c0_8, %c0_9, %c0_10] : memref<1x1x256xf32, #tpu.memory_space<vmem>>, vector<1x1x256xf32>
    %26 = vector.shape_cast %25 : vector<1x1x256xf32> to vector<1x256xf32>
    %27 = vector.broadcast %26 : vector<1x256xf32> to vector<16x256xf32>
    %28 = arith.mulf %24, %27 : vector<16x256xf32>
    %cst_11 = arith.constant dense<0xFF800000> : vector<16xf32>
    %29 = vector.multi_reduction <maximumf>, %28, %cst_11 [1] : vector<16x256xf32> to vector<16xf32>
    %30 = vector.shape_cast %29 : vector<16xf32> to vector<16x1xf32>
    %31 = vector.broadcast %30 : vector<16x1xf32> to vector<16x256xf32>
    %32 = arith.subf %28, %31 : vector<16x256xf32>
    %33 = math.exp %32 : vector<16x256xf32>
    %cst_12 = arith.constant dense<0.000000e+00> : vector<16xf32>
    %34 = vector.multi_reduction <add>, %33, %cst_12 [1] : vector<16x256xf32> to vector<16xf32>
    %35 = vector.shape_cast %34 : vector<16xf32> to vector<16x1xf32>
    %36 = tpu.reciprocal %35 {approx = true} : vector<16x1xf32> -> vector<16x1xf32>
    %37 = vector.broadcast %36 : vector<16x1xf32> to vector<16x256xf32>
    %38 = arith.mulf %33, %37 : vector<16x256xf32>
    %39 = arith.truncf %38 : vector<16x256xf32> to vector<16x256xbf16>
    %c0_13 = arith.constant 0 : index
    %c0_14 = arith.constant 0 : index
    %c0_15 = arith.constant 0 : index
    %40 = vector.load %arg3[%c0_13, %c0_14, %c0_15] : memref<1x256x8xf32, #tpu.memory_space<vmem>>, vector<1x256x8xf32>
    %41 = vector.shape_cast %40 : vector<1x256x8xf32> to vector<256x8xf32>
    %42 = arith.truncf %41 : vector<256x8xf32> to vector<256x8xbf16>
    %cst_16 = arith.constant dense<0.000000e+00> : vector<16x8xf32>
    %43 = tpu.matmul %39, %42, %cst_16 {dimension_numbers = #tpu.dot_dimension_numbers<[1], [0], [0], [1], [0, 0, 1, 1], [], []>} : vector<16x256xbf16>, vector<256x8xbf16>, vector<16x8xf32> -> vector<16x8xf32>
    %44 = arith.mulf %43, %43 : vector<16x8xf32>
    %cst_17 = arith.constant dense<0.000000e+00> : vector<16xf32>
    %45 = vector.multi_reduction <add>, %44, %cst_17 [1] : vector<16x8xf32> to vector<16xf32>
    %46 = vector.shape_cast %45 : vector<16xf32> to vector<16x1xf32>
    %47 = math.sqrt %46 : vector<16x1xf32>
    %cst_18 = arith.constant 9.99999997E-7 : f32
    %48 = vector.broadcast %cst_18 : f32 to vector<16x1xf32>
    %49 = arith.maximumf %47, %48 : vector<16x1xf32>
    %50 = vector.broadcast %49 : vector<16x1xf32> to vector<16x8xf32>
    %51 = arith.divf %43, %50 : vector<16x8xf32>
    %c0_19 = arith.constant 0 : index
    %c0_20 = arith.constant 0 : index
    %c0_21 = arith.constant 0 : index
    %52 = vector.load %arg6[%c0_19, %c0_20, %c0_21] : memref<1x16x1xf32, #tpu.memory_space<vmem>>, vector<1x16x1xf32>
    %53 = vector.shape_cast %52 : vector<1x16x1xf32> to vector<16x1xf32>
    %cst_22 = arith.constant 5.000000e-01 : f32
    %54 = vector.broadcast %cst_22 : f32 to vector<16x1xf32>
    %55 = arith.cmpf ogt, %53, %54 : vector<16x1xf32>
    %56 = arith.extui %55 : vector<16x1xi1> to vector<16x1xi32>
    %57 = arith.sitofp %56 : vector<16x1xi32> to vector<16x1xf32>
    %c0_23 = arith.constant 0 : index
    %c0_24 = arith.constant 0 : index
    %c0_25 = arith.constant 0 : index
    %58 = vector.load %arg5[%c0_23, %c0_24, %c0_25] : memref<1x16x8xf32, #tpu.memory_space<vmem>>, vector<1x16x8xf32>
    %59 = vector.shape_cast %58 : vector<1x16x8xf32> to vector<16x8xf32>
    %60 = vector.broadcast %57 : vector<16x1xf32> to vector<16x8xf32>
    %61 = arith.mulf %60, %59 : vector<16x8xf32>
    %cst_26 = arith.constant 1.000000e+00 : f32
    %62 = vector.broadcast %cst_26 : f32 to vector<16x1xf32>
    %63 = arith.subf %62, %57 : vector<16x1xf32>
    %64 = vector.broadcast %63 : vector<16x1xf32> to vector<16x8xf32>
    %65 = arith.mulf %64, %51 : vector<16x8xf32>
    %66 = arith.addf %61, %65 : vector<16x8xf32>
    %67 = arith.mulf %66, %66 : vector<16x8xf32>
    %cst_27 = arith.constant dense<0.000000e+00> : vector<16xf32>
    %68 = vector.multi_reduction <add>, %67, %cst_27 [1] : vector<16x8xf32> to vector<16xf32>
    %69 = vector.shape_cast %68 : vector<16xf32> to vector<16x1xf32>
    %70 = math.sqrt %69 : vector<16x1xf32>
    %cst_28 = arith.constant 9.99999997E-7 : f32
    %71 = vector.broadcast %cst_28 : f32 to vector<16x1xf32>
    %72 = arith.maximumf %70, %71 : vector<16x1xf32>
    %73 = vector.broadcast %72 : vector<16x1xf32> to vector<16x8xf32>
    %74 = arith.divf %66, %73 : vector<16x8xf32>
    %c0_29 = arith.constant 0 : index
    %c0_30 = arith.constant 0 : index
    %c0_31 = arith.constant 0 : index
    %75 = vector.load %arg7[%c0_29, %c0_30, %c0_31] : memref<1x16x8xf32, #tpu.memory_space<vmem>>, vector<1x16x8xf32>
    %76 = vector.shape_cast %75 : vector<1x16x8xf32> to vector<16x8xf32>
    %77 = vector.shape_cast %74 : vector<16x8xf32> to vector<1x16x8xf32>
    tpu.vector_store %arg7[%c0_29, %c0_30, %c0_31], %77 {strides = array<i32>} : memref<1x16x8xf32, #tpu.memory_space<vmem>>, vector<1x16x8xf32>,
    return
  }
  func.func @transform_0(%arg0: i32) -> (i32, i32, i32) {
    %c0_i32 = arith.constant 0 : i32
    %c0_i32_0 = arith.constant 0 : i32
    %c0_i32_1 = arith.constant 0 : i32
    return %arg0, %c0_i32, %c0_i32_0 : i32, i32, i32
  }
  func.func @transform_1(%arg0: i32) -> (i32, i32, i32) {
    %c0_i32 = arith.constant 0 : i32
    %c0_i32_0 = arith.constant 0 : i32
    %c0_i32_1 = arith.constant 0 : i32
    return %arg0, %c0_i32, %c0_i32_0 : i32, i32, i32
  }
  func.func @transform_2(%arg0: i32) -> (i32, i32, i32) {
    %c0_i32 = arith.constant 0 : i32
    %c0_i32_0 = arith.constant 0 : i32
    %c0_i32_1 = arith.constant 0 : i32
    return %arg0, %c0_i32, %c0_i32_0 : i32, i32, i32
  }
  func.func @transform_3(%arg0: i32) -> (i32, i32) {
    %c0_i32 = arith.constant 0 : i32
    %c0_i32_0 = arith.constant 0 : i32
    %c0_i32_1 = arith.constant 0 : i32
    return %c0_i32, %c0_i32_0 : i32, i32
  }
  func.func @transform_4(%arg0: i32) -> (i32, i32, i32) {
    %c0_i32 = arith.constant 0 : i32
    %c0_i32_0 = arith.constant 0 : i32
    %c0_i32_1 = arith.constant 0 : i32
    return %arg0, %c0_i32, %c0_i32_0 : i32, i32, i32
  }
  func.func @transform_5(%arg0: i32) -> (i32, i32, i32) {
    %c0_i32 = arith.constant 0 : i32
    %c0_i32_0 = arith.constant 0 : i32
    %c0_i32_1 = arith.constant 0 : i32
    return %arg0, %c0_i32, %c0_i32_0 : i32, i32, i32
  }
  func.func @transform_6(%arg0: i32) -> (i32, i32, i32) {
    %c0_i32 = arith.constant 0 : i32
    %c0_i32_0 = arith.constant 0 : i32
    %c0_i32_1 = arith.constant 0 : i32
    return %arg0, %c0_i32, %c0_i32_0 : i32, i32, i32
  }
}

module attributes {stable_mosaic.version = 11 : i64} {
  func.func @_round_kernel(%arg0: i32, %arg1: memref<1x256x8xf32, #tpu.memory_space<vmem>>, %arg2: memref<1x16x8xf32, #tpu.memory_space<vmem>>, %arg3: memref<1x16x1xf32, #tpu.memory_space<vmem>>, %arg4: memref<1x16x1xf32, #tpu.memory_space<vmem>>, %arg5: memref<1x16x1xf32, #tpu.memory_space<vmem>>, %arg6: memref<1x16x8xf32, #tpu.memory_space<vmem>>, %arg7: memref<1x16x256xf32, #tpu.memory_space<vmem>>, %arg8: memref<1x16x1xf32, #tpu.memory_space<vmem>>, %arg9: memref<1x1x256xf32, #tpu.memory_space<vmem>>, %arg10: memref<1x16x256xf32, #tpu.memory_space<vmem>>, %arg11: memref<1x16x8xf32, #tpu.memory_space<vmem>>) attributes {dimension_semantics = [#tpu.dimension_semantics<parallel>], iteration_bounds = array<i64: 2>, scalar_prefetch = 0 : i64, scratch_operands = 0 : i64, tpu.core_type = #tpu.core_type<tc>, window_params = [{transform_indices = @transform_0, window_bounds = array<i64: 1, 256, 8>}, {transform_indices = @transform_1, window_bounds = array<i64: 1, 16, 8>}, {transform_indices = @transform_2, window_bounds = array<i64: 1, 16, 1>}, {transform_indices = @transform_3, window_bounds = array<i64: 1, 16, 1>}, {transform_indices = @transform_4, window_bounds = array<i64: 1, 16, 1>}, {transform_indices = @transform_5, window_bounds = array<i64: 1, 16, 8>}, {transform_indices = @transform_6, window_bounds = array<i64: 1, 16, 256>}, {transform_indices = @transform_7, window_bounds = array<i64: 1, 16, 1>}, {transform_indices = @transform_8, window_bounds = array<i64: 1, 1, 256>}, {transform_indices = @transform_9, window_bounds = array<i64: 1, 16, 256>}, {transform_indices = @transform_10, window_bounds = array<i64: 1, 16, 8>}]} {
    %c0 = arith.constant 0 : index
    %c0_0 = arith.constant 0 : index
    %c0_1 = arith.constant 0 : index
    %0 = vector.load %arg1[%c0, %c0_0, %c0_1] : memref<1x256x8xf32, #tpu.memory_space<vmem>>, vector<1x256x8xf32>
    %1 = vector.shape_cast %0 : vector<1x256x8xf32> to vector<256x8xf32>
    %c0_2 = arith.constant 0 : index
    %c0_3 = arith.constant 0 : index
    %c0_4 = arith.constant 0 : index
    %2 = vector.load %arg2[%c0_2, %c0_3, %c0_4] : memref<1x16x8xf32, #tpu.memory_space<vmem>>, vector<1x16x8xf32>
    %3 = vector.shape_cast %2 : vector<1x16x8xf32> to vector<16x8xf32>
    %4 = arith.mulf %3, %3 : vector<16x8xf32>
    %cst = arith.constant dense<0.000000e+00> : vector<16xf32>
    %5 = vector.multi_reduction <add>, %4, %cst [1] : vector<16x8xf32> to vector<16xf32>
    %6 = vector.shape_cast %5 : vector<16xf32> to vector<16x1xf32>
    %7 = math.sqrt %6 : vector<16x1xf32>
    %cst_5 = arith.constant 9.99999993E-9 : f32
    %8 = vector.broadcast %cst_5 : f32 to vector<16x1xf32>
    %9 = arith.maximumf %7, %8 : vector<16x1xf32>
    %10 = vector.broadcast %9 : vector<16x1xf32> to vector<16x8xf32>
    %11 = arith.divf %3, %10 : vector<16x8xf32>
    %12 = arith.truncf %11 : vector<16x8xf32> to vector<16x8xbf16>
    %13 = arith.truncf %1 : vector<256x8xf32> to vector<256x8xbf16>
    %cst_6 = arith.constant dense<0.000000e+00> : vector<16x256xf32>
    %14 = tpu.matmul %12, %13, %cst_6 {dimension_numbers = #tpu.dot_dimension_numbers<[1], [1], [0], [0], [0, 0, 1, 0], [], []>} : vector<16x8xbf16>, vector<256x8xbf16>, vector<16x256xf32> -> vector<16x256xf32>
    %c0_7 = arith.constant 0 : index
    %c0_8 = arith.constant 0 : index
    %c0_9 = arith.constant 0 : index
    %15 = vector.load %arg7[%c0_7, %c0_8, %c0_9] : memref<1x16x256xf32, #tpu.memory_space<vmem>>, vector<1x16x256xf32>
    %16 = vector.shape_cast %15 : vector<1x16x256xf32> to vector<16x256xf32>
    %17 = vector.shape_cast %14 : vector<16x256xf32> to vector<1x16x256xf32>
    tpu.vector_store %arg7[%c0_7, %c0_8, %c0_9], %17 {strides = array<i32>} : memref<1x16x256xf32, #tpu.memory_space<vmem>>, vector<1x16x256xf32>,
    %18 = tpu.iota {dimensions = array<i32: 0>} : vector<16x16xi32>
    %19 = tpu.iota {dimensions = array<i32: 1>} : vector<16x16xi32>
    %20 = arith.cmpi eq, %18, %19 : vector<16x16xi32>
    %21 = arith.extui %20 : vector<16x16xi1> to vector<16x16xi32>
    %22 = arith.sitofp %21 : vector<16x16xi32> to vector<16x16xf32>
    %cst_10 = arith.constant 5.000000e-01 : f32
    %23 = vector.broadcast %cst_10 : f32 to vector<16x256xf32>
    %24 = arith.cmpf ogt, %14, %23 : vector<16x256xf32>
    %25 = arith.extui %24 : vector<16x256xi1> to vector<16x256xi32>
    %26 = arith.sitofp %25 : vector<16x256xi32> to vector<16x256xf32>
    %27 = arith.truncf %26 : vector<16x256xf32> to vector<16x256xbf16>
    %cst_11 = arith.constant dense<0.000000e+00> : vector<16x16xf32>
    %28 = tpu.matmul %27, %27, %cst_11 {dimension_numbers = #tpu.dot_dimension_numbers<[1], [1], [0], [0], [0, 0, 1, 0], [], []>} : vector<16x256xbf16>, vector<16x256xbf16>, vector<16x16xf32> -> vector<16x16xf32>
    %cst_12 = arith.constant dense<0.000000e+00> : vector<16xf32>
    %29 = vector.multi_reduction <add>, %26, %cst_12 [1] : vector<16x256xf32> to vector<16xf32>
    %30 = vector.shape_cast %29 : vector<16xf32> to vector<16x1xf32>
    %31 = vector.broadcast %30 : vector<16x1xf32> to vector<16x16xf32>
    %32 = arith.mulf %31, %22 : vector<16x16xf32>
    %cst_13 = arith.constant dense<0.000000e+00> : vector<16xf32>
    %33 = vector.multi_reduction <add>, %32, %cst_13 [0] : vector<16x16xf32> to vector<16xf32>
    %34 = vector.shape_cast %33 : vector<16xf32> to vector<1x16xf32>
    %35 = vector.broadcast %30 : vector<16x1xf32> to vector<16x16xf32>
    %36 = vector.broadcast %34 : vector<1x16xf32> to vector<16x16xf32>
    %37 = arith.addf %35, %36 : vector<16x16xf32>
    %38 = arith.subf %37, %28 : vector<16x16xf32>
    %cst_14 = arith.constant 9.99999997E-7 : f32
    %39 = vector.broadcast %cst_14 : f32 to vector<16x16xf32>
    %40 = arith.maximumf %38, %39 : vector<16x16xf32>
    %41 = arith.divf %28, %40 : vector<16x16xf32>
    %cst_15 = arith.constant 2.000000e-01 : f32
    %42 = vector.broadcast %cst_15 : f32 to vector<16x16xf32>
    %43 = arith.cmpf ogt, %41, %42 : vector<16x16xf32>
    %cst_16 = arith.constant dense<true> : vector<16x16xi1>
    %44 = arith.xori %20, %cst_16 : vector<16x16xi1>
    %45 = arith.andi %43, %44 : vector<16x16xi1>
    %c0_17 = arith.constant 0 : index
    %c0_18 = arith.constant 0 : index
    %c0_19 = arith.constant 0 : index
    %46 = vector.load %arg3[%c0_17, %c0_18, %c0_19] : memref<1x16x1xf32, #tpu.memory_space<vmem>>, vector<1x16x1xf32>
    %47 = vector.shape_cast %46 : vector<1x16x1xf32> to vector<16x1xf32>
    %48 = vector.broadcast %47 : vector<16x1xf32> to vector<16x16xf32>
    %49 = arith.mulf %48, %22 : vector<16x16xf32>
    %cst_20 = arith.constant dense<0.000000e+00> : vector<16xf32>
    %50 = vector.multi_reduction <add>, %49, %cst_20 [0] : vector<16x16xf32> to vector<16xf32>
    %51 = vector.shape_cast %50 : vector<16xf32> to vector<1x16xf32>
    %52 = vector.broadcast %47 : vector<16x1xf32> to vector<16x16xf32>
    %53 = vector.broadcast %51 : vector<1x16xf32> to vector<16x16xf32>
    %54 = arith.cmpf olt, %52, %53 : vector<16x16xf32>
    %55 = arith.andi %45, %54 : vector<16x16xi1>
    %c0_21 = arith.constant 0 : index
    %c0_22 = arith.constant 0 : index
    %c0_23 = arith.constant 0 : index
    %56 = vector.load %arg4[%c0_21, %c0_22, %c0_23] : memref<1x16x1xf32, #tpu.memory_space<vmem>>, vector<1x16x1xf32>
    %57 = vector.shape_cast %56 : vector<1x16x1xf32> to vector<16x1xf32>
    %58 = vector.broadcast %57 : vector<16x1xf32> to vector<16x16xf32>
    %59 = arith.mulf %58, %22 : vector<16x16xf32>
    %cst_24 = arith.constant dense<0.000000e+00> : vector<16xf32>
    %60 = vector.multi_reduction <add>, %59, %cst_24 [0] : vector<16x16xf32> to vector<16xf32>
    %61 = vector.shape_cast %60 : vector<16xf32> to vector<1x16xf32>
    %cst_25 = arith.constant 5.000000e-01 : f32
    %62 = vector.broadcast %cst_25 : f32 to vector<16x1xf32>
    %63 = arith.cmpf ogt, %57, %62 : vector<16x1xf32>
    %cst_26 = arith.constant 5.000000e-01 : f32
    %64 = vector.broadcast %cst_26 : f32 to vector<1x16xf32>
    %65 = arith.cmpf ogt, %61, %64 : vector<1x16xf32>
    %cst_27 = arith.constant dense<true> : vector<16x1xi1>
    %66 = arith.xori %63, %cst_27 : vector<16x1xi1>
    %cst_28 = arith.constant dense<true> : vector<1x16xi1>
    %67 = arith.xori %65, %cst_28 : vector<1x16xi1>
    %68 = vector.broadcast %63 : vector<16x1xi1> to vector<16x16xi1>
    %69 = vector.broadcast %67 : vector<1x16xi1> to vector<16x16xi1>
    %70 = arith.andi %68, %69 : vector<16x16xi1>
    %cst_29 = arith.constant dense<true> : vector<16x16xi1>
    %71 = arith.xori %70, %cst_29 : vector<16x16xi1>
    %72 = arith.andi %55, %71 : vector<16x16xi1>
    %73 = vector.broadcast %66 : vector<16x1xi1> to vector<16x16xi1>
    %74 = vector.broadcast %65 : vector<1x16xi1> to vector<16x16xi1>
    %75 = arith.andi %73, %74 : vector<16x16xi1>
    %76 = arith.andi %75, %45 : vector<16x16xi1>
    %77 = arith.ori %72, %76 : vector<16x16xi1>
    %cst_30 = arith.constant 1.000000e+00 : f32
    %cst_31 = arith.constant 0.000000e+00 : f32
    %78 = vector.broadcast %cst_30 : f32 to vector<16x16xf32>
    %79 = vector.broadcast %cst_31 : f32 to vector<16x16xf32>
    %80 = arith.select %77, %78, %79 : vector<16x16xi1>, vector<16x16xf32>
    %cst_32 = arith.constant dense<0xFF800000> : vector<16xf32>
    %81 = vector.multi_reduction <maximumf>, %80, %cst_32 [1] : vector<16x16xf32> to vector<16xf32>
    %cst_33 = arith.constant 0.000000e+00 : f32
    %82 = vector.broadcast %cst_33 : f32 to vector<16xf32>
    %83 = arith.cmpf ogt, %81, %82 : vector<16xf32>
    %84 = vector.shape_cast %83 : vector<16xi1> to vector<16x1xi1>
    %cst_34 = arith.constant dense<true> : vector<16x1xi1>
    %85 = arith.xori %84, %cst_34 : vector<16x1xi1>
    %86 = arith.extui %85 : vector<16x1xi1> to vector<16x1xi32>
    %87 = arith.sitofp %86 : vector<16x1xi32> to vector<16x1xf32>
    %c0_35 = arith.constant 0 : index
    %c0_36 = arith.constant 0 : index
    %c0_37 = arith.constant 0 : index
    %88 = vector.load %arg5[%c0_35, %c0_36, %c0_37] : memref<1x16x1xf32, #tpu.memory_space<vmem>>, vector<1x16x1xf32>
    %89 = vector.shape_cast %88 : vector<1x16x1xf32> to vector<16x1xf32>
    %90 = arith.mulf %87, %89 : vector<16x1xf32>
    %c0_38 = arith.constant 0 : index
    %c0_39 = arith.constant 0 : index
    %c0_40 = arith.constant 0 : index
    %91 = vector.load %arg8[%c0_38, %c0_39, %c0_40] : memref<1x16x1xf32, #tpu.memory_space<vmem>>, vector<1x16x1xf32>
    %92 = vector.shape_cast %91 : vector<1x16x1xf32> to vector<16x1xf32>
    %93 = vector.shape_cast %90 : vector<16x1xf32> to vector<1x16x1xf32>
    tpu.vector_store %arg8[%c0_38, %c0_39, %c0_40], %93 {strides = array<i32>} : memref<1x16x1xf32, #tpu.memory_space<vmem>>, vector<1x16x1xf32>,
    %94 = vector.broadcast %90 : vector<16x1xf32> to vector<16x256xf32>
    %95 = arith.mulf %14, %94 : vector<16x256xf32>
    %cst_41 = arith.constant dense<0xFF800000> : vector<256xf32>
    %96 = vector.multi_reduction <maximumf>, %95, %cst_41 [0] : vector<16x256xf32> to vector<256xf32>
    %97 = vector.shape_cast %96 : vector<256xf32> to vector<1x256xf32>
    %cst_42 = arith.constant 1.000000e+00 : f32
    %98 = vector.broadcast %cst_42 : f32 to vector<1x256xf32>
    %99 = arith.minimumf %97, %98 : vector<1x256xf32>
    %cst_43 = arith.constant 1.000000e+00 : f32
    %100 = vector.broadcast %cst_43 : f32 to vector<1x256xf32>
    %101 = arith.subf %100, %99 : vector<1x256xf32>
    %c0_44 = arith.constant 0 : index
    %c0_45 = arith.constant 0 : index
    %c0_46 = arith.constant 0 : index
    %102 = vector.load %arg9[%c0_44, %c0_45, %c0_46] : memref<1x1x256xf32, #tpu.memory_space<vmem>>, vector<1x1x256xf32>
    %103 = vector.shape_cast %102 : vector<1x1x256xf32> to vector<1x256xf32>
    %104 = vector.shape_cast %101 : vector<1x256xf32> to vector<1x1x256xf32>
    tpu.vector_store %arg9[%c0_44, %c0_45, %c0_46], %104 {strides = array<i32>} : memref<1x1x256xf32, #tpu.memory_space<vmem>>, vector<1x1x256xf32>,
    %105 = vector.broadcast %90 : vector<16x1xf32> to vector<16x256xf32>
    %106 = arith.mulf %105, %14 : vector<16x256xf32>
    %cst_47 = arith.constant 1.000000e+00 : f32
    %107 = vector.broadcast %cst_47 : f32 to vector<16x1xf32>
    %108 = arith.subf %107, %90 : vector<16x1xf32>
    %109 = vector.broadcast %108 : vector<16x1xf32> to vector<16x256xf32>
    %110 = vector.broadcast %101 : vector<1x256xf32> to vector<16x256xf32>
    %111 = arith.mulf %109, %110 : vector<16x256xf32>
    %112 = arith.addf %106, %111 : vector<16x256xf32>
    %c0_48 = arith.constant 0 : index
    %c0_49 = arith.constant 0 : index
    %c0_50 = arith.constant 0 : index
    %113 = vector.load %arg10[%c0_48, %c0_49, %c0_50] : memref<1x16x256xf32, #tpu.memory_space<vmem>>, vector<1x16x256xf32>
    %114 = vector.shape_cast %113 : vector<1x16x256xf32> to vector<16x256xf32>
    %115 = vector.shape_cast %112 : vector<16x256xf32> to vector<1x16x256xf32>
    tpu.vector_store %arg10[%c0_48, %c0_49, %c0_50], %115 {strides = array<i32>} : memref<1x16x256xf32, #tpu.memory_space<vmem>>, vector<1x16x256xf32>,
    %116 = arith.truncf %1 : vector<256x8xf32> to vector<256x8xbf16>
    %cst_51 = arith.constant dense<0.000000e+00> : vector<16x8xf32>
    %117 = tpu.matmul %27, %116, %cst_51 {dimension_numbers = #tpu.dot_dimension_numbers<[1], [0], [0], [1], [0, 0, 1, 1], [], []>} : vector<16x256xbf16>, vector<256x8xbf16>, vector<16x8xf32> -> vector<16x8xf32>
    %cst_52 = arith.constant 3.906250e-03 : f32
    %118 = vector.broadcast %cst_52 : f32 to vector<16x8xf32>
    %119 = arith.mulf %117, %118 : vector<16x8xf32>
    %120 = arith.mulf %119, %119 : vector<16x8xf32>
    %cst_53 = arith.constant dense<0.000000e+00> : vector<16xf32>
    %121 = vector.multi_reduction <add>, %120, %cst_53 [1] : vector<16x8xf32> to vector<16xf32>
    %122 = vector.shape_cast %121 : vector<16xf32> to vector<16x1xf32>
    %123 = math.sqrt %122 : vector<16x1xf32>
    %cst_54 = arith.constant 9.99999997E-7 : f32
    %124 = vector.broadcast %cst_54 : f32 to vector<16x1xf32>
    %125 = arith.maximumf %123, %124 : vector<16x1xf32>
    %126 = vector.broadcast %125 : vector<16x1xf32> to vector<16x8xf32>
    %127 = arith.divf %119, %126 : vector<16x8xf32>
    %c0_55 = arith.constant 0 : index
    %c0_56 = arith.constant 0 : index
    %c0_57 = arith.constant 0 : index
    %128 = vector.load %arg6[%c0_55, %c0_56, %c0_57] : memref<1x16x8xf32, #tpu.memory_space<vmem>>, vector<1x16x8xf32>
    %129 = vector.shape_cast %128 : vector<1x16x8xf32> to vector<16x8xf32>
    %130 = vector.broadcast %90 : vector<16x1xf32> to vector<16x8xf32>
    %131 = arith.mulf %130, %127 : vector<16x8xf32>
    %cst_58 = arith.constant 1.000000e+02 : f32
    %132 = vector.broadcast %cst_58 : f32 to vector<16x8xf32>
    %133 = arith.mulf %131, %132 : vector<16x8xf32>
    %134 = arith.addf %129, %133 : vector<16x8xf32>
    %c0_59 = arith.constant 0 : index
    %c0_60 = arith.constant 0 : index
    %c0_61 = arith.constant 0 : index
    %135 = vector.load %arg11[%c0_59, %c0_60, %c0_61] : memref<1x16x8xf32, #tpu.memory_space<vmem>>, vector<1x16x8xf32>
    %136 = vector.shape_cast %135 : vector<1x16x8xf32> to vector<16x8xf32>
    %137 = vector.shape_cast %134 : vector<16x8xf32> to vector<1x16x8xf32>
    tpu.vector_store %arg11[%c0_59, %c0_60, %c0_61], %137 {strides = array<i32>} : memref<1x16x8xf32, #tpu.memory_space<vmem>>, vector<1x16x8xf32>,
    return
  }
  func.func @transform_0(%arg0: i32) -> (i32, i32, i32) {
    %c0_i32 = arith.constant 0 : i32
    %c0_i32_0 = arith.constant 0 : i32
    %c0_i32_1 = arith.constant 0 : i32
    return %arg0, %c0_i32, %c0_i32_0 : i32, i32, i32
  }
  func.func @transform_1(%arg0: i32) -> (i32, i32, i32) {
    %c0_i32 = arith.constant 0 : i32
    %c0_i32_0 = arith.constant 0 : i32
    %c0_i32_1 = arith.constant 0 : i32
    return %arg0, %c0_i32, %c0_i32_0 : i32, i32, i32
  }
  func.func @transform_2(%arg0: i32) -> (i32, i32, i32) {
    %c0_i32 = arith.constant 0 : i32
    %c0_i32_0 = arith.constant 0 : i32
    %c0_i32_1 = arith.constant 0 : i32
    return %arg0, %c0_i32, %c0_i32_0 : i32, i32, i32
  }
  func.func @transform_3(%arg0: i32) -> (i32, i32, i32) {
    %c0_i32 = arith.constant 0 : i32
    %c0_i32_0 = arith.constant 0 : i32
    %c0_i32_1 = arith.constant 0 : i32
    return %arg0, %c0_i32, %c0_i32_0 : i32, i32, i32
  }
  func.func @transform_4(%arg0: i32) -> (i32, i32, i32) {
    %c0_i32 = arith.constant 0 : i32
    %c0_i32_0 = arith.constant 0 : i32
    %c0_i32_1 = arith.constant 0 : i32
    return %arg0, %c0_i32, %c0_i32_0 : i32, i32, i32
  }
  func.func @transform_5(%arg0: i32) -> (i32, i32, i32) {
    %c0_i32 = arith.constant 0 : i32
    %c0_i32_0 = arith.constant 0 : i32
    %c0_i32_1 = arith.constant 0 : i32
    return %arg0, %c0_i32, %c0_i32_0 : i32, i32, i32
  }
  func.func @transform_6(%arg0: i32) -> (i32, i32, i32) {
    %c0_i32 = arith.constant 0 : i32
    %c0_i32_0 = arith.constant 0 : i32
    %c0_i32_1 = arith.constant 0 : i32
    return %arg0, %c0_i32, %c0_i32_0 : i32, i32, i32
  }
  func.func @transform_7(%arg0: i32) -> (i32, i32, i32) {
    %c0_i32 = arith.constant 0 : i32
    %c0_i32_0 = arith.constant 0 : i32
    %c0_i32_1 = arith.constant 0 : i32
    return %arg0, %c0_i32, %c0_i32_0 : i32, i32, i32
  }
  func.func @transform_8(%arg0: i32) -> (i32, i32, i32) {
    %c0_i32 = arith.constant 0 : i32
    %c0_i32_0 = arith.constant 0 : i32
    %c0_i32_1 = arith.constant 0 : i32
    return %arg0, %c0_i32, %c0_i32_0 : i32, i32, i32
  }
  func.func @transform_9(%arg0: i32) -> (i32, i32, i32) {
    %c0_i32 = arith.constant 0 : i32
    %c0_i32_0 = arith.constant 0 : i32
    %c0_i32_1 = arith.constant 0 : i32
    return %arg0, %c0_i32, %c0_i32_0 : i32, i32, i32
  }
  func.func @transform_10(%arg0: i32) -> (i32, i32, i32) {
    %c0_i32 = arith.constant 0 : i32
    %c0_i32_0 = arith.constant 0 : i32
    %c0_i32_1 = arith.constant 0 : i32
    return %arg0, %c0_i32, %c0_i32_0 : i32, i32, i32
  }
}

</mosaic_0001>

<llo_original>
// kernel: mul.606
$region0: #{mul.606}
  %s0 = inlined_call_operand.vmem [shape: f32[2,16,256], index: 0, kind: input, shape index: {}]
  %s1 = inlined_call_operand.vmem [shape: f32[2,16,16,16], index: 1, kind: output, shape index: {}]
  %v2 = vld [vmem:[%s0] sm:$0xff]
  %vm3 = vcmask 130048
  %4 = vst.msk [vmem:[%s1] ss:$16 sm:$0x3] %vm3, %v2
  %5 = vst.msk [vmem:[%s1] ss:$16 sm:$0xc] %vm3, %v2
  %6 = vst.msk [vmem:[%s1] ss:$16 sm:$0x30] %vm3, %v2
  %7 = vst.msk [vmem:[%s1] ss:$16 sm:$0xc0] %vm3, %v2
  %s8 = scalar_lea.vmem %s0, 8
  %v9 = vld [vmem:[%s8] sm:$0xff]
  %vm10 = vcmask 130048
  %s11 = scalar_lea.vmem %s1, 8
  %12 = vst.msk [vmem:[%s11] ss:$16 sm:$0x3] %vm10, %v9
  %s13 = scalar_lea.vmem %s1, 8
  %14 = vst.msk [vmem:[%s13] ss:$16 sm:$0xc] %vm10, %v9
  %s15 = scalar_lea.vmem %s1, 8
  %16 = vst.msk [vmem:[%s15] ss:$16 sm:$0x30] %vm10, %v9
  %s17 = scalar_lea.vmem %s1, 8
  %18 = vst.msk [vmem:[%s17] ss:$16 sm:$0xc0] %vm10, %v9
  %s19 = scalar_lea.vmem %s0, 16
  %v20 = vld [vmem:[%s19] sm:$0xff]
  %vm21 = vcmask 130048
  %s22 = scalar_lea.vmem %s1, 128
  %23 = vst.msk [vmem:[%s22] ss:$16 sm:$0x3] %vm21, %v20
  %s24 = scalar_lea.vmem %s1, 128
  %25 = vst.msk [vmem:[%s24] ss:$16 sm:$0xc] %vm21, %v20
  %s26 = scalar_lea.vmem %s1, 128
  %27 = vst.msk [vmem:[%s26] ss:$16 sm:$0x30] %vm21, %v20
  %s28 = scalar_lea.vmem %s1, 128
  %29 = vst.msk [vmem:[%s28] ss:$16 sm:$0xc0] %vm21, %v20
  %s30 = scalar_lea.vmem %s0, 24
  %v31 = vld [vmem:[%s30] sm:$0xff]
  %vm32 = vcmask 130048
  %s33 = scalar_lea.vmem %s1, 136
  %34 = vst.msk [vmem:[%s33] ss:$16 sm:$0x3] %vm32, %v31
  %s35 = scalar_lea.vmem %s1, 136
  %36 = vst.msk [vmem:[%s35] ss:$16 sm:$0xc] %vm32, %v31
  %s37 = scalar_lea.vmem %s1, 136
  %38 = vst.msk [vmem:[%s37] ss:$16 sm:$0x30] %vm32, %v31
  %s39 = scalar_lea.vmem %s1, 136
  %40 = vst.msk [vmem:[%s39] ss:$16 sm:$0xc0] %vm32, %v31
  %s41 = scalar_lea.vmem %s0, 32
  %v42 = vld [vmem:[%s41] sm:$0xff]
  %vm43 = vcmask 130048
  %s44 = scalar_lea.vmem %s1, 256
  %45 = vst.msk [vmem:[%s44] ss:$16 sm:$0x3] %vm43, %v42
  %s46 = scalar_lea.vmem %s1, 256
  %47 = vst.msk [vmem:[%s46] ss:$16 sm:$0xc] %vm43, %v42
  %s48 = scalar_lea.vmem %s1, 256
  %49 = vst.msk [vmem:[%s48] ss:$16 sm:$0x30] %vm43, %v42
  %s50 = scalar_lea.vmem %s1, 256
  %51 = vst.msk [vmem:[%s50] ss:$16 sm:$0xc0] %vm43, %v42
  %s52 = scalar_lea.vmem %s0, 40
  %v53 = vld [vmem:[%s52] sm:$0xff]
  %vm54 = vcmask 130048
  %s55 = scalar_lea.vmem %s1, 264
  %56 = vst.msk [vmem:[%s55] ss:$16 sm:$0x3] %vm54, %v53
  %s57 = scalar_lea.vmem %s1, 264
  %58 = vst.msk [vmem:[%s57] ss:$16 sm:$0xc] %vm54, %v53
  %s59 = scalar_lea.vmem %s1, 264
  %60 = vst.msk [vmem:[%s59] ss:$16 sm:$0x30] %vm54, %v53
  %s61 = scalar_lea.vmem %s1, 264
  %62 = vst.msk [vmem:[%s61] ss:$16 sm:$0xc0] %vm54, %v53
  %s63 = scalar_lea.vmem %s0, 48
  %v64 = vld [vmem:[%s63] sm:$0xff]
  %vm65 = vcmask 130048
  %s66 = scalar_lea.vmem %s1, 384
  %67 = vst.msk [vmem:[%s66] ss:$16 sm:$0x3] %vm65, %v64
  %s68 = scalar_lea.vmem %s1, 384
  %69 = vst.msk [vmem:[%s68] ss:$16 sm:$0xc] %vm65, %v64
  %s70 = scalar_lea.vmem %s1, 384
  %71 = vst.msk [vmem:[%s70] ss:$16 sm:$0x30] %vm65, %v64
  %s72 = scalar_lea.vmem %s1, 384
  %73 = vst.msk [vmem:[%s72] ss:$16 sm:$0xc0] %vm65, %v64
  %s74 = scalar_lea.vmem %s0, 56
  %v75 = vld [vmem:[%s74] sm:$0xff]
  %vm76 = vcmask 130048
  %s77 = scalar_lea.vmem %s1, 392
  %78 = vst.msk [vmem:[%s77] ss:$16 sm:$0x3] %vm76, %v75
  %s79 = scalar_lea.vmem %s1, 392
  %80 = vst.msk [vmem:[%s79] ss:$16 sm:$0xc] %vm76, %v75
  %s81 = scalar_lea.vmem %s1, 392
  %82 = vst.msk [vmem:[%s81] ss:$16 sm:$0x30] %vm76, %v75
  %s83 = scalar_lea.vmem %s1, 392
  %84 = vst.msk [vmem:[%s83] ss:$16 sm:$0xc0] %vm76, %v75
  %v85 = vld.sshfl [vmem:[%s0] sm:$0xff pattern:$0xb3a29180]
  %86 = vrot.lane.b32.xlu0 %v85, 112
  %v87 = vpop.permute.xlu0 %86
  %vm88 = vcmask 130048
  %s89 = scalar_lea.vmem %s1, 1
  %90 = vst.msk [vmem:[%s89] ss:$8 sm:$0xf] %vm88, %v87
  %s91 = scalar_lea.vmem %s1, 1
  %92 = vst.msk [vmem:[%s91] ss:$8 sm:$0xf0] %vm88, %v87
  %s93 = scalar_lea.vmem %s0, 4
  %v94 = vld.sshfl [vmem:[%s93] sm:$0xff pattern:$0xb3a29180]
  %95 = vrot.lane.b32.xlu0 %v94, 112
  %v96 = vpop.permute.xlu0 %95
  %vm97 = vcmask 130048
  %s98 = scalar_lea.vmem %s1, 65
  %99 = vst.msk [vmem:[%s98] ss:$8 sm:$0xf] %vm97, %v96
  %s100 = scalar_lea.vmem %s1, 65
  %101 = vst.msk [vmem:[%s100] ss:$8 sm:$0xf0] %vm97, %v96
  %s102 = scalar_lea.vmem %s0, 16
  %v103 = vld.sshfl [vmem:[%s102] sm:$0xff pattern:$0xb3a29180]
  %104 = vrot.lane.b32.xlu0 %v103, 112
  %v105 = vpop.permute.xlu0 %104
  %vm106 = vcmask 130048
  %s107 = scalar_lea.vmem %s1, 129
  %108 = vst.msk [vmem:[%s107] ss:$8 sm:$0xf] %vm106, %v105
  %s109 = scalar_lea.vmem %s1, 129
  %110 = vst.msk [vmem:[%s109] ss:$8 sm:$0xf0] %vm106, %v105
  %s111 = scalar_lea.vmem %s0, 20
  %v112 = vld.sshfl [vmem:[%s111] sm:$0xff pattern:$0xb3a29180]
  %113 = vrot.lane.b32.xlu0 %v112, 112
  %v114 = vpop.permute.xlu0 %113
  %vm115 = vcmask 130048
  %s116 = scalar_lea.vmem %s1, 193
  %117 = vst.msk [vmem:[%s116] ss:$8 sm:$0xf] %vm115, %v114
  %s118 = scalar_lea.vmem %s1, 193
  %119 = vst.msk [vmem:[%s118] ss:$8 sm:$0xf0] %vm115, %v114
  %s120 = scalar_lea.vmem %s0, 32
  %v121 = vld.sshfl [vmem:[%s120] sm:$0xff pattern:$0xb3a29180]
  %122 = vrot.lane.b32.xlu0 %v121, 112
  %v123 = vpop.permute.xlu0 %122
  %vm124 = vcmask 130048
  %s125 = scalar_lea.vmem %s1, 257
  %126 = vst.msk [vmem:[%s125] ss:$8 sm:$0xf] %vm124, %v123
  %s127 = scalar_lea.vmem %s1, 257
  %128 = vst.msk [vmem:[%s127] ss:$8 sm:$0xf0] %vm124, %v123
  %s129 = scalar_lea.vmem %s0, 36
  %v130 = vld.sshfl [vmem:[%s129] sm:$0xff pattern:$0xb3a29180]
  %131 = vrot.lane.b32.xlu0 %v130, 112
  %v132 = vpop.permute.xlu0 %131
  %vm133 = vcmask 130048
  %s134 = scalar_lea.vmem %s1, 321
  %135 = vst.msk [vmem:[%s134] ss:$8 sm:$0xf] %vm133, %v132
  %s136 = scalar_lea.vmem %s1, 321
  %137 = vst.msk [vmem:[%s136] ss:$8 sm:$0xf0] %vm133, %v132
  %s138 = scalar_lea.vmem %s0, 48
  %v139 = vld.sshfl [vmem:[%s138] sm:$0xff pattern:$0xb3a29180]
  %140 = vrot.lane.b32.xlu0 %v139, 112
  %v141 = vpop.permute.xlu0 %140
  %vm142 = vcmask 130048
  %s143 = scalar_lea.vmem %s1, 385
  %144 = vst.msk [vmem:[%s143] ss:$8 sm:$0xf] %vm142, %v141
  %s145 = scalar_lea.vmem %s1, 385
  %146 = vst.msk [vmem:[%s145] ss:$8 sm:$0xf0] %vm142, %v141
  %s147 = scalar_lea.vmem %s0, 52
  %v148 = vld.sshfl [vmem:[%s147] sm:$0xff pattern:$0xb3a29180]
  %149 = vrot.lane.b32.xlu0 %v148, 112
  %v150 = vpop.permute.xlu0 %149
  %vm151 = vcmask 130048
  %s152 = scalar_lea.vmem %s1, 449
  %153 = vst.msk [vmem:[%s152] ss:$8 sm:$0xf] %vm151, %v150
  %s154 = scalar_lea.vmem %s1, 449
  %155 = vst.msk [vmem:[%s154] ss:$8 sm:$0xf0] %vm151, %v150
  %v156 = vld.sshfl [vmem:[%s0] sm:$0xff pattern:$0xb3a29180]
  %157 = vrot.lane.b32.xlu0 %v156, 96
  %v158 = vpop.permute.xlu0 %157
  %vm159 = vcmask 130048
  %s160 = scalar_lea.vmem %s1, 2
  %161 = vst.msk [vmem:[%s160] ss:$8 sm:$0xf] %vm159, %v158
  %s162 = scalar_lea.vmem %s1, 2
  %163 = vst.msk [vmem:[%s162] ss:$8 sm:$0xf0] %vm159, %v158
  %s164 = scalar_lea.vmem %s0, 4
  %v165 = vld.sshfl [vmem:[%s164] sm:$0xff pattern:$0xb3a29180]
  %166 = vrot.lane.b32.xlu0 %v165, 96
  %v167 = vpop.permute.xlu0 %166
  %vm168 = vcmask 130048
  %s169 = scalar_lea.vmem %s1, 66
  %170 = vst.msk [vmem:[%s169] ss:$8 sm:$0xf] %vm168, %v167
  %s171 = scalar_lea.vmem %s1, 66
  %172 = vst.msk [vmem:[%s171] ss:$8 sm:$0xf0] %vm168, %v167
  %s173 = scalar_lea.vmem %s0, 16
  %v174 = vld.sshfl [vmem:[%s173] sm:$0xff pattern:$0xb3a29180]
  %175 = vrot.lane.b32.xlu0 %v174, 96
  %v176 = vpop.permute.xlu0 %175
  %vm177 = vcmask 130048
  %s178 = scalar_lea.vmem %s1, 130
  %179 = vst.msk [vmem:[%s178] ss:$8 sm:$0xf] %vm177, %v176
  %s180 = scalar_lea.vmem %s1, 130
  %181 = vst.msk [vmem:[%s180] ss:$8 sm:$0xf0] %vm177, %v176
  %s182 = scalar_lea.vmem %s0, 20
  %v183 = vld.sshfl [vmem:[%s182] sm:$0xff pattern:$0xb3a29180]
  %184 = vrot.lane.b32.xlu0 %v183, 96
  %v185 = vpop.permute.xlu0 %184
  %vm186 = vcmask 130048
  %s187 = scalar_lea.vmem %s1, 194
  %188 = vst.msk [vmem:[%s187] ss:$8 sm:$0xf] %vm186, %v185
  %s189 = scalar_lea.vmem %s1, 194
  %190 = vst.msk [vmem:[%s189] ss:$8 sm:$0xf0] %vm186, %v185
  %s191 = scalar_lea.vmem %s0, 32
  %v192 = vld.sshfl [vmem:[%s191] sm:$0xff pattern:$0xb3a29180]
  %193 = vrot.lane.b32.xlu0 %v192, 96
  %v194 = vpop.permute.xlu0 %193
  %vm195 = vcmask 130048
  %s196 = scalar_lea.vmem %s1, 258
  %197 = vst.msk [vmem:[%s196] ss:$8 sm:$0xf] %vm195, %v194
  %s198 = scalar_lea.vmem %s1, 258
  %199 = vst.msk [vmem:[%s198] ss:$8 sm:$0xf0] %vm195, %v194
  %s200 = scalar_lea.vmem %s0, 36
  %v201 = vld.sshfl [vmem:[%s200] sm:$0xff pattern:$0xb3a29180]
  %202 = vrot.lane.b32.xlu0 %v201, 96
  %v203 = vpop.permute.xlu0 %202
  %vm204 = vcmask 130048
  %s205 = scalar_lea.vmem %s1, 322
  %206 = vst.msk [vmem:[%s205] ss:$8 sm:$0xf] %vm204, %v203
  %s207 = scalar_lea.vmem %s1, 322
  %208 = vst.msk [vmem:[%s207] ss:$8 sm:$0xf0] %vm204, %v203
  %s209 = scalar_lea.vmem %s0, 48
  %v210 = vld.sshfl [vmem:[%s209] sm:$0xff pattern:$0xb3a29180]
  %211 = vrot.lane.b32.xlu0 %v210, 96
  %v212 = vpop.permute.xlu0 %211
  %vm213 = vcmask 130048
  %s214 = scalar_lea.vmem %s1, 386
  %215 = vst.msk [vmem:[%s214] ss:$8 sm:$0xf] %vm213, %v212
  %s216 = scalar_lea.vmem %s1, 386
  %217 = vst.msk [vmem:[%s216] ss:$8 sm:$0xf0] %vm213, %v212
  %s218 = scalar_lea.vmem %s0, 52
  %v219 = vld.sshfl [vmem:[%s218] sm:$0xff pattern:$0xb3a29180]
  %220 = vrot.lane.b32.xlu0 %v219, 96
  %v221 = vpop.permute.xlu0 %220
  %vm222 = vcmask 130048
  %s223 = scalar_lea.vmem %s1, 450
  %224 = vst.msk [vmem:[%s223] ss:$8 sm:$0xf] %vm222, %v221
  %s225 = scalar_lea.vmem %s1, 450
  %226 = vst.msk [vmem:[%s225] ss:$8 sm:$0xf0] %vm222, %v221
  %v227 = vld.sshfl [vmem:[%s0] sm:$0xff pattern:$0xb3a29180]
  %228 = vrot.lane.b32.xlu0 %v227, 80
  %v229 = vpop.permute.xlu0 %228
  %vm230 = vcmask 130048
  %s231 = scalar_lea.vmem %s1, 3
  %232 = vst.msk [vmem:[%s231] ss:$8 sm:$0xf] %vm230, %v229
  %s233 = scalar_lea.vmem %s1, 3
  %234 = vst.msk [vmem:[%s233] ss:$8 sm:$0xf0] %vm230, %v229
  %s235 = scalar_lea.vmem %s0, 4
  %v236 = vld.sshfl [vmem:[%s235] sm:$0xff pattern:$0xb3a29180]
  %237 = vrot.lane.b32.xlu0 %v236, 80
  %v238 = vpop.permute.xlu0 %237
  %vm239 = vcmask 130048
  %s240 = scalar_lea.vmem %s1, 67
  %241 = vst.msk [vmem:[%s240] ss:$8 sm:$0xf] %vm239, %v238
  %s242 = scalar_lea.vmem %s1, 67
  %243 = vst.msk [vmem:[%s242] ss:$8 sm:$0xf0] %vm239, %v238
  %s244 = scalar_lea.vmem %s0, 16
  %v245 = vld.sshfl [vmem:[%s244] sm:$0xff pattern:$0xb3a29180]
  %246 = vrot.lane.b32.xlu0 %v245, 80
  %v247 = vpop.permute.xlu0 %246
  %vm248 = vcmask 130048
  %s249 = scalar_lea.vmem %s1, 131
  %250 = vst.msk [vmem:[%s249] ss:$8 sm:$0xf] %vm248, %v247
  %s251 = scalar_lea.vmem %s1, 131
  %252 = vst.msk [vmem:[%s251] ss:$8 sm:$0xf0] %vm248, %v247
  %s253 = scalar_lea.vmem %s0, 20
  %v254 = vld.sshfl [vmem:[%s253] sm:$0xff pattern:$0xb3a29180]
  %255 = vrot.lane.b32.xlu0 %v254, 80
  %v256 = vpop.permute.xlu0 %255
  %vm257 = vcmask 130048
  %s258 = scalar_lea.vmem %s1, 195
  %259 = vst.msk [vmem:[%s258] ss:$8 sm:$0xf] %vm257, %v256
  %s260 = scalar_lea.vmem %s1, 195
  %261 = vst.msk [vmem:[%s260] ss:$8 sm:$0xf0] %vm257, %v256
  %s262 = scalar_lea.vmem %s0, 32
  %v263 = vld.sshfl [vmem:[%s262] sm:$0xff pattern:$0xb3a29180]
  %264 = vrot.lane.b32.xlu0 %v263, 80
  %v265 = vpop.permute.xlu0 %264
  %vm266 = vcmask 130048
  %s267 = scalar_lea.vmem %s1, 259
  %268 = vst.msk [vmem:[%s267] ss:$8 sm:$0xf] %vm266, %v265
  %s269 = scalar_lea.vmem %s1, 259
  %270 = vst.msk [vmem:[%s269] ss:$8 sm:$0xf0] %vm266, %v265
  %s271 = scalar_lea.vmem %s0, 36
  %v272 = vld.sshfl [vmem:[%s271] sm:$0xff pattern:$0xb3a29180]
  %273 = vrot.lane.b32.xlu0 %v272, 80
  %v274 = vpop.permute.xlu0 %273
  %vm275 = vcmask 130048
  %s276 = scalar_lea.vmem %s1, 323
  %277 = vst.msk [vmem:[%s276] ss:$8 sm:$0xf] %vm275, %v274
  %s278 = scalar_lea.vmem %s1, 323
  %279 = vst.msk [vmem:[%s278] ss:$8 sm:$0xf0] %vm275, %v274
  %s280 = scalar_lea.vmem %s0, 48
  %v281 = vld.sshfl [vmem:[%s280] sm:$0xff pattern:$0xb3a29180]
  %282 = vrot.lane.b32.xlu0 %v281, 80
  %v283 = vpop.permute.xlu0 %282
  %vm284 = vcmask 130048
  %s285 = scalar_lea.vmem %s1, 387
  %286 = vst.msk [vmem:[%s285] ss:$8 sm:$0xf] %vm284, %v283
  %s287 = scalar_lea.vmem %s1, 387
  %288 = vst.msk [vmem:[%s287] ss:$8 sm:$0xf0] %vm284, %v283
  %s289 = scalar_lea.vmem %s0, 52
  %v290 = vld.sshfl [vmem:[%s289] sm:$0xff pattern:$0xb3a29180]
  %291 = vrot.lane.b32.xlu0 %v290, 80
  %v292 = vpop.permute.xlu0 %291
  %vm293 = vcmask 130048
  %s294 = scalar_lea.vmem %s1, 451
  %295 = vst.msk [vmem:[%s294] ss:$8 sm:$0xf] %vm293, %v292
  %s296 = scalar_lea.vmem %s1, 451
  %297 = vst.msk [vmem:[%s296] ss:$8 sm:$0xf0] %vm293, %v292
  %v298 = vld.sshfl [vmem:[%s0] sm:$0xff pattern:$0xb3a29180]
  %299 = vrot.lane.b32.xlu0 %v298, 64
  %v300 = vpop.permute.xlu0 %299
  %vm301 = vcmask 130048
  %s302 = scalar_lea.vmem %s1, 4
  %303 = vst.msk [vmem:[%s302] ss:$8 sm:$0xf] %vm301, %v300
  %s304 = scalar_lea.vmem %s1, 4
  %305 = vst.msk [vmem:[%s304] ss:$8 sm:$0xf0] %vm301, %v300
  %s306 = scalar_lea.vmem %s0, 4
  %v307 = vld.sshfl [vmem:[%s306] sm:$0xff pattern:$0xb3a29180]
  %308 = vrot.lane.b32.xlu0 %v307, 64
  %v309 = vpop.permute.xlu0 %308
  %vm310 = vcmask 130048
  %s311 = scalar_lea.vmem %s1, 68
  %312 = vst.msk [vmem:[%s311] ss:$8 sm:$0xf] %vm310, %v309
  %s313 = scalar_lea.vmem %s1, 68
  %314 = vst.msk [vmem:[%s313] ss:$8 sm:$0xf0] %vm310, %v309
  %s315 = scalar_lea.vmem %s0, 16
  %v316 = vld.sshfl [vmem:[%s315] sm:$0xff pattern:$0xb3a29180]
  %317 = vrot.lane.b32.xlu0 %v316, 64
  %v318 = vpop.permute.xlu0 %317
  %vm319 = vcmask 130048
  %s320 = scalar_lea.vmem %s1, 132
  %321 = vst.msk [vmem:[%s320] ss:$8 sm:$0xf] %vm319, %v318
  %s322 = scalar_lea.vmem %s1, 132
  %323 = vst.msk [vmem:[%s322] ss:$8 sm:$0xf0] %vm319, %v318
  %s324 = scalar_lea.vmem %s0, 20
  %v325 = vld.sshfl [vmem:[%s324] sm:$0xff pattern:$0xb3a29180]
  %326 = vrot.lane.b32.xlu0 %v325, 64
  %v327 = vpop.permute.xlu0 %326
  %vm328 = vcmask 130048
  %s329 = scalar_lea.vmem %s1, 196
  %330 = vst.msk [vmem:[%s329] ss:$8 sm:$0xf] %vm328, %v327
  %s331 = scalar_lea.vmem %s1, 196
  %332 = vst.msk [vmem:[%s331] ss:$8 sm:$0xf0] %vm328, %v327
  %s333 = scalar_lea.vmem %s0, 32
  %v334 = vld.sshfl [vmem:[%s333] sm:$0xff pattern:$0xb3a29180]
  %335 = vrot.lane.b32.xlu0 %v334, 64
  %v336 = vpop.permute.xlu0 %335
  %vm337 = vcmask 130048
  %s338 = scalar_lea.vmem %s1, 260
  %339 = vst.msk [vmem:[%s338] ss:$8 sm:$0xf] %vm337, %v336
  %s340 = scalar_lea.vmem %s1, 260
  %341 = vst.msk [vmem:[%s340] ss:$8 sm:$0xf0] %vm337, %v336
  %s342 = scalar_lea.vmem %s0, 36
  %v343 = vld.sshfl [vmem:[%s342] sm:$0xff pattern:$0xb3a29180]
  %344 = vrot.lane.b32.xlu0 %v343, 64
  %v345 = vpop.permute.xlu0 %344
  %vm346 = vcmask 130048
  %s347 = scalar_lea.vmem %s1, 324
  %348 = vst.msk [vmem:[%s347] ss:$8 sm:$0xf] %vm346, %v345
  %s349 = scalar_lea.vmem %s1, 324
  %350 = vst.msk [vmem:[%s349] ss:$8 sm:$0xf0] %vm346, %v345
  %s351 = scalar_lea.vmem %s0, 48
  %v352 = vld.sshfl [vmem:[%s351] sm:$0xff pattern:$0xb3a29180]
  %353 = vrot.lane.b32.xlu0 %v352, 64
  %v354 = vpop.permute.xlu0 %353
  %vm355 = vcmask 130048
  %s356 = scalar_lea.vmem %s1, 388
  %357 = vst.msk [vmem:[%s356] ss:$8 sm:$0xf] %vm355, %v354
  %s358 = scalar_lea.vmem %s1, 388
  %359 = vst.msk [vmem:[%s358] ss:$8 sm:$0xf0] %vm355, %v354
  %s360 = scalar_lea.vmem %s0, 52
  %v361 = vld.sshfl [vmem:[%s360] sm:$0xff pattern:$0xb3a29180]
  %362 = vrot.lane.b32.xlu0 %v361, 64
  %v363 = vpop.permute.xlu0 %362
  %vm364 = vcmask 130048
  %s365 = scalar_lea.vmem %s1, 452
  %366 = vst.msk [vmem:[%s365] ss:$8 sm:$0xf] %vm364, %v363
  %s367 = scalar_lea.vmem %s1, 452
  %368 = vst.msk [vmem:[%s367] ss:$8 sm:$0xf0] %vm364, %v363
  %v369 = vld.sshfl [vmem:[%s0] sm:$0xff pattern:$0xb3a29180]
  %370 = vrot.lane.b32.xlu0 %v369, 48
  %v371 = vpop.permute.xlu0 %370
  %vm372 = vcmask 130048
  %s373 = scalar_lea.vmem %s1, 5
  %374 = vst.msk [vmem:[%s373] ss:$8 sm:$0xf] %vm372, %v371
  %s375 = scalar_lea.vmem %s1, 5
  %376 = vst.msk [vmem:[%s375] ss:$8 sm:$0xf0] %vm372, %v371
  %s377 = scalar_lea.vmem %s0, 4
  %v378 = vld.sshfl [vmem:[%s377] sm:$0xff pattern:$0xb3a29180]
  %379 = vrot.lane.b32.xlu0 %v378, 48
  %v380 = vpop.permute.xlu0 %379
  %vm381 = vcmask 130048
  %s382 = scalar_lea.vmem %s1, 69
  %383 = vst.msk [vmem:[%s382] ss:$8 sm:$0xf] %vm381, %v380
  %s384 = scalar_lea.vmem %s1, 69
  %385 = vst.msk [vmem:[%s384] ss:$8 sm:$0xf0] %vm381, %v380
  %s386 = scalar_lea.vmem %s0, 16
  %v387 = vld.sshfl [vmem:[%s386] sm:$0xff pattern:$0xb3a29180]
  %388 = vrot.lane.b32.xlu0 %v387, 48
  %v389 = vpop.permute.xlu0 %388
  %vm390 = vcmask 130048
  %s391 = scalar_lea.vmem %s1, 133
  %392 = vst.msk [vmem:[%s391] ss:$8 sm:$0xf] %vm390, %v389
  %s393 = scalar_lea.vmem %s1, 133
  %394 = vst.msk [vmem:[%s393] ss:$8 sm:$0xf0] %vm390, %v389
  %s395 = scalar_lea.vmem %s0, 20
  %v396 = vld.sshfl [vmem:[%s395] sm:$0xff pattern:$0xb3a29180]
  %397 = vrot.lane.b32.xlu0 %v396, 48
  %v398 = vpop.permute.xlu0 %397
  %vm399 = vcmask 130048
  %s400 = scalar_lea.vmem %s1, 197
  %401 = vst.msk [vmem:[%s400] ss:$8 sm:$0xf] %vm399, %v398
  %s402 = scalar_lea.vmem %s1, 197
  %403 = vst.msk [vmem:[%s402] ss:$8 sm:$0xf0] %vm399, %v398
  %s404 = scalar_lea.vmem %s0, 32
  %v405 = vld.sshfl [vmem:[%s404] sm:$0xff pattern:$0xb3a29180]
  %406 = vrot.lane.b32.xlu0 %v405, 48
  %v407 = vpop.permute.xlu0 %406
  %vm408 = vcmask 130048
  %s409 = scalar_lea.vmem %s1, 261
  %410 = vst.msk [vmem:[%s409] ss:$8 sm:$0xf] %vm408, %v407
  %s411 = scalar_lea.vmem %s1, 261
  %412 = vst.msk [vmem:[%s411] ss:$8 sm:$0xf0] %vm408, %v407
  %s413 = scalar_lea.vmem %s0, 36
  %v414 = vld.sshfl [vmem:[%s413] sm:$0xff pattern:$0xb3a29180]
  %415 = vrot.lane.b32.xlu0 %v414, 48
  %v416 = vpop.permute.xlu0 %415
  %vm417 = vcmask 130048
  %s418 = scalar_lea.vmem %s1, 325
  %419 = vst.msk [vmem:[%s418] ss:$8 sm:$0xf] %vm417, %v416
  %s420 = scalar_lea.vmem %s1, 325
  %421 = vst.msk [vmem:[%s420] ss:$8 sm:$0xf0] %vm417, %v416
  %s422 = scalar_lea.vmem %s0, 48
  %v423 = vld.sshfl [vmem:[%s422] sm:$0xff pattern:$0xb3a29180]
  %424 = vrot.lane.b32.xlu0 %v423, 48
  %v425 = vpop.permute.xlu0 %424
  %vm426 = vcmask 130048
  %s427 = scalar_lea.vmem %s1, 389
  %428 = vst.msk [vmem:[%s427] ss:$8 sm:$0xf] %vm426, %v425
  %s429 = scalar_lea.vmem %s1, 389
  %430 = vst.msk [vmem:[%s429] ss:$8 sm:$0xf0] %vm426, %v425
  %s431 = scalar_lea.vmem %s0, 52
  %v432 = vld.sshfl [vmem:[%s431] sm:$0xff pattern:$0xb3a29180]
  %433 = vrot.lane.b32.xlu0 %v432, 48
  %v434 = vpop.permute.xlu0 %433
  %vm435 = vcmask 130048
  %s436 = scalar_lea.vmem %s1, 453
  %437 = vst.msk [vmem:[%s436] ss:$8 sm:$0xf] %vm435, %v434
  %s438 = scalar_lea.vmem %s1, 453
  %439 = vst.msk [vmem:[%s438] ss:$8 sm:$0xf0] %vm435, %v434
  %v440 = vld.sshfl [vmem:[%s0] sm:$0xff pattern:$0xb3a29180]
  %441 = vrot.lane.b32.xlu0 %v440, 32
  %v442 = vpop.permute.xlu0 %441
  %vm443 = vcmask 130048
  %s444 = scalar_lea.vmem %s1, 6
  %445 = vst.msk [vmem:[%s444] ss:$8 sm:$0xf] %vm443, %v442
  %s446 = scalar_lea.vmem %s1, 6
  %447 = vst.msk [vmem:[%s446] ss:$8 sm:$0xf0] %vm443, %v442
  %s448 = scalar_lea.vmem %s0, 4
  %v449 = vld.sshfl [vmem:[%s448] sm:$0xff pattern:$0xb3a29180]
  %450 = vrot.lane.b32.xlu0 %v449, 32
  %v451 = vpop.permute.xlu0 %450
  %vm452 = vcmask 130048
  %s453 = scalar_lea.vmem %s1, 70
  %454 = vst.msk [vmem:[%s453] ss:$8 sm:$0xf] %vm452, %v451
  %s455 = scalar_lea.vmem %s1, 70
  %456 = vst.msk [vmem:[%s455] ss:$8 sm:$0xf0] %vm452, %v451
  %s457 = scalar_lea.vmem %s0, 16
  %v458 = vld.sshfl [vmem:[%s457] sm:$0xff pattern:$0xb3a29180]
  %459 = vrot.lane.b32.xlu0 %v458, 32
  %v460 = vpop.permute.xlu0 %459
  %vm461 = vcmask 130048
  %s462 = scalar_lea.vmem %s1, 134
  %463 = vst.msk [vmem:[%s462] ss:$8 sm:$0xf] %vm461, %v460
  %s464 = scalar_lea.vmem %s1, 134
  %465 = vst.msk [vmem:[%s464] ss:$8 sm:$0xf0] %vm461, %v460
  %s466 = scalar_lea.vmem %s0, 20
  %v467 = vld.sshfl [vmem:[%s466] sm:$0xff pattern:$0xb3a29180]
  %468 = vrot.lane.b32.xlu0 %v467, 32
  %v469 = vpop.permute.xlu0 %468
  %vm470 = vcmask 130048
  %s471 = scalar_lea.vmem %s1, 198
  %472 = vst.msk [vmem:[%s471] ss:$8 sm:$0xf] %vm470, %v469
  %s473 = scalar_lea.vmem %s1, 198
  %474 = vst.msk [vmem:[%s473] ss:$8 sm:$0xf0] %vm470, %v469
  %s475 = scalar_lea.vmem %s0, 32
  %v476 = vld.sshfl [vmem:[%s475] sm:$0xff pattern:$0xb3a29180]
  %477 = vrot.lane.b32.xlu0 %v476, 32
  %v478 = vpop.permute.xlu0 %477
  %vm479 = vcmask 130048
  %s480 = scalar_lea.vmem %s1, 262
  %481 = vst.msk [vmem:[%s480] ss:$8 sm:$0xf] %vm479, %v478
  %s482 = scalar_lea.vmem %s1, 262
  %483 = vst.msk [vmem:[%s482] ss:$8 sm:$0xf0] %vm479, %v478
  %s484 = scalar_lea.vmem %s0, 36
  %v485 = vld.sshfl [vmem:[%s484] sm:$0xff pattern:$0xb3a29180]
  %486 = vrot.lane.b32.xlu0 %v485, 32
  %v487 = vpop.permute.xlu0 %486
  %vm488 = vcmask 130048
  %s489 = scalar_lea.vmem %s1, 326
  %490 = vst.msk [vmem:[%s489] ss:$8 sm:$0xf] %vm488, %v487
  %s491 = scalar_lea.vmem %s1, 326
  %492 = vst.msk [vmem:[%s491] ss:$8 sm:$0xf0] %vm488, %v487
  %s493 = scalar_lea.vmem %s0, 48
  %v494 = vld.sshfl [vmem:[%s493] sm:$0xff pattern:$0xb3a29180]
  %495 = vrot.lane.b32.xlu0 %v494, 32
  %v496 = vpop.permute.xlu0 %495
  %vm497 = vcmask 130048
  %s498 = scalar_lea.vmem %s1, 390
  %499 = vst.msk [vmem:[%s498] ss:$8 sm:$0xf] %vm497, %v496
  %s500 = scalar_lea.vmem %s1, 390
  %501 = vst.msk [vmem:[%s500] ss:$8 sm:$0xf0] %vm497, %v496
  %s502 = scalar_lea.vmem %s0, 52
  %v503 = vld.sshfl [vmem:[%s502] sm:$0xff pattern:$0xb3a29180]
  %504 = vrot.lane.b32.xlu0 %v503, 32
  %v505 = vpop.permute.xlu0 %504
  %vm506 = vcmask 130048
  %s507 = scalar_lea.vmem %s1, 454
  %508 = vst.msk [vmem:[%s507] ss:$8 sm:$0xf] %vm506, %v505
  %s509 = scalar_lea.vmem %s1, 454
  %510 = vst.msk [vmem:[%s509] ss:$8 sm:$0xf0] %vm506, %v505
  %v511 = vld.sshfl [vmem:[%s0] sm:$0xff pattern:$0xb3a29180]
  %512 = vrot.lane.b32.xlu0 %v511, 16
  %v513 = vpop.permute.xlu0 %512
  %vm514 = vcmask 130048
  %s515 = scalar_lea.vmem %s1, 7
  %516 = vst.msk [vmem:[%s515] ss:$8 sm:$0xf] %vm514, %v513
  %s517 = scalar_lea.vmem %s1, 7
  %518 = vst.msk [vmem:[%s517] ss:$8 sm:$0xf0] %vm514, %v513
  %s519 = scalar_lea.vmem %s0, 4
  %v520 = vld.sshfl [vmem:[%s519] sm:$0xff pattern:$0xb3a29180]
  %521 = vrot.lane.b32.xlu0 %v520, 16
  %v522 = vpop.permute.xlu0 %521
  %vm523 = vcmask 130048
  %s524 = scalar_lea.vmem %s1, 71
  %525 = vst.msk [vmem:[%s524] ss:$8 sm:$0xf] %vm523, %v522
  %s526 = scalar_lea.vmem %s1, 71
  %527 = vst.msk [vmem:[%s526] ss:$8 sm:$0xf0] %vm523, %v522
  %s528 = scalar_lea.vmem %s0, 16
  %v529 = vld.sshfl [vmem:[%s528] sm:$0xff pattern:$0xb3a29180]
  %530 = vrot.lane.b32.xlu0 %v529, 16
  %v531 = vpop.permute.xlu0 %530
  %vm532 = vcmask 130048
  %s533 = scalar_lea.vmem %s1, 135
  %534 = vst.msk [vmem:[%s533] ss:$8 sm:$0xf] %vm532, %v531
  %s535 = scalar_lea.vmem %s1, 135
  %536 = vst.msk [vmem:[%s535] ss:$8 sm:$0xf0] %vm532, %v531
  %s537 = scalar_lea.vmem %s0, 20
  %v538 = vld.sshfl [vmem:[%s537] sm:$0xff pattern:$0xb3a29180]
  %539 = vrot.lane.b32.xlu0 %v538, 16
  %v540 = vpop.permute.xlu0 %539
  %vm541 = vcmask 130048
  %s542 = scalar_lea.vmem %s1, 199
  %543 = vst.msk [vmem:[%s542] ss:$8 sm:$0xf] %vm541, %v540
  %s544 = scalar_lea.vmem %s1, 199
  %545 = vst.msk [vmem:[%s544] ss:$8 sm:$0xf0] %vm541, %v540
  %s546 = scalar_lea.vmem %s0, 32
  %v547 = vld.sshfl [vmem:[%s546] sm:$0xff pattern:$0xb3a29180]
  %548 = vrot.lane.b32.xlu0 %v547, 16
  %v549 = vpop.permute.xlu0 %548
  %vm550 = vcmask 130048
  %s551 = scalar_lea.vmem %s1, 263
  %552 = vst.msk [vmem:[%s551] ss:$8 sm:$0xf] %vm550, %v549
  %s553 = scalar_lea.vmem %s1, 263
  %554 = vst.msk [vmem:[%s553] ss:$8 sm:$0xf0] %vm550, %v549
  %s555 = scalar_lea.vmem %s0, 36
  %v556 = vld.sshfl [vmem:[%s555] sm:$0xff pattern:$0xb3a29180]
  %557 = vrot.lane.b32.xlu0 %v556, 16
  %v558 = vpop.permute.xlu0 %557
  %vm559 = vcmask 130048
  %s560 = scalar_lea.vmem %s1, 327
  %561 = vst.msk [vmem:[%s560] ss:$8 sm:$0xf] %vm559, %v558
  %s562 = scalar_lea.vmem %s1, 327
  %563 = vst.msk [vmem:[%s562] ss:$8 sm:$0xf0] %vm559, %v558
  %s564 = scalar_lea.vmem %s0, 48
  %v565 = vld.sshfl [vmem:[%s564] sm:$0xff pattern:$0xb3a29180]
  %566 = vrot.lane.b32.xlu0 %v565, 16
  %v567 = vpop.permute.xlu0 %566
  %vm568 = vcmask 130048
  %s569 = scalar_lea.vmem %s1, 391
  %570 = vst.msk [vmem:[%s569] ss:$8 sm:$0xf] %vm568, %v567
  %s571 = scalar_lea.vmem %s1, 391
  %572 = vst.msk [vmem:[%s571] ss:$8 sm:$0xf0] %vm568, %v567
  %s573 = scalar_lea.vmem %s0, 52
  %v574 = vld.sshfl [vmem:[%s573] sm:$0xff pattern:$0xb3a29180]
  %575 = vrot.lane.b32.xlu0 %v574, 16
  %v576 = vpop.permute.xlu0 %575
  %vm577 = vcmask 130048
  %s578 = scalar_lea.vmem %s1, 455
  %579 = vst.msk [vmem:[%s578] ss:$8 sm:$0xf] %vm577, %v576
  %s580 = scalar_lea.vmem %s1, 455
  %581 = vst.msk [vmem:[%s580] ss:$8 sm:$0xf0] %vm577, %v576

// kernel: competition_forward.13
$region0: #{competition_forward.13}
  #allocation0 [shape = 'u32[]', space=smem, size = 0x4, offset = 0x4, fixed_abs, tag = 'smem constant byte address 0x4 - core index']
  #allocation1 [shape = 'u32[72,128]{1,0:T(1,128)}', space=vmem, size = 0x9000, scoped, tag = 'internal scratch']
  %s0 = inlined_call_operand.vmem [shape: f32[2,256,8], index: 0, kind: input, shape index: {}]
  %s1 = inlined_call_operand.vmem [shape: f32[2,16,8], index: 1, kind: input, shape index: {}]
  %s2 = inlined_call_operand.vmem [shape: f32[2,16,256], index: 2, kind: output, shape index: {0}]
  %s3 = inlined_call_operand.hbm [shape: f32[2,1,256], index: 3, kind: output, shape index: {1}]
  %4 = xla_tuple %s2, %s3
  %s5 = sld [smem:[#allocation0]]
  $region49: #{competition_forward.13} parent=0
    _
  %s7 = ssub.s32 1, %s5
  %s8 = scalar_select 0, %s7, %s5
  $region1: #{competition_forward.13} parent=0
    #allocation2 [shape = 'u8[2048]{0}', space=vmem, size = 0x800, scoped, tag = 'output window, operand 1']
    #allocation3 [shape = 's32[2]{0}', space=sflag, size = 0x8, scoped, tag = 'scoped memory for competition_forward.13']
    %9 = vsyncpa [#allocation3], 0
    %s10 = scalar_lea.sflag [#allocation3], 1
    %11 = vsyncpa %s10, 0
    loop: start=0, step=1, limit=4
    $region2: #{competition_forward.13} parent=1 // loop_pre_header
      _
    $region3: #{competition_forward.13} parent=1 // loop_header
      %s13 = sphi 0, %s17
      %p14 = scmp.ge.s32.totalorder %s13, 4
      %s23 = sphi 0, %s25
      %s26 = sphi 0, %s23
      %s27 = sphi 0, %s26
      %s43 = sphi 0, %s27
      %s49 = sphi 0, %s51
      %s52 = sphi 0, %s49
      %s53 = sphi 0, %s52
      %s69 = sphi 0, %s53
      %s75 = sphi 0, %s77
      %s78 = sphi 0, %s75
      %s79 = sphi 0, %s78
      %s95 = sphi 0, %s79
      %s101 = sphi 0, %s103
      %s104 = sphi 0, %s101
      %s105 = sphi 0, %s104
      %s121 = sphi 0, %s105
    $region4: #{competition_forward.13} parent=1 // loop_header_branch
      %16 = sbr.rel (%p14) target = $region8
    $region5: #{competition_forward.13} parent=1 // loop_body
      %s18 = ssub.s32 %s13, 1
      %s19 = ssub.s32 %s13, 2
      %s20 = sadd.s32 %s13, 1
      %s21 = ssub.s32 %s13, %s20
      %p22 = scmp.eq.s32.totalorder %s21, 0
      %s24 = sadd.s32 %s23, 1
      %s25 = scalar_select %p22, %s23, %s24
      %p28 = pneg %p22
      %p29 = scmp.eq.s32.totalorder %s13, 1
      %p30 = por %p28, %p29
      %p31 = scmp.ne.s32.totalorder %s23, %s26
      %p32 = scmp.eq.s32.totalorder %s13, 0
      %p33 = por %p31, %p32
      %p34 = scmp.ne.s32.totalorder %s23, %s26
      %p35 = scmp.eq.s32.totalorder %s18, 1
      %p36 = por %p34, %p35
      %p37 = scmp.ne.s32.totalorder %s26, %s27
      %p38 = scmp.eq.s32.totalorder %s18, 0
      %p39 = por %p37, %p38
      %p40 = scmp.ne.s32.totalorder %s26, %s27
      %p41 = scmp.eq.s32.totalorder %s19, 1
      %p42 = por %p40, %p41
      %p44 = scmp.ne.s32.totalorder %s27, %s43
      %p45 = scmp.eq.s32.totalorder %s19, 0
      %p46 = por %p44, %p45
      %s47 = ssub.s32 %s13, %s20
      %p48 = scmp.eq.s32.totalorder %s47, 0
      %s50 = sadd.s32 %s49, 1
      %s51 = scalar_select %p48, %s49, %s50
      %p54 = pneg %p48
      %p55 = scmp.eq.s32.totalorder %s13, 1
      %p56 = por %p54, %p55
      %p57 = scmp.ne.s32.totalorder %s49, %s52
      %p58 = scmp.eq.s32.totalorder %s13, 0
      %p59 = por %p57, %p58
      %p60 = scmp.ne.s32.totalorder %s49, %s52
      %p61 = scmp.eq.s32.totalorder %s18, 1
      %p62 = por %p60, %p61
      %p63 = scmp.ne.s32.totalorder %s52, %s53
      %p64 = scmp.eq.s32.totalorder %s18, 0
      %p65 = por %p63, %p64
      %p66 = scmp.ne.s32.totalorder %s52, %s53
      %p67 = scmp.eq.s32.totalorder %s19, 1
      %p68 = por %p66, %p67
      %p70 = scmp.ne.s32.totalorder %s53, %s69
      %p71 = scmp.eq.s32.totalorder %s19, 0
      %p72 = por %p70, %p71
      %s73 = ssub.s32 %s13, %s20
      %p74 = scmp.eq.s32.totalorder %s73, 0
      %s76 = sadd.s32 %s75, 1
      %s77 = scalar_select %p74, %s75, %s76
      %p80 = pneg %p74
      %p81 = scmp.eq.s32.totalorder %s13, 1
      %p82 = por %p80, %p81
      %p83 = scmp.ne.s32.totalorder %s75, %s78
      %p84 = scmp.eq.s32.totalorder %s13, 0
      %p85 = por %p83, %p84
      %p86 = scmp.ne.s32.totalorder %s75, %s78
      %p87 = scmp.eq.s32.totalorder %s18, 1
      %p88 = por %p86, %p87
      %p89 = scmp.ne.s32.totalorder %s78, %s79
      %p90 = scmp.eq.s32.totalorder %s18, 0
      %p91 = por %p89, %p90
      %p92 = scmp.ne.s32.totalorder %s78, %s79
      %p93 = scmp.eq.s32.totalorder %s19, 1
      %p94 = por %p92, %p93
      %p96 = scmp.ne.s32.totalorder %s79, %s95
      %p97 = scmp.eq.s32.totalorder %s19, 0
      %p98 = por %p96, %p97
      %s99 = ssub.s32 %s13, %s20
      %p100 = scmp.eq.s32.totalorder %s99, 0
      %s102 = sadd.s32 %s101, 1
      %s103 = scalar_select %p100, %s101, %s102
      %p106 = pneg %p100
      %p107 = scmp.eq.s32.totalorder %s13, 1
      %p108 = por %p106, %p107
      %p109 = scmp.ne.s32.totalorder %s101, %s104
      %p110 = scmp.eq.s32.totalorder %s13, 0
      %p111 = por %p109, %p110
      %p112 = scmp.ne.s32.totalorder %s101, %s104
      %p113 = scmp.eq.s32.totalorder %s18, 1
      %p114 = por %p112, %p113
      %p115 = scmp.ne.s32.totalorder %s104, %s105
      %p116 = scmp.eq.s32.totalorder %s18, 0
      %p117 = por %p115, %p116
      %p118 = scmp.ne.s32.totalorder %s104, %s105
      %p119 = scmp.eq.s32.totalorder %s19, 1
      %p120 = por %p118, %p119
      %p122 = scmp.ne.s32.totalorder %s105, %s121
      %p123 = scmp.eq.s32.totalorder %s19, 0
      %p124 = por %p122, %p123
      %p125 = scmp.le.s32.totalorder 1, %s13
      %p126 = scmp.lt.s32.totalorder %s13, 3
      %p127 = pnand %p125, %p126
      %p128 = pneg %p127
      // Predicated region
      $region9: #{competition_forward.13} parent=5 // pred_check
        _
      $region10: #{competition_forward.13} parent=5 // pred_check_branch
        %130 = sbr.rel (%p127) target = $region12
      $region11: #{competition_forward.13} parent=5 // pred_region
        %s131 = ssub.s32 %s13, 1
      $region12: #{competition_forward.13} parent=5 // pred_fallthru
        _
      %p132 = scmp.lt.s32.totalorder %s13, 2
      // Predicated region
      $region13: #{competition_forward.13} parent=5 // pred_check
        %p133 = pneg %p132
      $region14: #{competition_forward.13} parent=5 // pred_check_branch
        %135 = sbr.rel (%p133) target = $region16
      $region15: #{competition_forward.13} parent=5 // pred_region
        // Predicated region
        $region17: #{competition_forward.13} parent=15 // pred_check
          %p136 = pneg %p33
        $region18: #{competition_forward.13} parent=15 // pred_check_branch
          %138 = sbr.rel (%p136) target = $region20
        $region19: #{competition_forward.13} parent=15 // pred_region
          %p139 = scmp.lt.s32.totalorder %s13, 1
          %s140 = scalar_select %p139, %s13, 1
          %s141 = smul.addr %s140, 32
          %s142 = smul.addr %s141, 8
          %s143 = scalar_lea.vmem %s0, %s142
        $region20: #{competition_forward.13} parent=15 // pred_fallthru
          _
        // Predicated region
        $region21: #{competition_forward.13} parent=15 // pred_check
          %p144 = pneg %p59
        $region22: #{competition_forward.13} parent=15 // pred_check_branch
          %146 = sbr.rel (%p144) target = $region24
        $region23: #{competition_forward.13} parent=15 // pred_region
          %p147 = scmp.lt.s32.totalorder %s13, 1
          %s148 = scalar_select %p147, %s13, 1
          %s149 = smul.addr %s148, 2
          %s150 = smul.addr %s149, 8
          %s151 = scalar_lea.vmem %s1, %s150
        $region24: #{competition_forward.13} parent=15 // pred_fallthru
          _
      $region16: #{competition_forward.13} parent=5 // pred_fallthru
        _
      %p152 = scmp.le.s32.totalorder 1, %s13
      %p153 = scmp.lt.s32.totalorder %s13, 3
      %p154 = pnand %p152, %p153
      %p155 = pneg %p154
      // Predicated region
      $region25: #{competition_forward.13} parent=5 // pred_check
        _
      $region26: #{competition_forward.13} parent=5 // pred_check_branch
        %157 = sbr.rel (%p154) target = $region28
      $region27: #{competition_forward.13} parent=5 // pred_region
        %s158 = ssub.s32 %s13, 1
        %p159 = scmp.lt.s32.totalorder %s18, 1
        %s160 = scalar_select %p159, %s18, 1
        %s161 = smul.addr %s160, 32
        %s162 = smul.addr %s161, 8
        %s163 = scalar_lea.vmem %s0, %s162
        %p164 = pneg %p39
        %p165 = pneg %p36
        %p166 = scmp.lt.s32.totalorder %s18, 1
        %s167 = scalar_select %p166, %s18, 1
        %s168 = smul.addr %s167, 2
        %s169 = smul.addr %s168, 8
        %s170 = scalar_lea.vmem %s1, %s169
        %p171 = pneg %p65
        %p172 = pneg %p62
        %p173 = pneg %p91
        %p174 = pneg %p88
        %p175 = scmp.lt.s32.totalorder %s18, 1
        %s176 = scalar_select %p175, %s18, 1
        %s177 = smul.addr %s176, 4
        %s178 = smul.addr %s177, 8
        %s179 = scalar_lea.vmem %s2, %s178
        %p180 = pneg %p117
        %p181 = pneg %p114
        %s182 = sand.u32 %s104, 1
        %s183 = scalar_lea.sflag [#allocation3], %s182
        %s184 = sand.u32 %s104, 1
        %s185 = smul.addr %s184, 2
        %s186 = scalar_lea.vmem [#allocation2], %s185
        %p187 = scmp.lt.s32.totalorder %s18, 1
        %s188 = scalar_select %p187, %s18, 1
        %s189 = smul.addr %s188, 32
        %s190 = smul.addr %s189, 8
        %s191 = scalar_lea.vmem %s0, %s190
        %p192 = scmp.lt.s32.totalorder %s18, 1
        %s193 = scalar_select %p192, %s18, 1
        %s194 = smul.addr %s193, 2
        %s195 = smul.addr %s194, 8
        %s196 = scalar_lea.vmem %s1, %s195
        %p197 = scmp.lt.s32.totalorder %s18, 1
        %s198 = scalar_select %p197, %s18, 1
        %s199 = smul.addr %s198, 4
        %s200 = smul.addr %s199, 8
        %s201 = scalar_lea.vmem %s2, %s200
        %v202 = vld [vmem:[%s191] sm:$0xff]
        %v203 = vld [vmem:[%s191 + $0x8] sm:$0xff]
        %v204 = vld [vmem:[%s191 + $0x10] sm:$0xff]
        %v205 = vld [vmem:[%s191 + $0x18] sm:$0xff]
        %v206 = vld [vmem:[%s191 + $0x20] sm:$0xff]
        %v207 = vld [vmem:[%s191 + $0x28] sm:$0xff]
        %v208 = vld [vmem:[%s191 + $0x30] sm:$0xff]
        %v209 = vld [vmem:[%s191 + $0x38] sm:$0xff]
        %v210 = vld [vmem:[%s191 + $0x40] sm:$0xff]
        %v211 = vld [vmem:[%s191 + $0x48] sm:$0xff]
        %v212 = vld [vmem:[%s191 + $0x50] sm:$0xff]
        %v213 = vld [vmem:[%s191 + $0x58] sm:$0xff]
        %v214 = vld [vmem:[%s191 + $0x60] sm:$0xff]
        %v215 = vld [vmem:[%s191 + $0x68] sm:$0xff]
        %v216 = vld [vmem:[%s191 + $0x70] sm:$0xff]
        %v217 = vld [vmem:[%s191 + $0x78] sm:$0xff]
        %v218 = vld [vmem:[%s191 + $0x80] sm:$0xff]
        %v219 = vld [vmem:[%s191 + $0x88] sm:$0xff]
        %v220 = vld [vmem:[%s191 + $0x90] sm:$0xff]
        %v221 = vld [vmem:[%s191 + $0x98] sm:$0xff]
        %v222 = vld [vmem:[%s191 + $0xa0] sm:$0xff]
        %v223 = vld [vmem:[%s191 + $0xa8] sm:$0xff]
        %v224 = vld [vmem:[%s191 + $0xb0] sm:$0xff]
        %v225 = vld [vmem:[%s191 + $0xb8] sm:$0xff]
        %v226 = vld [vmem:[%s191 + $0xc0] sm:$0xff]
        %v227 = vld [vmem:[%s191 + $0xc8] sm:$0xff]
        %v228 = vld [vmem:[%s191 + $0xd0] sm:$0xff]
        %v229 = vld [vmem:[%s191 + $0xd8] sm:$0xff]
        %v230 = vld [vmem:[%s191 + $0xe0] sm:$0xff]
        %v231 = vld [vmem:[%s191 + $0xe8] sm:$0xff]
        %v232 = vld [vmem:[%s191 + $0xf0] sm:$0xff]
        %v233 = vld [vmem:[%s191 + $0xf8] sm:$0xff]
        %v234 = vld [vmem:[%s196] sm:$0xff]
        %v235 = vld [vmem:[%s196 + $0x8] sm:$0xff]
        %v236 = vmul.f32 %v234, %v234
        %v237 = vmul.f32 %v235, %v235
        %vm238 = vcmask 64512
        %v239 = vsel %vm238, %v236, 0.0
        %240 = vadd.xlane.f32.xlu0 %v239
        %v241 = vpop.xlane.xlu0 %240
        %v242 = vsel %vm238, %v237, 0.0
        %243 = vadd.xlane.f32.xlu0 %v242
        %v244 = vpop.xlane.xlu0 %243
        %v245 = vrsqrt.pop %v241
        %v246 = vmul.f32 %v245, %v241
        %v247 = vmul.f32 %v246, %v245
        %v248 = vmul.f32 0.5, %v247
        %v249 = vsub.f32 1.5, %v248
        %v250 = vmul.f32 %v245, %v249
        %v251 = vmul.f32 %v241, %v250
        %vm252 = vcmp.eq.f32.partialorder %v241, inf
        %v253 = vsel %vm252, %v241, %v251
        %vm254 = vcmp.eq.f32.partialorder %v241, 0.0
        %v255 = vand.u32 %v241, 2147483648
        %v256 = vsel %vm254, %v255, %v253
        %v257 = vrsqrt.pop %v244
        %v258 = vmul.f32 %v257, %v244
        %v259 = vmul.f32 %v258, %v257
        %v260 = vmul.f32 0.5, %v259
        %v261 = vsub.f32 1.5, %v260
        %v262 = vmul.f32 %v257, %v261
        %v263 = vmul.f32 %v244, %v262
        %vm264 = vcmp.eq.f32.partialorder %v244, inf
        %v265 = vsel %vm264, %v244, %v263
        %vm266 = vcmp.eq.f32.partialorder %v244, 0.0
        %v267 = vand.u32 %v244, 2147483648
        %v268 = vsel %vm266, %v267, %v265
        %v269 = vmax.f32 %v256, 1e-08
        %v270 = vmax.f32 %v268, 1e-08
        %v271 = vrcp.pop %v269
        %v272 = vmul.f32 %v269, %v271
        %v273 = vsub.f32 1.0, %v272
        %v274 = vmul.f32 %v271, %v273
        %v275 = vadd.f32 %v271, %v274
        %vm276 = vweird.f32 %v269
        %vm277 = vweird.f32 %v271
        %vm278 = vmor %vm276, %vm277
        %v279 = vsel %vm278, %v271, %v275
        %v280 = vand.u32 2147483647, %v269
        %vm281 = vcmp.eq.f32.partialorder %v280, 8.507059e+37
        %v282 = vand.u32 %v269, 2147483648
        %v283 = vor.u32 1.1754944e-38, %v282
        %v284 = vsel %vm281, %v283, %v279
        %v285 = vmul.f32 %v234, %v284
        %v286 = vrcp.pop %v270
        %v287 = vmul.f32 %v270, %v286
        %v288 = vsub.f32 1.0, %v287
        %v289 = vmul.f32 %v286, %v288
        %v290 = vadd.f32 %v286, %v289
        %vm291 = vweird.f32 %v270
        %vm292 = vweird.f32 %v286
        %vm293 = vmor %vm291, %vm292
        %v294 = vsel %vm293, %v286, %v290
        %v295 = vand.u32 2147483647, %v270
        %vm296 = vcmp.eq.f32.partialorder %v295, 8.507059e+37
        %v297 = vand.u32 %v270, 2147483648
        %v298 = vor.u32 1.1754944e-38, %v297
        %v299 = vsel %vm296, %v298, %v294
        %v300 = vmul.f32 %v235, %v299
        %v301 = vpack.c.bf16 %v300, %v285
        %v302 = vpack.c.bf16 %v203, %v202
        %v303 = vpack.c.bf16 %v205, %v204
        %v304 = vpack.c.bf16 %v207, %v206
        %v305 = vpack.c.bf16 %v209, %v208
        %v306 = vpack.c.bf16 %v211, %v210
        %v307 = vpack.c.bf16 %v213, %v212
        %v308 = vpack.c.bf16 %v215, %v214
        %v309 = vpack.c.bf16 %v217, %v216
        %v310 = vpack.c.bf16 %v219, %v218
        %v311 = vpack.c.bf16 %v221, %v220
        %v312 = vpack.c.bf16 %v223, %v222
        %v313 = vpack.c.bf16 %v225, %v224
        %v314 = vpack.c.bf16 %v227, %v226
        %v315 = vpack.c.bf16 %v229, %v228
        %v316 = vpack.c.bf16 %v231, %v230
        %v317 = vpack.c.bf16 %v233, %v232
        %v319 = vsel %vm238, %v301, 0
        %v322 = vsel %vm238, %v302, 0
        %v325 = vsel %vm238, %v303, 0
        %v328 = vsel %vm238, %v304, 0
        %v331 = vsel %vm238, %v305, 0
        %v334 = vsel %vm238, %v306, 0
        %v337 = vsel %vm238, %v307, 0
        %v340 = vsel %vm238, %v308, 0
        %v343 = vsel %vm238, %v309, 0
        %v346 = vsel %vm238, %v310, 0
        %v349 = vsel %vm238, %v311, 0
        %v352 = vsel %vm238, %v312, 0
        %v355 = vsel %vm238, %v313, 0
        %v358 = vsel %vm238, %v314, 0
        %v361 = vsel %vm238, %v315, 0
        %v364 = vsel %vm238, %v316, 0
        %v367 = vsel %vm238, %v317, 0
        %369 = vmatpush.bf16.xpose.msra.mxu0 %v343
        %370 = vmatpush.bf16.xpose.msra.mxu0 %v340
        %371 = vmatpush.bf16.xpose.msra.mxu0 %v337
        %372 = vmatpush.bf16.xpose.msra.mxu0 %v334
        %373 = vmatpush.bf16.xpose.msra.mxu0 %v331
        %374 = vmatpush.bf16.xpose.msra.mxu0 %v328
        %375 = vmatpush.bf16.xpose.msra.mxu0 %v325
        %376 = vmatpush.bf16.xpose.msra.mxu0 %v322
        %377 = vmatmul.bf16.gmra.mxu0 %v319
        %v378 = vpop.f32.mrf.mxu0
        %v379 = vadd.f32 0.0, %v378
        %v380 = vpop.f32.mrf.mxu0
        %v381 = vadd.f32 0.0, %v380
        %382 = vdwg.mxu0
        %383 = vmatpush.bf16.xpose.msra.mxu0 %v367
        %384 = vmatpush.bf16.xpose.msra.mxu0 %v364
        %385 = vmatpush.bf16.xpose.msra.mxu0 %v361
        %386 = vmatpush.bf16.xpose.msra.mxu0 %v358
        %387 = vmatpush.bf16.xpose.msra.mxu0 %v355
        %388 = vmatpush.bf16.xpose.msra.mxu0 %v352
        %389 = vmatpush.bf16.xpose.msra.mxu0 %v349
        %390 = vmatpush.bf16.xpose.msra.mxu0 %v346
        %391 = vmatmul.bf16.gmra.mxu0 %v319
        %v392 = vpop.f32.mrf.mxu0
        %v393 = vadd.f32 0.0, %v392
        %v394 = vpop.f32.mrf.mxu0
        %v395 = vadd.f32 0.0, %v394
        %396 = vdwg.mxu0
        %397 = vst [vmem:[%s201] sm:$0xff] %v379
        %398 = vst [vmem:[%s201 + $0x8] sm:$0xff] %v393
        %399 = vst [vmem:[%s201 + $0x10] sm:$0xff] %v381
        %400 = vst [vmem:[%s201 + $0x18] sm:$0xff] %v395
        %v401 = vmax.f32 %v379, %v381
        %v402 = vrot.slane %v401, 4
        %v403 = vmax.f32 %v401, %v402
        %v404 = vrot.slane %v403, 2
        %v405 = vmax.f32 %v403, %v404
        %v406 = vrot.slane %v405, 1
        %v407 = vmax.f32 %v405, %v406
        %v408 = vmax.f32 %v393, %v395
        %v409 = vrot.slane %v408, 4
        %v410 = vmax.f32 %v408, %v409
        %v411 = vrot.slane %v410, 2
        %v412 = vmax.f32 %v410, %v411
        %v413 = vrot.slane %v412, 1
        %v414 = vmax.f32 %v412, %v413
        %v415 = vmin.f32 %v407, 1.0
        %v416 = vmin.f32 %v414, 1.0
        %v417 = vsub.f32 1.0, %v415
        %v418 = vsub.f32 1.0, %v416
        %v421 = vrot.slane %v418, 7
        %vm422 = vcmask 1040384
        %v423 = vsel %vm422, %v417, %v421
        %v425 = vlaneseq
        %vm426 = vcmp.ge.s32.totalorder %v425, 0
        %vm427 = vcmp.lt.s32.totalorder %v425, 256
        %vm428 = vmand %vm426, %vm427
        %429 = vst.msk [vmem:[%s186] sm:$0x3] %vm428, %v423
        %p430 = scmp.lt.s32.totalorder %s18, 1
        %s431 = scalar_select %p430, %s18, 1
        %s432 = smul.addr %s431, 4
        %s433 = smul.addr %s432, 8
        %s434 = scalar_lea.vmem %s2, %s433
        %s435 = sand.u32 %s104, 1
        %s436 = scalar_lea.sflag [#allocation3], %s435
        %s437 = sand.u32 %s104, 1
        %s438 = smul.addr %s437, 2
        %s439 = scalar_lea.vmem [#allocation2], %s438
        // Predicated region
        $region29: #{competition_forward.13} parent=27 // pred_check
          %p440 = pneg %p88
        $region30: #{competition_forward.13} parent=27 // pred_check_branch
          %442 = sbr.rel (%p440) target = $region32
        $region31: #{competition_forward.13} parent=27 // pred_region
          _
        $region32: #{competition_forward.13} parent=27 // pred_fallthru
          _
        // Predicated region
        $region33: #{competition_forward.13} parent=27 // pred_check
          %p443 = pneg %p114
        $region34: #{competition_forward.13} parent=27 // pred_check_branch
          %445 = sbr.rel (%p443) target = $region36
        $region35: #{competition_forward.13} parent=27 // pred_region
          %447 = vsyncadd %s436, 0
          %s448 = smul.addr %s18, 2
          %s449 = scalar_lea.hbm %s3, %s448
          %s451 = sshll.u32 %s439, 4
          %s452 = int_to_ptr.vmem [resolvable:$true] %s451
          %s453 = sshll.u32 %s449, 4
          %s454 = int_to_ptr.hbm [resolvable:$true] %s453
          %456 = dma.vmem_to_hbm [thread:$0]  %s452, 32, %s454, %s436
        $region36: #{competition_forward.13} parent=27 // pred_fallthru
          _
      $region28: #{competition_forward.13} parent=5 // pred_fallthru
        _
      %p457 = scmp.le.s32.totalorder 2, %s13
      // Predicated region
      $region37: #{competition_forward.13} parent=5 // pred_check
        %p458 = pneg %p457
      $region38: #{competition_forward.13} parent=5 // pred_check_branch
        %460 = sbr.rel (%p458) target = $region40
      $region39: #{competition_forward.13} parent=5 // pred_region
        %s461 = ssub.s32 %s13, 2
        // Predicated region
        $region41: #{competition_forward.13} parent=39 // pred_check
          %p462 = pneg %p94
        $region42: #{competition_forward.13} parent=39 // pred_check_branch
          %464 = sbr.rel (%p462) target = $region44
        $region43: #{competition_forward.13} parent=39 // pred_region
          %p465 = scmp.lt.s32.totalorder %s19, 1
          %s466 = scalar_select %p465, %s19, 1
          %s467 = smul.addr %s466, 4
          %s468 = smul.addr %s467, 8
          %s469 = scalar_lea.vmem %s2, %s468
        $region44: #{competition_forward.13} parent=39 // pred_fallthru
          _
        // Predicated region
        $region45: #{competition_forward.13} parent=39 // pred_check
          %p470 = pneg %p120
        $region46: #{competition_forward.13} parent=39 // pred_check_branch
          %472 = sbr.rel (%p470) target = $region48
        $region47: #{competition_forward.13} parent=39 // pred_region
          %s473 = sand.u32 %s105, 1
          %s474 = scalar_lea.sflag [#allocation3], %s473
          %s475 = sand.u32 %s105, 1
          %s476 = smul.addr %s475, 2
          %s477 = scalar_lea.vmem [#allocation2], %s476
          %479 = dma.done %s474, 32
        $region48: #{competition_forward.13} parent=39 // pred_fallthru
          _
      $region40: #{competition_forward.13} parent=5 // pred_fallthru
        _
    $region6: #{competition_forward.13} parent=1 // loop_footer
      %s17 = sadd.s32 1, %s13
    $region7: #{competition_forward.13} parent=1 // loop_footer_branch
      %12 = sbr.rel target = $region3
    $region8: #{competition_forward.13} parent=1 // loop_exit
      _
    %480 = vsyncpa [#allocation3], 1
    %s481 = scalar_lea.sflag [#allocation3], 1
    %482 = vsyncpa %s481, 1

// kernel: mul.671
$region0: #{mul.671}
  %s0 = inlined_call_operand.vmem [shape: f32[2,256], index: 0, kind: input, shape index: {}]
  %s1 = inlined_call_operand.vmem [shape: f32[2,16,16], index: 1, kind: output, shape index: {}]
  $region1: #{mul.671} parent=0
    #allocation0 [shape = 'u8[8192]{0}', space=vmem, size = 0x2000, scoped, tag = 'scoped mem for input reshape']
    %s3 = ssub.s32 4, 1
    %s4 = scalar_lea.vmem %s0, 2
    %v5 = vld [vmem:[%s4] sm:%s3]
    %s6 = scalar_lea.vmem [#allocation0], 8
    %7 = vst [vmem:[%s6] sm:%s3] %v5
    %v8 = vld [vmem:[%s0] sm:%s3]
    %9 = vst [vmem:[#allocation0] sm:%s3] %v8
    %v10 = vld [vmem:[#allocation0] sm:$0x3]
    %vm11 = vcmask 130048
    %12 = vst.msk [vmem:[%s1] ss:$16 sm:$0x3] %vm11, %v10
    %s13 = scalar_lea.vmem [#allocation0], 8
    %v14 = vld [vmem:[%s13] sm:$0x3]
    %vm15 = vcmask 130048
    %s16 = scalar_lea.vmem %s1, 8
    %17 = vst.msk [vmem:[%s16] ss:$16 sm:$0x3] %vm15, %v14
    %v18 = vld.sshfl [vmem:[#allocation0] sm:$0xff pattern:$0x99999180]
    %19 = vrot.lane.b32.xlu0 %v18, 112
    %v20 = vpop.permute.xlu0 %19
    %vm21 = vcmask 130048
    %s22 = scalar_lea.vmem %s1, 1
    %23 = vst.msk [vmem:[%s22] ss:$8 sm:$0xf] %vm21, %v20
    %v24 = vld.sshfl [vmem:[#allocation0] sm:$0xff pattern:$0x99999180]
    %25 = vrot.lane.b32.xlu0 %v24, 96
    %v26 = vpop.permute.xlu0 %25
    %vm27 = vcmask 130048
    %s28 = scalar_lea.vmem %s1, 2
    %29 = vst.msk [vmem:[%s28] ss:$8 sm:$0xf] %vm27, %v26
    %v30 = vld.sshfl [vmem:[#allocation0] sm:$0xff pattern:$0x99999180]
    %31 = vrot.lane.b32.xlu0 %v30, 80
    %v32 = vpop.permute.xlu0 %31
    %vm33 = vcmask 130048
    %s34 = scalar_lea.vmem %s1, 3
    %35 = vst.msk [vmem:[%s34] ss:$8 sm:$0xf] %vm33, %v32
    %v36 = vld.sshfl [vmem:[#allocation0] sm:$0xff pattern:$0x99999180]
    %37 = vrot.lane.b32.xlu0 %v36, 64
    %v38 = vpop.permute.xlu0 %37
    %vm39 = vcmask 130048
    %s40 = scalar_lea.vmem %s1, 4
    %41 = vst.msk [vmem:[%s40] ss:$8 sm:$0xf] %vm39, %v38
    %v42 = vld.sshfl [vmem:[#allocation0] sm:$0xff pattern:$0x99999180]
    %43 = vrot.lane.b32.xlu0 %v42, 48
    %v44 = vpop.permute.xlu0 %43
    %vm45 = vcmask 130048
    %s46 = scalar_lea.vmem %s1, 5
    %47 = vst.msk [vmem:[%s46] ss:$8 sm:$0xf] %vm45, %v44
    %v48 = vld.sshfl [vmem:[#allocation0] sm:$0xff pattern:$0x99999180]
    %49 = vrot.lane.b32.xlu0 %v48, 32
    %v50 = vpop.permute.xlu0 %49
    %vm51 = vcmask 130048
    %s52 = scalar_lea.vmem %s1, 6
    %53 = vst.msk [vmem:[%s52] ss:$8 sm:$0xf] %vm51, %v50
    %v54 = vld.sshfl [vmem:[#allocation0] sm:$0xff pattern:$0x99999180]
    %55 = vrot.lane.b32.xlu0 %v54, 16
    %v56 = vpop.permute.xlu0 %55
    %vm57 = vcmask 130048
    %s58 = scalar_lea.vmem %s1, 7
    %59 = vst.msk [vmem:[%s58] ss:$8 sm:$0xf] %vm57, %v56

// kernel: competition_forward.14
$region0: #{competition_forward.14}
  #allocation0 [shape = 'u32[]', space=smem, size = 0x4, offset = 0x4, fixed_abs, tag = 'smem constant byte address 0x4 - core index']
  #allocation1 [shape = 'u32[72,128]{1,0:T(1,128)}', space=vmem, size = 0x9000, scoped, tag = 'internal scratch']
  %s0 = inlined_call_operand.vmem [shape: f32[2,256,8], index: 0, kind: input, shape index: {}]
  %s1 = inlined_call_operand.vmem [shape: f32[2,16,8], index: 1, kind: input, shape index: {}]
  %s2 = inlined_call_operand.vmem [shape: f32[2,16,1], index: 2, kind: input, shape index: {}]
  %s3 = inlined_call_operand.vmem [shape: f32[2,16,1], index: 3, kind: input, shape index: {}]
  %s4 = inlined_call_operand.vmem [shape: f32[2,16,1], index: 4, kind: input, shape index: {}]
  %s5 = inlined_call_operand.vmem [shape: f32[2,16,8], index: 5, kind: input, shape index: {}]
  %s6 = inlined_call_operand.hbm [shape: f32[2,16,256], index: 6, kind: output, shape index: {0}]
  %s7 = inlined_call_operand.vmem [shape: f32[2,16,1], index: 7, kind: output, shape index: {1}]
  %s8 = inlined_call_operand.vmem [shape: f32[2,1,256], index: 8, kind: output, shape index: {2}]
  %s9 = inlined_call_operand.vmem [shape: f32[2,16,256], index: 9, kind: output, shape index: {3}]
  %s10 = inlined_call_operand.vmem [shape: f32[2,16,8], index: 10, kind: output, shape index: {4}]
  %11 = xla_tuple %s6, %s7, %s8, %s9, %s10
  %s12 = sld [smem:[#allocation0]]
  $region89: #{competition_forward.14} parent=0
    _
  %s14 = ssub.s32 1, %s12
  %s15 = scalar_select 0, %s14, %s12
  $region1: #{competition_forward.14} parent=0
    #allocation2 [shape = 'u8[32768]{0}', space=vmem, size = 0x8000, scoped, tag = 'output window, operand 0']
    #allocation3 [shape = 's32[2]{0}', space=sflag, size = 0x8, scoped, tag = 'scoped memory for competition_forward.14']
    %16 = vsyncpa [#allocation3], 0
    %s17 = scalar_lea.sflag [#allocation3], 1
    %18 = vsyncpa %s17, 0
    loop: start=0, step=1, limit=4
    $region2: #{competition_forward.14} parent=1 // loop_pre_header
      _
    $region3: #{competition_forward.14} parent=1 // loop_header
      %s20 = sphi 0, %s24
      %p21 = scmp.ge.s32.totalorder %s20, 4
      %s30 = sphi 0, %s32
      %s33 = sphi 0, %s30
      %s34 = sphi 0, %s33
      %s50 = sphi 0, %s34
      %s56 = sphi 0, %s58
      %s59 = sphi 0, %s56
      %s60 = sphi 0, %s59
      %s76 = sphi 0, %s60
      %s82 = sphi 0, %s84
      %s85 = sphi 0, %s82
      %s86 = sphi 0, %s85
      %s102 = sphi 0, %s86
      %s108 = sphi 0, %s110
      %s111 = sphi 0, %s108
      %s112 = sphi 0, %s111
      %s128 = sphi 0, %s112
      %s134 = sphi 0, %s136
      %s137 = sphi 0, %s134
      %s138 = sphi 0, %s137
      %s154 = sphi 0, %s138
      %s160 = sphi 0, %s162
      %s163 = sphi 0, %s160
      %s164 = sphi 0, %s163
      %s180 = sphi 0, %s164
      %s186 = sphi 0, %s188
      %s189 = sphi 0, %s186
      %s190 = sphi 0, %s189
      %s206 = sphi 0, %s190
      %s212 = sphi 0, %s214
      %s215 = sphi 0, %s212
      %s216 = sphi 0, %s215
      %s232 = sphi 0, %s216
      %s238 = sphi 0, %s240
      %s241 = sphi 0, %s238
      %s242 = sphi 0, %s241
      %s258 = sphi 0, %s242
      %s264 = sphi 0, %s266
      %s267 = sphi 0, %s264
      %s268 = sphi 0, %s267
      %s284 = sphi 0, %s268
      %s290 = sphi 0, %s292
      %s293 = sphi 0, %s290
      %s294 = sphi 0, %s293
      %s310 = sphi 0, %s294
    $region4: #{competition_forward.14} parent=1 // loop_header_branch
      %23 = sbr.rel (%p21) target = $region8
    $region5: #{competition_forward.14} parent=1 // loop_body
      %s25 = ssub.s32 %s20, 1
      %s26 = ssub.s32 %s20, 2
      %s27 = sadd.s32 %s20, 1
      %s28 = ssub.s32 %s20, %s27
      %p29 = scmp.eq.s32.totalorder %s28, 0
      %s31 = sadd.s32 %s30, 1
      %s32 = scalar_select %p29, %s30, %s31
      %p35 = pneg %p29
      %p36 = scmp.eq.s32.totalorder %s20, 1
      %p37 = por %p35, %p36
      %p38 = scmp.ne.s32.totalorder %s30, %s33
      %p39 = scmp.eq.s32.totalorder %s20, 0
      %p40 = por %p38, %p39
      %p41 = scmp.ne.s32.totalorder %s30, %s33
      %p42 = scmp.eq.s32.totalorder %s25, 1
      %p43 = por %p41, %p42
      %p44 = scmp.ne.s32.totalorder %s33, %s34
      %p45 = scmp.eq.s32.totalorder %s25, 0
      %p46 = por %p44, %p45
      %p47 = scmp.ne.s32.totalorder %s33, %s34
      %p48 = scmp.eq.s32.totalorder %s26, 1
      %p49 = por %p47, %p48
      %p51 = scmp.ne.s32.totalorder %s34, %s50
      %p52 = scmp.eq.s32.totalorder %s26, 0
      %p53 = por %p51, %p52
      %s54 = ssub.s32 %s20, %s27
      %p55 = scmp.eq.s32.totalorder %s54, 0
      %s57 = sadd.s32 %s56, 1
      %s58 = scalar_select %p55, %s56, %s57
      %p61 = pneg %p55
      %p62 = scmp.eq.s32.totalorder %s20, 1
      %p63 = por %p61, %p62
      %p64 = scmp.ne.s32.totalorder %s56, %s59
      %p65 = scmp.eq.s32.totalorder %s20, 0
      %p66 = por %p64, %p65
      %p67 = scmp.ne.s32.totalorder %s56, %s59
      %p68 = scmp.eq.s32.totalorder %s25, 1
      %p69 = por %p67, %p68
      %p70 = scmp.ne.s32.totalorder %s59, %s60
      %p71 = scmp.eq.s32.totalorder %s25, 0
      %p72 = por %p70, %p71
      %p73 = scmp.ne.s32.totalorder %s59, %s60
      %p74 = scmp.eq.s32.totalorder %s26, 1
      %p75 = por %p73, %p74
      %p77 = scmp.ne.s32.totalorder %s60, %s76
      %p78 = scmp.eq.s32.totalorder %s26, 0
      %p79 = por %p77, %p78
      %s80 = ssub.s32 %s20, %s27
      %p81 = scmp.eq.s32.totalorder %s80, 0
      %s83 = sadd.s32 %s82, 1
      %s84 = scalar_select %p81, %s82, %s83
      %p87 = pneg %p81
      %p88 = scmp.eq.s32.totalorder %s20, 1
      %p89 = por %p87, %p88
      %p90 = scmp.ne.s32.totalorder %s82, %s85
      %p91 = scmp.eq.s32.totalorder %s20, 0
      %p92 = por %p90, %p91
      %p93 = scmp.ne.s32.totalorder %s82, %s85
      %p94 = scmp.eq.s32.totalorder %s25, 1
      %p95 = por %p93, %p94
      %p96 = scmp.ne.s32.totalorder %s85, %s86
      %p97 = scmp.eq.s32.totalorder %s25, 0
      %p98 = por %p96, %p97
      %p99 = scmp.ne.s32.totalorder %s85, %s86
      %p100 = scmp.eq.s32.totalorder %s26, 1
      %p101 = por %p99, %p100
      %p103 = scmp.ne.s32.totalorder %s86, %s102
      %p104 = scmp.eq.s32.totalorder %s26, 0
      %p105 = por %p103, %p104
      %s106 = ssub.s32 %s20, %s27
      %p107 = scmp.eq.s32.totalorder %s106, 0
      %s109 = sadd.s32 %s108, 1
      %s110 = scalar_select %p107, %s108, %s109
      %p113 = pneg %p107
      %p114 = scmp.eq.s32.totalorder %s20, 1
      %p115 = por %p113, %p114
      %p116 = scmp.ne.s32.totalorder %s108, %s111
      %p117 = scmp.eq.s32.totalorder %s20, 0
      %p118 = por %p116, %p117
      %p119 = scmp.ne.s32.totalorder %s108, %s111
      %p120 = scmp.eq.s32.totalorder %s25, 1
      %p121 = por %p119, %p120
      %p122 = scmp.ne.s32.totalorder %s111, %s112
      %p123 = scmp.eq.s32.totalorder %s25, 0
      %p124 = por %p122, %p123
      %p125 = scmp.ne.s32.totalorder %s111, %s112
      %p126 = scmp.eq.s32.totalorder %s26, 1
      %p127 = por %p125, %p126
      %p129 = scmp.ne.s32.totalorder %s112, %s128
      %p130 = scmp.eq.s32.totalorder %s26, 0
      %p131 = por %p129, %p130
      %s132 = ssub.s32 %s20, %s27
      %p133 = scmp.eq.s32.totalorder %s132, 0
      %s135 = sadd.s32 %s134, 1
      %s136 = scalar_select %p133, %s134, %s135
      %p139 = pneg %p133
      %p140 = scmp.eq.s32.totalorder %s20, 1
      %p141 = por %p139, %p140
      %p142 = scmp.ne.s32.totalorder %s134, %s137
      %p143 = scmp.eq.s32.totalorder %s20, 0
      %p144 = por %p142, %p143
      %p145 = scmp.ne.s32.totalorder %s134, %s137
      %p146 = scmp.eq.s32.totalorder %s25, 1
      %p147 = por %p145, %p146
      %p148 = scmp.ne.s32.totalorder %s137, %s138
      %p149 = scmp.eq.s32.totalorder %s25, 0
      %p150 = por %p148, %p149
      %p151 = scmp.ne.s32.totalorder %s137, %s138
      %p152 = scmp.eq.s32.totalorder %s26, 1
      %p153 = por %p151, %p152
      %p155 = scmp.ne.s32.totalorder %s138, %s154
      %p156 = scmp.eq.s32.totalorder %s26, 0
      %p157 = por %p155, %p156
      %s158 = ssub.s32 %s20, %s27
      %p159 = scmp.eq.s32.totalorder %s158, 0
      %s161 = sadd.s32 %s160, 1
      %s162 = scalar_select %p159, %s160, %s161
      %p165 = pneg %p159
      %p166 = scmp.eq.s32.totalorder %s20, 1
      %p167 = por %p165, %p166
      %p168 = scmp.ne.s32.totalorder %s160, %s163
      %p169 = scmp.eq.s32.totalorder %s20, 0
      %p170 = por %p168, %p169
      %p171 = scmp.ne.s32.totalorder %s160, %s163
      %p172 = scmp.eq.s32.totalorder %s25, 1
      %p173 = por %p171, %p172
      %p174 = scmp.ne.s32.totalorder %s163, %s164
      %p175 = scmp.eq.s32.totalorder %s25, 0
      %p176 = por %p174, %p175
      %p177 = scmp.ne.s32.totalorder %s163, %s164
      %p178 = scmp.eq.s32.totalorder %s26, 1
      %p179 = por %p177, %p178
      %p181 = scmp.ne.s32.totalorder %s164, %s180
      %p182 = scmp.eq.s32.totalorder %s26, 0
      %p183 = por %p181, %p182
      %s184 = ssub.s32 %s20, %s27
      %p185 = scmp.eq.s32.totalorder %s184, 0
      %s187 = sadd.s32 %s186, 1
      %s188 = scalar_select %p185, %s186, %s187
      %p191 = pneg %p185
      %p192 = scmp.eq.s32.totalorder %s20, 1
      %p193 = por %p191, %p192
      %p194 = scmp.ne.s32.totalorder %s186, %s189
      %p195 = scmp.eq.s32.totalorder %s20, 0
      %p196 = por %p194, %p195
      %p197 = scmp.ne.s32.totalorder %s186, %s189
      %p198 = scmp.eq.s32.totalorder %s25, 1
      %p199 = por %p197, %p198
      %p200 = scmp.ne.s32.totalorder %s189, %s190
      %p201 = scmp.eq.s32.totalorder %s25, 0
      %p202 = por %p200, %p201
      %p203 = scmp.ne.s32.totalorder %s189, %s190
      %p204 = scmp.eq.s32.totalorder %s26, 1
      %p205 = por %p203, %p204
      %p207 = scmp.ne.s32.totalorder %s190, %s206
      %p208 = scmp.eq.s32.totalorder %s26, 0
      %p209 = por %p207, %p208
      %s210 = ssub.s32 %s20, %s27
      %p211 = scmp.eq.s32.totalorder %s210, 0
      %s213 = sadd.s32 %s212, 1
      %s214 = scalar_select %p211, %s212, %s213
      %p217 = pneg %p211
      %p218 = scmp.eq.s32.totalorder %s20, 1
      %p219 = por %p217, %p218
      %p220 = scmp.ne.s32.totalorder %s212, %s215
      %p221 = scmp.eq.s32.totalorder %s20, 0
      %p222 = por %p220, %p221
      %p223 = scmp.ne.s32.totalorder %s212, %s215
      %p224 = scmp.eq.s32.totalorder %s25, 1
      %p225 = por %p223, %p224
      %p226 = scmp.ne.s32.totalorder %s215, %s216
      %p227 = scmp.eq.s32.totalorder %s25, 0
      %p228 = por %p226, %p227
      %p229 = scmp.ne.s32.totalorder %s215, %s216
      %p230 = scmp.eq.s32.totalorder %s26, 1
      %p231 = por %p229, %p230
      %p233 = scmp.ne.s32.totalorder %s216, %s232
      %p234 = scmp.eq.s32.totalorder %s26, 0
      %p235 = por %p233, %p234
      %s236 = ssub.s32 %s20, %s27
      %p237 = scmp.eq.s32.totalorder %s236, 0
      %s239 = sadd.s32 %s238, 1
      %s240 = scalar_select %p237, %s238, %s239
      %p243 = pneg %p237
      %p244 = scmp.eq.s32.totalorder %s20, 1
      %p245 = por %p243, %p244
      %p246 = scmp.ne.s32.totalorder %s238, %s241
      %p247 = scmp.eq.s32.totalorder %s20, 0
      %p248 = por %p246, %p247
      %p249 = scmp.ne.s32.totalorder %s238, %s241
      %p250 = scmp.eq.s32.totalorder %s25, 1
      %p251 = por %p249, %p250
      %p252 = scmp.ne.s32.totalorder %s241, %s242
      %p253 = scmp.eq.s32.totalorder %s25, 0
      %p254 = por %p252, %p253
      %p255 = scmp.ne.s32.totalorder %s241, %s242
      %p256 = scmp.eq.s32.totalorder %s26, 1
      %p257 = por %p255, %p256
      %p259 = scmp.ne.s32.totalorder %s242, %s258
      %p260 = scmp.eq.s32.totalorder %s26, 0
      %p261 = por %p259, %p260
      %s262 = ssub.s32 %s20, %s27
      %p263 = scmp.eq.s32.totalorder %s262, 0
      %s265 = sadd.s32 %s264, 1
      %s266 = scalar_select %p263, %s264, %s265
      %p269 = pneg %p263
      %p270 = scmp.eq.s32.totalorder %s20, 1
      %p271 = por %p269, %p270
      %p272 = scmp.ne.s32.totalorder %s264, %s267
      %p273 = scmp.eq.s32.totalorder %s20, 0
      %p274 = por %p272, %p273
      %p275 = scmp.ne.s32.totalorder %s264, %s267
      %p276 = scmp.eq.s32.totalorder %s25, 1
      %p277 = por %p275, %p276
      %p278 = scmp.ne.s32.totalorder %s267, %s268
      %p279 = scmp.eq.s32.totalorder %s25, 0
      %p280 = por %p278, %p279
      %p281 = scmp.ne.s32.totalorder %s267, %s268
      %p282 = scmp.eq.s32.totalorder %s26, 1
      %p283 = por %p281, %p282
      %p285 = scmp.ne.s32.totalorder %s268, %s284
      %p286 = scmp.eq.s32.totalorder %s26, 0
      %p287 = por %p285, %p286
      %s288 = ssub.s32 %s20, %s27
      %p289 = scmp.eq.s32.totalorder %s288, 0
      %s291 = sadd.s32 %s290, 1
      %s292 = scalar_select %p289, %s290, %s291
      %p295 = pneg %p289
      %p296 = scmp.eq.s32.totalorder %s20, 1
      %p297 = por %p295, %p296
      %p298 = scmp.ne.s32.totalorder %s290, %s293
      %p299 = scmp.eq.s32.totalorder %s20, 0
      %p300 = por %p298, %p299
      %p301 = scmp.ne.s32.totalorder %s290, %s293
      %p302 = scmp.eq.s32.totalorder %s25, 1
      %p303 = por %p301, %p302
      %p304 = scmp.ne.s32.totalorder %s293, %s294
      %p305 = scmp.eq.s32.totalorder %s25, 0
      %p306 = por %p304, %p305
      %p307 = scmp.ne.s32.totalorder %s293, %s294
      %p308 = scmp.eq.s32.totalorder %s26, 1
      %p309 = por %p307, %p308
      %p311 = scmp.ne.s32.totalorder %s294, %s310
      %p312 = scmp.eq.s32.totalorder %s26, 0
      %p313 = por %p311, %p312
      %p314 = scmp.le.s32.totalorder 1, %s20
      %p315 = scmp.lt.s32.totalorder %s20, 3
      %p316 = pnand %p314, %p315
      %p317 = pneg %p316
      // Predicated region
      $region9: #{competition_forward.14} parent=5 // pred_check
        _
      $region10: #{competition_forward.14} parent=5 // pred_check_branch
        %319 = sbr.rel (%p316) target = $region12
      $region11: #{competition_forward.14} parent=5 // pred_region
        %s320 = ssub.s32 %s20, 1
      $region12: #{competition_forward.14} parent=5 // pred_fallthru
        _
      %p321 = scmp.lt.s32.totalorder %s20, 2
      // Predicated region
      $region13: #{competition_forward.14} parent=5 // pred_check
        %p322 = pneg %p321
      $region14: #{competition_forward.14} parent=5 // pred_check_branch
        %324 = sbr.rel (%p322) target = $region16
      $region15: #{competition_forward.14} parent=5 // pred_region
        // Predicated region
        $region17: #{competition_forward.14} parent=15 // pred_check
          %p325 = pneg %p40
        $region18: #{competition_forward.14} parent=15 // pred_check_branch
          %327 = sbr.rel (%p325) target = $region20
        $region19: #{competition_forward.14} parent=15 // pred_region
          %p328 = scmp.lt.s32.totalorder %s20, 1
          %s329 = scalar_select %p328, %s20, 1
          %s330 = smul.addr %s329, 32
          %s331 = smul.addr %s330, 8
          %s332 = scalar_lea.vmem %s0, %s331
        $region20: #{competition_forward.14} parent=15 // pred_fallthru
          _
        // Predicated region
        $region21: #{competition_forward.14} parent=15 // pred_check
          %p333 = pneg %p66
        $region22: #{competition_forward.14} parent=15 // pred_check_branch
          %335 = sbr.rel (%p333) target = $region24
        $region23: #{competition_forward.14} parent=15 // pred_region
          %p336 = scmp.lt.s32.totalorder %s20, 1
          %s337 = scalar_select %p336, %s20, 1
          %s338 = smul.addr %s337, 2
          %s339 = smul.addr %s338, 8
          %s340 = scalar_lea.vmem %s1, %s339
        $region24: #{competition_forward.14} parent=15 // pred_fallthru
          _
        // Predicated region
        $region25: #{competition_forward.14} parent=15 // pred_check
          %p341 = pneg %p92
        $region26: #{competition_forward.14} parent=15 // pred_check_branch
          %343 = sbr.rel (%p341) target = $region28
        $region27: #{competition_forward.14} parent=15 // pred_region
          %p344 = scmp.lt.s32.totalorder %s20, 1
          %s345 = scalar_select %p344, %s20, 1
          %s346 = smul.addr %s345, 2
          %s347 = smul.addr %s346, 8
          %s348 = scalar_lea.vmem %s2, %s347
        $region28: #{competition_forward.14} parent=15 // pred_fallthru
          _
        // Predicated region
        $region29: #{competition_forward.14} parent=15 // pred_check
          %p349 = pneg %p118
        $region30: #{competition_forward.14} parent=15 // pred_check_branch
          %351 = sbr.rel (%p349) target = $region32
        $region31: #{competition_forward.14} parent=15 // pred_region
          %p352 = scmp.lt.s32.totalorder %s20, 1
          %s353 = scalar_select %p352, %s20, 1
          %s354 = smul.addr %s353, 2
          %s355 = smul.addr %s354, 8
          %s356 = scalar_lea.vmem %s3, %s355
        $region32: #{competition_forward.14} parent=15 // pred_fallthru
          _
        // Predicated region
        $region33: #{competition_forward.14} parent=15 // pred_check
          %p357 = pneg %p144
        $region34: #{competition_forward.14} parent=15 // pred_check_branch
          %359 = sbr.rel (%p357) target = $region36
        $region35: #{competition_forward.14} parent=15 // pred_region
          %p360 = scmp.lt.s32.totalorder %s20, 1
          %s361 = scalar_select %p360, %s20, 1
          %s362 = smul.addr %s361, 2
          %s363 = smul.addr %s362, 8
          %s364 = scalar_lea.vmem %s4, %s363
        $region36: #{competition_forward.14} parent=15 // pred_fallthru
          _
        // Predicated region
        $region37: #{competition_forward.14} parent=15 // pred_check
          %p365 = pneg %p170
        $region38: #{competition_forward.14} parent=15 // pred_check_branch
          %367 = sbr.rel (%p365) target = $region40
        $region39: #{competition_forward.14} parent=15 // pred_region
          %p368 = scmp.lt.s32.totalorder %s20, 1
          %s369 = scalar_select %p368, %s20, 1
          %s370 = smul.addr %s369, 2
          %s371 = smul.addr %s370, 8
          %s372 = scalar_lea.vmem %s5, %s371
        $region40: #{competition_forward.14} parent=15 // pred_fallthru
          _
      $region16: #{competition_forward.14} parent=5 // pred_fallthru
        _
      %p373 = scmp.le.s32.totalorder 1, %s20
      %p374 = scmp.lt.s32.totalorder %s20, 3
      %p375 = pnand %p373, %p374
      %p376 = pneg %p375
      // Predicated region
      $region41: #{competition_forward.14} parent=5 // pred_check
        _
      $region42: #{competition_forward.14} parent=5 // pred_check_branch
        %378 = sbr.rel (%p375) target = $region44
      $region43: #{competition_forward.14} parent=5 // pred_region
        %s379 = ssub.s32 %s20, 1
        %p380 = scmp.lt.s32.totalorder %s25, 1
        %s381 = scalar_select %p380, %s25, 1
        %s382 = smul.addr %s381, 32
        %s383 = smul.addr %s382, 8
        %s384 = scalar_lea.vmem %s0, %s383
        %p385 = pneg %p46
        %p386 = pneg %p43
        %p387 = scmp.lt.s32.totalorder %s25, 1
        %s388 = scalar_select %p387, %s25, 1
        %s389 = smul.addr %s388, 2
        %s390 = smul.addr %s389, 8
        %s391 = scalar_lea.vmem %s1, %s390
        %p392 = pneg %p72
        %p393 = pneg %p69
        %p394 = scmp.lt.s32.totalorder %s25, 1
        %s395 = scalar_select %p394, %s25, 1
        %s396 = smul.addr %s395, 2
        %s397 = smul.addr %s396, 8
        %s398 = scalar_lea.vmem %s2, %s397
        %p399 = pneg %p98
        %p400 = pneg %p95
        %p401 = scmp.lt.s32.totalorder %s25, 1
        %s402 = scalar_select %p401, %s25, 1
        %s403 = smul.addr %s402, 2
        %s404 = smul.addr %s403, 8
        %s405 = scalar_lea.vmem %s3, %s404
        %p406 = pneg %p124
        %p407 = pneg %p121
        %p408 = scmp.lt.s32.totalorder %s25, 1
        %s409 = scalar_select %p408, %s25, 1
        %s410 = smul.addr %s409, 2
        %s411 = smul.addr %s410, 8
        %s412 = scalar_lea.vmem %s4, %s411
        %p413 = pneg %p150
        %p414 = pneg %p147
        %p415 = scmp.lt.s32.totalorder %s25, 1
        %s416 = scalar_select %p415, %s25, 1
        %s417 = smul.addr %s416, 2
        %s418 = smul.addr %s417, 8
        %s419 = scalar_lea.vmem %s5, %s418
        %p420 = pneg %p176
        %p421 = pneg %p173
        %p422 = pneg %p202
        %p423 = pneg %p199
        %s424 = sand.u32 %s189, 1
        %s425 = scalar_lea.sflag [#allocation3], %s424
        %s426 = sand.u32 %s189, 1
        %s427 = smul.addr %s426, 32
        %s428 = scalar_lea.vmem [#allocation2], %s427
        %p429 = pneg %p228
        %p430 = pneg %p225
        %p431 = scmp.lt.s32.totalorder %s25, 1
        %s432 = scalar_select %p431, %s25, 1
        %s433 = smul.addr %s432, 2
        %s434 = smul.addr %s433, 8
        %s435 = scalar_lea.vmem %s7, %s434
        %p436 = pneg %p254
        %p437 = pneg %p251
        %p438 = scmp.lt.s32.totalorder %s25, 1
        %s439 = scalar_select %p438, %s25, 1
        %s440 = smul.addr %s439, 2
        %s441 = scalar_lea.vmem %s8, %s440
        %p442 = pneg %p280
        %p443 = pneg %p277
        %p444 = scmp.lt.s32.totalorder %s25, 1
        %s445 = scalar_select %p444, %s25, 1
        %s446 = smul.addr %s445, 4
        %s447 = smul.addr %s446, 8
        %s448 = scalar_lea.vmem %s9, %s447
        %p449 = pneg %p306
        %p450 = pneg %p303
        %p451 = scmp.lt.s32.totalorder %s25, 1
        %s452 = scalar_select %p451, %s25, 1
        %s453 = smul.addr %s452, 2
        %s454 = smul.addr %s453, 8
        %s455 = scalar_lea.vmem %s10, %s454
        %p456 = scmp.lt.s32.totalorder %s25, 1
        %s457 = scalar_select %p456, %s25, 1
        %s458 = smul.addr %s457, 32
        %s459 = smul.addr %s458, 8
        %s460 = scalar_lea.vmem %s0, %s459
        %p461 = scmp.lt.s32.totalorder %s25, 1
        %s462 = scalar_select %p461, %s25, 1
        %s463 = smul.addr %s462, 2
        %s464 = smul.addr %s463, 8
        %s465 = scalar_lea.vmem %s1, %s464
        %p466 = scmp.lt.s32.totalorder %s25, 1
        %s467 = scalar_select %p466, %s25, 1
        %s468 = smul.addr %s467, 2
        %s469 = smul.addr %s468, 8
        %s470 = scalar_lea.vmem %s2, %s469
        %p471 = scmp.lt.s32.totalorder %s25, 1
        %s472 = scalar_select %p471, %s25, 1
        %s473 = smul.addr %s472, 2
        %s474 = smul.addr %s473, 8
        %s475 = scalar_lea.vmem %s3, %s474
        %p476 = scmp.lt.s32.totalorder %s25, 1
        %s477 = scalar_select %p476, %s25, 1
        %s478 = smul.addr %s477, 2
        %s479 = smul.addr %s478, 8
        %s480 = scalar_lea.vmem %s4, %s479
        %p481 = scmp.lt.s32.totalorder %s25, 1
        %s482 = scalar_select %p481, %s25, 1
        %s483 = smul.addr %s482, 2
        %s484 = smul.addr %s483, 8
        %s485 = scalar_lea.vmem %s5, %s484
        %p486 = scmp.lt.s32.totalorder %s25, 1
        %s487 = scalar_select %p486, %s25, 1
        %s488 = smul.addr %s487, 2
        %s489 = smul.addr %s488, 8
        %s490 = scalar_lea.vmem %s7, %s489
        %p491 = scmp.lt.s32.totalorder %s25, 1
        %s492 = scalar_select %p491, %s25, 1
        %s493 = smul.addr %s492, 2
        %s494 = scalar_lea.vmem %s8, %s493
        %p495 = scmp.lt.s32.totalorder %s25, 1
        %s496 = scalar_select %p495, %s25, 1
        %s497 = smul.addr %s496, 4
        %s498 = smul.addr %s497, 8
        %s499 = scalar_lea.vmem %s9, %s498
        %p500 = scmp.lt.s32.totalorder %s25, 1
        %s501 = scalar_select %p500, %s25, 1
        %s502 = smul.addr %s501, 2
        %s503 = smul.addr %s502, 8
        %s504 = scalar_lea.vmem %s10, %s503
        %v506 = vld [vmem:[%s460] sm:$0xff]
        %v507 = vld [vmem:[%s460 + $0x8] sm:$0xff]
        %v508 = vld [vmem:[%s460 + $0x10] sm:$0xff]
        %v509 = vld [vmem:[%s460 + $0x18] sm:$0xff]
        %v510 = vld [vmem:[%s460 + $0x20] sm:$0xff]
        %v511 = vld [vmem:[%s460 + $0x28] sm:$0xff]
        %v512 = vld [vmem:[%s460 + $0x30] sm:$0xff]
        %v513 = vld [vmem:[%s460 + $0x38] sm:$0xff]
        %v514 = vld [vmem:[%s460 + $0x40] sm:$0xff]
        %v515 = vld [vmem:[%s460 + $0x48] sm:$0xff]
        %v516 = vld [vmem:[%s460 + $0x50] sm:$0xff]
        %v517 = vld [vmem:[%s460 + $0x58] sm:$0xff]
        %v518 = vld [vmem:[%s460 + $0x60] sm:$0xff]
        %v519 = vld [vmem:[%s460 + $0x68] sm:$0xff]
        %v520 = vld [vmem:[%s460 + $0x70] sm:$0xff]
        %v521 = vld [vmem:[%s460 + $0x78] sm:$0xff]
        %v522 = vld [vmem:[%s460 + $0x80] sm:$0xff]
        %v523 = vld [vmem:[%s460 + $0x88] sm:$0xff]
        %v524 = vld [vmem:[%s460 + $0x90] sm:$0xff]
        %v525 = vld [vmem:[%s460 + $0x98] sm:$0xff]
        %v526 = vld [vmem:[%s460 + $0xa0] sm:$0xff]
        %v527 = vld [vmem:[%s460 + $0xa8] sm:$0xff]
        %v528 = vld [vmem:[%s460 + $0xb0] sm:$0xff]
        %v529 = vld [vmem:[%s460 + $0xb8] sm:$0xff]
        %v530 = vld [vmem:[%s460 + $0xc0] sm:$0xff]
        %v531 = vld [vmem:[%s460 + $0xc8] sm:$0xff]
        %v532 = vld [vmem:[%s460 + $0xd0] sm:$0xff]
        %v533 = vld [vmem:[%s460 + $0xd8] sm:$0xff]
        %v534 = vld [vmem:[%s460 + $0xe0] sm:$0xff]
        %v535 = vld [vmem:[%s460 + $0xe8] sm:$0xff]
        %v536 = vld [vmem:[%s460 + $0xf0] sm:$0xff]
        %v537 = vld [vmem:[%s460 + $0xf8] sm:$0xff]
        %v538 = vld [vmem:[%s465] sm:$0xff]
        %v539 = vld [vmem:[%s465 + $0x8] sm:$0xff]
        %v540 = vmul.f32 %v538, %v538
        %v541 = vmul.f32 %v539, %v539
        %vm542 = vcmask 64512
        %v543 = vsel %vm542, %v540, 0.0
        %544 = vadd.xlane.f32.xlu0 %v543
        %v545 = vpop.xlane.xlu0 %544
        %v546 = vsel %vm542, %v541, 0.0
        %547 = vadd.xlane.f32.xlu0 %v546
        %v548 = vpop.xlane.xlu0 %547
        %v549 = vrsqrt.pop %v545
        %v550 = vmul.f32 %v549, %v545
        %v551 = vmul.f32 %v550, %v549
        %v552 = vmul.f32 0.5, %v551
        %v553 = vsub.f32 1.5, %v552
        %v554 = vmul.f32 %v549, %v553
        %v555 = vmul.f32 %v545, %v554
        %vm556 = vcmp.eq.f32.partialorder %v545, inf
        %v557 = vsel %vm556, %v545, %v555
        %vm558 = vcmp.eq.f32.partialorder %v545, 0.0
        %v559 = vand.u32 %v545, 2147483648
        %v560 = vsel %vm558, %v559, %v557
        %v561 = vrsqrt.pop %v548
        %v562 = vmul.f32 %v561, %v548
        %v563 = vmul.f32 %v562, %v561
        %v564 = vmul.f32 0.5, %v563
        %v565 = vsub.f32 1.5, %v564
        %v566 = vmul.f32 %v561, %v565
        %v567 = vmul.f32 %v548, %v566
        %vm568 = vcmp.eq.f32.partialorder %v548, inf
        %v569 = vsel %vm568, %v548, %v567
        %vm570 = vcmp.eq.f32.partialorder %v548, 0.0
        %v571 = vand.u32 %v548, 2147483648
        %v572 = vsel %vm570, %v571, %v569
        %v573 = vmax.f32 %v560, 1e-08
        %v574 = vmax.f32 %v572, 1e-08
        %v575 = vrcp.pop %v573
        %v576 = vmul.f32 %v573, %v575
        %v577 = vsub.f32 1.0, %v576
        %v578 = vmul.f32 %v575, %v577
        %v579 = vadd.f32 %v575, %v578
        %vm580 = vweird.f32 %v573
        %vm581 = vweird.f32 %v575
        %vm582 = vmor %vm580, %vm581
        %v583 = vsel %vm582, %v575, %v579
        %v584 = vand.u32 2147483647, %v573
        %vm585 = vcmp.eq.f32.partialorder %v584, 8.507059e+37
        %v586 = vand.u32 %v573, 2147483648
        %v587 = vor.u32 1.1754944e-38, %v586
        %v588 = vsel %vm585, %v587, %v583
        %v589 = vmul.f32 %v538, %v588
        %v590 = vrcp.pop %v574
        %v591 = vmul.f32 %v574, %v590
        %v592 = vsub.f32 1.0, %v591
        %v593 = vmul.f32 %v590, %v592
        %v594 = vadd.f32 %v590, %v593
        %vm595 = vweird.f32 %v574
        %vm596 = vweird.f32 %v590
        %vm597 = vmor %vm595, %vm596
        %v598 = vsel %vm597, %v590, %v594
        %v599 = vand.u32 2147483647, %v574
        %vm600 = vcmp.eq.f32.partialorder %v599, 8.507059e+37
        %v601 = vand.u32 %v574, 2147483648
        %v602 = vor.u32 1.1754944e-38, %v601
        %v603 = vsel %vm600, %v602, %v598
        %v604 = vmul.f32 %v539, %v603
        %v605 = vpack.c.bf16 %v604, %v589
        %v606 = vpack.c.bf16 %v507, %v506
        %v607 = vpack.c.bf16 %v509, %v508
        %v608 = vpack.c.bf16 %v511, %v510
        %v609 = vpack.c.bf16 %v513, %v512
        %v610 = vpack.c.bf16 %v515, %v514
        %v611 = vpack.c.bf16 %v517, %v516
        %v612 = vpack.c.bf16 %v519, %v518
        %v613 = vpack.c.bf16 %v521, %v520
        %v614 = vpack.c.bf16 %v523, %v522
        %v615 = vpack.c.bf16 %v525, %v524
        %v616 = vpack.c.bf16 %v527, %v526
        %v617 = vpack.c.bf16 %v529, %v528
        %v618 = vpack.c.bf16 %v531, %v530
        %v619 = vpack.c.bf16 %v533, %v532
        %v620 = vpack.c.bf16 %v535, %v534
        %v621 = vpack.c.bf16 %v537, %v536
        %v623 = vsel %vm542, %v605, 0
        %v626 = vsel %vm542, %v606, 0
        %v629 = vsel %vm542, %v607, 0
        %v632 = vsel %vm542, %v608, 0
        %v635 = vsel %vm542, %v609, 0
        %v638 = vsel %vm542, %v610, 0
        %v641 = vsel %vm542, %v611, 0
        %v644 = vsel %vm542, %v612, 0
        %v647 = vsel %vm542, %v613, 0
        %v650 = vsel %vm542, %v614, 0
        %v653 = vsel %vm542, %v615, 0
        %v656 = vsel %vm542, %v616, 0
        %v659 = vsel %vm542, %v617, 0
        %v662 = vsel %vm542, %v618, 0
        %v665 = vsel %vm542, %v619, 0
        %v668 = vsel %vm542, %v620, 0
        %v671 = vsel %vm542, %v621, 0
        %673 = vmatpush.bf16.xpose.msra.mxu0 %v647
        %674 = vmatpush.bf16.xpose.msra.mxu0 %v644
        %675 = vmatpush.bf16.xpose.msra.mxu0 %v641
        %676 = vmatpush.bf16.xpose.msra.mxu0 %v638
        %677 = vmatpush.bf16.xpose.msra.mxu0 %v635
        %678 = vmatpush.bf16.xpose.msra.mxu0 %v632
        %679 = vmatpush.bf16.xpose.msra.mxu0 %v629
        %680 = vmatpush.bf16.xpose.msra.mxu0 %v626
        %681 = vmatmul.bf16.gmra.mxu0 %v623
        %v682 = vpop.f32.mrf.mxu0
        %v683 = vadd.f32 0.0, %v682
        %v684 = vpop.f32.mrf.mxu0
        %v685 = vadd.f32 0.0, %v684
        %686 = vdwg.mxu0
        %687 = vmatpush.bf16.xpose.msra.mxu0 %v671
        %688 = vmatpush.bf16.xpose.msra.mxu0 %v668
        %689 = vmatpush.bf16.xpose.msra.mxu0 %v665
        %690 = vmatpush.bf16.xpose.msra.mxu0 %v662
        %691 = vmatpush.bf16.xpose.msra.mxu0 %v659
        %692 = vmatpush.bf16.xpose.msra.mxu0 %v656
        %693 = vmatpush.bf16.xpose.msra.mxu0 %v653
        %694 = vmatpush.bf16.xpose.msra.mxu0 %v650
        %695 = vmatmul.bf16.gmra.mxu0 %v623
        %v696 = vpop.f32.mrf.mxu0
        %v697 = vadd.f32 0.0, %v696
        %v698 = vpop.f32.mrf.mxu0
        %v699 = vadd.f32 0.0, %v698
        %700 = vdwg.mxu0
        %701 = vst [vmem:[%s428] sm:$0xff] %v683
        %702 = vst [vmem:[%s428 + $0x8] sm:$0xff] %v697
        %703 = vst [vmem:[%s428 + $0x10] sm:$0xff] %v685
        %704 = vst [vmem:[%s428 + $0x18] sm:$0xff] %v699
        %v705 = vlaneseq
        %v706 = vshrl.u32 %v705, 7
        %v707 = vadd.s32 %v706, 8
        %v708 = vlaneseq
        %v709 = vand.u32 %v708, 127
        %vm710 = vcmp.eq.s32.totalorder %v706, %v709
        %vm711 = vcmp.eq.s32.totalorder %v707, %v709
        %v712 = vsel %vm710, 1, 0
        %v713 = vsel %vm711, 1, 0
        %v714 = vcvt.s32.f32 %v712
        %v715 = vcvt.s32.f32 %v713
        %vm716 = vcmp.gt.f32.partialorder %v683, 0.5
        %vm717 = vcmp.gt.f32.partialorder %v697, 0.5
        %vm718 = vcmp.gt.f32.partialorder %v685, 0.5
        %vm719 = vcmp.gt.f32.partialorder %v699, 0.5
        %v720 = vsel %vm716, 1, 0
        %v721 = vsel %vm717, 1, 0
        %v722 = vsel %vm718, 1, 0
        %v723 = vsel %vm719, 1, 0
        %v724 = vcvt.s32.f32 %v720
        %v725 = vcvt.s32.f32 %v721
        %v726 = vcvt.s32.f32 %v722
        %v727 = vcvt.s32.f32 %v723
        %v728 = vpack.c.bf16 %v726, %v724
        %v729 = vpack.c.bf16 %v727, %v725
        %730 = vmatpush.bf16.xpose.msra.mxu0 0
        %731 = vmatpush.bf16.xpose.msra.mxu0 0
        %732 = vmatpush.bf16.xpose.msra.mxu0 0
        %733 = vmatpush.bf16.xpose.msra.mxu0 0
        %734 = vmatpush.bf16.xpose.msra.mxu0 0
        %735 = vmatpush.bf16.xpose.msra.mxu0 0
        %736 = vmatpush.bf16.xpose.msra.mxu0 0
        %737 = vmatpush.bf16.xpose.msra.mxu0 %v728
        %738 = vmatmul.bf16.gmra.mxu0 %v728
        %v739 = vpop.f32.mrf.mxu0
        %v740 = vadd.f32 0.0, %v739
        %v741 = vpop.f32.mrf.mxu0
        %v742 = vadd.f32 0.0, %v741
        %743 = vdwg.mxu0
        %744 = vmatpush.bf16.xpose.msra.mxu0 0
        %745 = vmatpush.bf16.xpose.msra.mxu0 0
        %746 = vmatpush.bf16.xpose.msra.mxu0 0
        %747 = vmatpush.bf16.xpose.msra.mxu0 0
        %748 = vmatpush.bf16.xpose.msra.mxu0 0
        %749 = vmatpush.bf16.xpose.msra.mxu0 0
        %750 = vmatpush.bf16.xpose.msra.mxu0 0
        %751 = vmatpush.bf16.xpose.msra.mxu0 %v729
        %752 = vmatmul.bf16.gmra.mxu0 %v729
        %v753 = vpop.f32.mrf.mxu0
        %v754 = vadd.f32 %v740, %v753
        %v755 = vpop.f32.mrf.mxu0
        %v756 = vadd.f32 %v742, %v755
        %757 = vdwg.mxu0
        %v758 = vadd.f32 %v724, %v725
        %759 = vadd.xlane.f32.xlu0 %v758
        %v760 = vpop.xlane.xlu0 %759
        %v761 = vadd.f32 %v726, %v727
        %762 = vadd.xlane.f32.xlu0 %v761
        %v763 = vpop.xlane.xlu0 %762
        %v764 = vmul.f32 %v760, %v714
        %v765 = vmul.f32 %v763, %v715
        %vm766 = vcmask 130048
        %v767 = vsel %vm766, %v764, 0.0
        %v768 = vsel %vm766, %v765, 0.0
        %v769 = vadd.f32 %v767, %v768
        %v770 = vrot.slane %v769, 4
        %v771 = vadd.f32 %v769, %v770
        %v772 = vrot.slane %v771, 2
        %v773 = vadd.f32 %v771, %v772
        %v774 = vrot.slane %v773, 1
        %v775 = vadd.f32 %v773, %v774
        %v776 = vadd.f32 %v760, %v775
        %v777 = vadd.f32 %v763, %v775
        %v778 = vsub.f32 %v776, %v754
        %v779 = vsub.f32 %v777, %v756
        %v780 = vmax.f32 %v778, 1e-06
        %v781 = vmax.f32 %v779, 1e-06
        %v782 = vrcp.pop %v780
        %v783 = vmul.f32 %v780, %v782
        %v784 = vsub.f32 1.0, %v783
        %v785 = vmul.f32 %v782, %v784
        %v786 = vadd.f32 %v782, %v785
        %vm787 = vweird.f32 %v780
        %vm788 = vweird.f32 %v782
        %vm789 = vmor %vm787, %vm788
        %v790 = vsel %vm789, %v782, %v786
        %v791 = vand.u32 2147483647, %v780
        %vm792 = vcmp.eq.f32.partialorder %v791, 8.507059e+37
        %v793 = vand.u32 %v780, 2147483648
        %v794 = vor.u32 1.1754944e-38, %v793
        %v795 = vsel %vm792, %v794, %v790
        %v796 = vmul.f32 %v754, %v795
        %v797 = vrcp.pop %v781
        %v798 = vmul.f32 %v781, %v797
        %v799 = vsub.f32 1.0, %v798
        %v800 = vmul.f32 %v797, %v799
        %v801 = vadd.f32 %v797, %v800
        %vm802 = vweird.f32 %v781
        %vm803 = vweird.f32 %v797
        %vm804 = vmor %vm802, %vm803
        %v805 = vsel %vm804, %v797, %v801
        %v806 = vand.u32 2147483647, %v781
        %vm807 = vcmp.eq.f32.partialorder %v806, 8.507059e+37
        %v808 = vand.u32 %v781, 2147483648
        %v809 = vor.u32 1.1754944e-38, %v808
        %v810 = vsel %vm807, %v809, %v805
        %v811 = vmul.f32 %v756, %v810
        %vm812 = vcmp.gt.f32.partialorder %v796, 0.2
        %vm813 = vcmp.gt.f32.partialorder %v811, 0.2
        %vm814 = vmxor %vm710, 1
        %vm815 = vmxor %vm711, 1
        %vm816 = vmand %vm812, %vm814
        %vm817 = vmand %vm813, %vm815
        %v818 = vld [vmem:[%s470] sm:$0xff]
        %v819 = vld [vmem:[%s470 + $0x8] sm:$0xff]
        %821 = vset.pattern.permute.xlu0 0
        %822 = vperm.xlu0 %821, %v818
        %v823 = vpop.permute.xlu0 %822
        %826 = vset.pattern.permute.xlu0 0
        %827 = vperm.xlu0 %826, %v819
        %v828 = vpop.permute.xlu0 %827
        %v830 = vmul.f32 %v823, %v714
        %v831 = vmul.f32 %v828, %v715
        %v832 = vsel %vm766, %v830, 0.0
        %v833 = vsel %vm766, %v831, 0.0
        %v834 = vadd.f32 %v832, %v833
        %v835 = vrot.slane %v834, 4
        %v836 = vadd.f32 %v834, %v835
        %v837 = vrot.slane %v836, 2
        %v838 = vadd.f32 %v836, %v837
        %v839 = vrot.slane %v838, 1
        %v840 = vadd.f32 %v838, %v839
        %vm841 = vcmp.lt.f32.partialorder %v823, %v840
        %vm842 = vcmp.lt.f32.partialorder %v828, %v840
        %vm843 = vmand %vm816, %vm841
        %vm844 = vmand %vm817, %vm842
        %v845 = vld [vmem:[%s475] sm:$0xff]
        %v846 = vld [vmem:[%s475 + $0x8] sm:$0xff]
        %848 = vset.pattern.permute.xlu0 0
        %849 = vperm.xlu0 %848, %v845
        %v850 = vpop.permute.xlu0 %849
        %853 = vset.pattern.permute.xlu0 0
        %854 = vperm.xlu0 %853, %v846
        %v855 = vpop.permute.xlu0 %854
        %v857 = vmul.f32 %v850, %v714
        %v858 = vmul.f32 %v855, %v715
        %v859 = vsel %vm766, %v857, 0.0
        %v860 = vsel %vm766, %v858, 0.0
        %v861 = vadd.f32 %v859, %v860
        %v862 = vrot.slane %v861, 4
        %v863 = vadd.f32 %v861, %v862
        %v864 = vrot.slane %v863, 2
        %v865 = vadd.f32 %v863, %v864
        %v866 = vrot.slane %v865, 1
        %v867 = vadd.f32 %v865, %v866
        %vm868 = vcmp.gt.f32.partialorder %v845, 0.5
        %vm869 = vcmp.gt.f32.partialorder %v846, 0.5
        %vm870 = vcmp.gt.f32.partialorder %v867, 0.5
        %vm871 = vmxor %vm868, 1
        %vm872 = vmxor %vm869, 1
        %vm873 = vmxor %vm870, 1
        %v874 = vsel %vm868, 1, 0
        %v875 = vsel %vm869, 1, 0
        %876 = vset.pattern.permute.xlu0 0
        %877 = vperm.xlu0 %876, %v874
        %v878 = vpop.permute.xlu0 %877
        %879 = vset.pattern.permute.xlu0 0
        %880 = vperm.xlu0 %879, %v875
        %v881 = vpop.permute.xlu0 %880
        %vm882 = vcmp.eq.s32.totalorder %v878, 1
        %vm883 = vcmp.eq.s32.totalorder %v881, 1
        %v884 = vsel %vm873, 1, 0
        %vm885 = vcmp.eq.s32.totalorder %v884, 1
        %vm886 = vmand %vm882, %vm885
        %vm887 = vmand %vm883, %vm885
        %vm888 = vmxor %vm886, 1
        %vm889 = vmxor %vm887, 1
        %vm890 = vmand %vm843, %vm888
        %vm891 = vmand %vm844, %vm889
        %v892 = vsel %vm871, 1, 0
        %v893 = vsel %vm872, 1, 0
        %894 = vset.pattern.permute.xlu0 0
        %895 = vperm.xlu0 %894, %v892
        %v896 = vpop.permute.xlu0 %895
        %897 = vset.pattern.permute.xlu0 0
        %898 = vperm.xlu0 %897, %v893
        %v899 = vpop.permute.xlu0 %898
        %vm900 = vcmp.eq.s32.totalorder %v896, 1
        %vm901 = vcmp.eq.s32.totalorder %v899, 1
        %v902 = vsel %vm870, 1, 0
        %vm903 = vcmp.eq.s32.totalorder %v902, 1
        %vm904 = vmand %vm900, %vm903
        %vm905 = vmand %vm901, %vm903
        %vm906 = vmand %vm904, %vm816
        %vm907 = vmand %vm905, %vm817
        %vm908 = vmor %vm890, %vm906
        %vm909 = vmor %vm891, %vm907
        %v910 = vsel %vm908, 1.0, 0.0
        %v911 = vsel %vm909, 1.0, 0.0
        %v912 = vsel %vm766, %v910, -inf
        %913 = vmax.xlane.f32.xlu0 %v912
        %v914 = vpop.xlane.xlu0 %913
        %v915 = vsel %vm766, %v911, -inf
        %916 = vmax.xlane.f32.xlu0 %v915
        %v917 = vpop.xlane.xlu0 %916
        %vm918 = vcmp.gt.f32.partialorder %v914, 0.0
        %vm919 = vcmp.gt.f32.partialorder %v917, 0.0
        %vm920 = vmxor %vm918, 1
        %vm921 = vmxor %vm919, 1
        %v922 = vsel %vm920, 1, 0
        %v923 = vsel %vm921, 1, 0
        %v924 = vcvt.s32.f32 %v922
        %v925 = vcvt.s32.f32 %v923
        %v926 = vld [vmem:[%s480] sm:$0xff]
        %v927 = vld [vmem:[%s480 + $0x8] sm:$0xff]
        %v928 = vmul.f32 %v924, %v926
        %v929 = vmul.f32 %v925, %v927
        %vm930 = vcmask 7168
        %931 = vst.msk [vmem:[%s490] sm:$0xff] %vm930, %v928
        %932 = vst.msk [vmem:[%s490 + $0x8] sm:$0xff] %vm930, %v929
        %934 = vset.pattern.permute.xlu0 0
        %935 = vperm.xlu0 %934, %v928
        %v936 = vpop.permute.xlu0 %935
        %939 = vset.pattern.permute.xlu0 0
        %940 = vperm.xlu0 %939, %v929
        %v941 = vpop.permute.xlu0 %940
        %v943 = vmul.f32 %v683, %v936
        %v944 = vmul.f32 %v697, %v936
        %v945 = vmul.f32 %v685, %v941
        %v946 = vmul.f32 %v699, %v941
        %v947 = vmax.f32 %v943, %v945
        %v948 = vrot.slane %v947, 4
        %v949 = vmax.f32 %v947, %v948
        %v950 = vrot.slane %v949, 2
        %v951 = vmax.f32 %v949, %v950
        %v952 = vrot.slane %v951, 1
        %v953 = vmax.f32 %v951, %v952
        %v954 = vmax.f32 %v944, %v946
        %v955 = vrot.slane %v954, 4
        %v956 = vmax.f32 %v954, %v955
        %v957 = vrot.slane %v956, 2
        %v958 = vmax.f32 %v956, %v957
        %v959 = vrot.slane %v958, 1
        %v960 = vmax.f32 %v958, %v959
        %v961 = vmin.f32 %v953, 1.0
        %v962 = vmin.f32 %v960, 1.0
        %v963 = vsub.f32 1.0, %v961
        %v964 = vsub.f32 1.0, %v962
        %v967 = vrot.slane %v964, 7
        %vm968 = vcmask 1040384
        %v969 = vsel %vm968, %v963, %v967
        %v971 = vlaneseq
        %vm972 = vcmp.ge.s32.totalorder %v971, 0
        %vm973 = vcmp.lt.s32.totalorder %v971, 256
        %vm974 = vmand %vm972, %vm973
        %975 = vst.msk [vmem:[%s494] sm:$0x3] %vm974, %v969
        %v976 = vsub.f32 1.0, %v928
        %v977 = vsub.f32 1.0, %v929
        %979 = vset.pattern.permute.xlu0 0
        %980 = vperm.xlu0 %979, %v976
        %v981 = vpop.permute.xlu0 %980
        %984 = vset.pattern.permute.xlu0 0
        %985 = vperm.xlu0 %984, %v977
        %v986 = vpop.permute.xlu0 %985
        %v988 = vmul.f32 %v981, %v963
        %v989 = vmul.f32 %v981, %v964
        %v990 = vmul.f32 %v986, %v963
        %v991 = vmul.f32 %v986, %v964
        %v992 = vadd.f32 %v943, %v988
        %v993 = vadd.f32 %v944, %v989
        %v994 = vadd.f32 %v945, %v990
        %v995 = vadd.f32 %v946, %v991
        %996 = vst [vmem:[%s499] sm:$0xff] %v992
        %997 = vst [vmem:[%s499 + $0x8] sm:$0xff] %v993
        %998 = vst [vmem:[%s499 + $0x10] sm:$0xff] %v994
        %999 = vst [vmem:[%s499 + $0x18] sm:$0xff] %v995
        %1000 = vmatpush.bf16.msra.mxu0 %v613
        %1001 = vmatpush.bf16.msra.mxu0 %v612
        %1002 = vmatpush.bf16.msra.mxu0 %v611
        %1003 = vmatpush.bf16.msra.mxu0 %v610
        %1004 = vmatpush.bf16.msra.mxu0 %v609
        %1005 = vmatpush.bf16.msra.mxu0 %v608
        %1006 = vmatpush.bf16.msra.mxu0 %v607
        %1007 = vmatpush.bf16.msra.mxu0 %v606
        %1008 = vmatmul.bf16.gmra.mxu0 %v728
        %v1009 = vpop.f32.mrf.mxu0
        %v1010 = vadd.f32 0.0, %v1009
        %v1011 = vpop.f32.mrf.mxu0
        %v1012 = vadd.f32 0.0, %v1011
        %1013 = vdwg.mxu0
        %1014 = vmatpush.bf16.msra.mxu0 %v621
        %1015 = vmatpush.bf16.msra.mxu0 %v620
        %1016 = vmatpush.bf16.msra.mxu0 %v619
        %1017 = vmatpush.bf16.msra.mxu0 %v618
        %1018 = vmatpush.bf16.msra.mxu0 %v617
        %1019 = vmatpush.bf16.msra.mxu0 %v616
        %1020 = vmatpush.bf16.msra.mxu0 %v615
        %1021 = vmatpush.bf16.msra.mxu0 %v614
        %1022 = vmatmul.bf16.gmra.mxu0 %v729
        %v1023 = vpop.f32.mrf.mxu0
        %v1024 = vadd.f32 %v1010, %v1023
        %v1025 = vpop.f32.mrf.mxu0
        %v1026 = vadd.f32 %v1012, %v1025
        %1027 = vdwg.mxu0
        %v1028 = vmul.f32 %v1024, 0.00390625
        %v1029 = vmul.f32 %v1026, 0.00390625
        %v1030 = vmul.f32 %v1028, %v1028
        %v1031 = vmul.f32 %v1029, %v1029
        %v1032 = vsel %vm542, %v1030, 0.0
        %1033 = vadd.xlane.f32.xlu0 %v1032
        %v1034 = vpop.xlane.xlu0 %1033
        %v1035 = vsel %vm542, %v1031, 0.0
        %1036 = vadd.xlane.f32.xlu0 %v1035
        %v1037 = vpop.xlane.xlu0 %1036
        %v1038 = vrsqrt.pop %v1034
        %v1039 = vmul.f32 %v1038, %v1034
        %v1040 = vmul.f32 %v1039, %v1038
        %v1041 = vmul.f32 0.5, %v1040
        %v1042 = vsub.f32 1.5, %v1041
        %v1043 = vmul.f32 %v1038, %v1042
        %v1044 = vmul.f32 %v1034, %v1043
        %vm1045 = vcmp.eq.f32.partialorder %v1034, inf
        %v1046 = vsel %vm1045, %v1034, %v1044
        %vm1047 = vcmp.eq.f32.partialorder %v1034, 0.0
        %v1048 = vand.u32 %v1034, 2147483648
        %v1049 = vsel %vm1047, %v1048, %v1046
        %v1050 = vrsqrt.pop %v1037
        %v1051 = vmul.f32 %v1050, %v1037
        %v1052 = vmul.f32 %v1051, %v1050
        %v1053 = vmul.f32 0.5, %v1052
        %v1054 = vsub.f32 1.5, %v1053
        %v1055 = vmul.f32 %v1050, %v1054
        %v1056 = vmul.f32 %v1037, %v1055
        %vm1057 = vcmp.eq.f32.partialorder %v1037, inf
        %v1058 = vsel %vm1057, %v1037, %v1056
        %vm1059 = vcmp.eq.f32.partialorder %v1037, 0.0
        %v1060 = vand.u32 %v1037, 2147483648
        %v1061 = vsel %vm1059, %v1060, %v1058
        %v1062 = vmax.f32 %v1049, 1e-06
        %v1063 = vmax.f32 %v1061, 1e-06
        %v1064 = vrcp.pop %v1062
        %v1065 = vmul.f32 %v1062, %v1064
        %v1066 = vsub.f32 1.0, %v1065
        %v1067 = vmul.f32 %v1064, %v1066
        %v1068 = vadd.f32 %v1064, %v1067
        %vm1069 = vweird.f32 %v1062
        %vm1070 = vweird.f32 %v1064
        %vm1071 = vmor %vm1069, %vm1070
        %v1072 = vsel %vm1071, %v1064, %v1068
        %v1073 = vand.u32 2147483647, %v1062
        %vm1074 = vcmp.eq.f32.partialorder %v1073, 8.507059e+37
        %v1075 = vand.u32 %v1062, 2147483648
        %v1076 = vor.u32 1.1754944e-38, %v1075
        %v1077 = vsel %vm1074, %v1076, %v1072
        %v1078 = vmul.f32 %v1028, %v1077
        %v1079 = vrcp.pop %v1063
        %v1080 = vmul.f32 %v1063, %v1079
        %v1081 = vsub.f32 1.0, %v1080
        %v1082 = vmul.f32 %v1079, %v1081
        %v1083 = vadd.f32 %v1079, %v1082
        %vm1084 = vweird.f32 %v1063
        %vm1085 = vweird.f32 %v1079
        %vm1086 = vmor %vm1084, %vm1085
        %v1087 = vsel %vm1086, %v1079, %v1083
        %v1088 = vand.u32 2147483647, %v1063
        %vm1089 = vcmp.eq.f32.partialorder %v1088, 8.507059e+37
        %v1090 = vand.u32 %v1063, 2147483648
        %v1091 = vor.u32 1.1754944e-38, %v1090
        %v1092 = vsel %vm1089, %v1091, %v1087
        %v1093 = vmul.f32 %v1029, %v1092
        %v1094 = vld [vmem:[%s485] sm:$0xff]
        %v1095 = vld [vmem:[%s485 + $0x8] sm:$0xff]
        %v1096 = vmul.f32 %v936, %v1078
        %v1097 = vmul.f32 %v941, %v1093
        %v1098 = vmul.f32 %v1096, 100.0
        %v1099 = vmul.f32 %v1097, 100.0
        %v1100 = vadd.f32 %v1094, %v1098
        %v1101 = vadd.f32 %v1095, %v1099
        %1102 = vst.msk [vmem:[%s504] sm:$0xff] %vm542, %v1100
        %1103 = vst.msk [vmem:[%s504 + $0x8] sm:$0xff] %vm542, %v1101
        %s1104 = sand.u32 %s189, 1
        %s1105 = scalar_lea.sflag [#allocation3], %s1104
        %s1106 = sand.u32 %s189, 1
        %s1107 = smul.addr %s1106, 32
        %s1108 = scalar_lea.vmem [#allocation2], %s1107
        %p1109 = scmp.lt.s32.totalorder %s25, 1
        %s1110 = scalar_select %p1109, %s25, 1
        %s1111 = smul.addr %s1110, 2
        %s1112 = smul.addr %s1111, 8
        %s1113 = scalar_lea.vmem %s7, %s1112
        %p1114 = scmp.lt.s32.totalorder %s25, 1
        %s1115 = scalar_select %p1114, %s25, 1
        %s1116 = smul.addr %s1115, 2
        %s1117 = scalar_lea.vmem %s8, %s1116
        %p1118 = scmp.lt.s32.totalorder %s25, 1
        %s1119 = scalar_select %p1118, %s25, 1
        %s1120 = smul.addr %s1119, 4
        %s1121 = smul.addr %s1120, 8
        %s1122 = scalar_lea.vmem %s9, %s1121
        %p1123 = scmp.lt.s32.totalorder %s25, 1
        %s1124 = scalar_select %p1123, %s25, 1
        %s1125 = smul.addr %s1124, 2
        %s1126 = smul.addr %s1125, 8
        %s1127 = scalar_lea.vmem %s10, %s1126
        // Predicated region
        $region45: #{competition_forward.14} parent=43 // pred_check
          %p1128 = pneg %p199
        $region46: #{competition_forward.14} parent=43 // pred_check_branch
          %1130 = sbr.rel (%p1128) target = $region48
        $region47: #{competition_forward.14} parent=43 // pred_region
          %1132 = vsyncadd %s1105, 0
          %s1133 = smul.addr %s25, 4
          %s1134 = smul.addr %s1133, 8
          %s1135 = scalar_lea.hbm %s6, %s1134
          %s1136 = sshll.u32 %s1108, 4
          %s1137 = int_to_ptr.vmem [resolvable:$true] %s1136
          %s1138 = sshll.u32 %s1135, 4
          %s1139 = int_to_ptr.hbm [resolvable:$true] %s1138
          %1144 = dma.vmem_to_hbm [thread:$0]  %s1137, 512, %s1139, %s1105, 256, 256, 16
        $region48: #{competition_forward.14} parent=43 // pred_fallthru
          _
        // Predicated region
        $region49: #{competition_forward.14} parent=43 // pred_check
          %p1145 = pneg %p225
        $region50: #{competition_forward.14} parent=43 // pred_check_branch
          %1147 = sbr.rel (%p1145) target = $region52
        $region51: #{competition_forward.14} parent=43 // pred_region
          _
        $region52: #{competition_forward.14} parent=43 // pred_fallthru
          _
        // Predicated region
        $region53: #{competition_forward.14} parent=43 // pred_check
          %p1148 = pneg %p251
        $region54: #{competition_forward.14} parent=43 // pred_check_branch
          %1150 = sbr.rel (%p1148) target = $region56
        $region55: #{competition_forward.14} parent=43 // pred_region
          _
        $region56: #{competition_forward.14} parent=43 // pred_fallthru
          _
        // Predicated region
        $region57: #{competition_forward.14} parent=43 // pred_check
          %p1151 = pneg %p277
        $region58: #{competition_forward.14} parent=43 // pred_check_branch
          %1153 = sbr.rel (%p1151) target = $region60
        $region59: #{competition_forward.14} parent=43 // pred_region
          _
        $region60: #{competition_forward.14} parent=43 // pred_fallthru
          _
        // Predicated region
        $region61: #{competition_forward.14} parent=43 // pred_check
          %p1154 = pneg %p303
        $region62: #{competition_forward.14} parent=43 // pred_check_branch
          %1156 = sbr.rel (%p1154) target = $region64
        $region63: #{competition_forward.14} parent=43 // pred_region
          _
        $region64: #{competition_forward.14} parent=43 // pred_fallthru
          _
      $region44: #{competition_forward.14} parent=5 // pred_fallthru
        _
      %p1157 = scmp.le.s32.totalorder 2, %s20
      // Predicated region
      $region65: #{competition_forward.14} parent=5 // pred_check
        %p1158 = pneg %p1157
      $region66: #{competition_forward.14} parent=5 // pred_check_branch
        %1160 = sbr.rel (%p1158) target = $region68
      $region67: #{competition_forward.14} parent=5 // pred_region
        %s1161 = ssub.s32 %s20, 2
        // Predicated region
        $region69: #{competition_forward.14} parent=67 // pred_check
          %p1162 = pneg %p205
        $region70: #{competition_forward.14} parent=67 // pred_check_branch
          %1164 = sbr.rel (%p1162) target = $region72
        $region71: #{competition_forward.14} parent=67 // pred_region
          %s1165 = sand.u32 %s190, 1
          %s1166 = scalar_lea.sflag [#allocation3], %s1165
          %s1167 = sand.u32 %s190, 1
          %s1168 = smul.addr %s1167, 32
          %s1169 = scalar_lea.vmem [#allocation2], %s1168
          %1171 = dma.done %s1166, 512
        $region72: #{competition_forward.14} parent=67 // pred_fallthru
          _
        // Predicated region
        $region73: #{competition_forward.14} parent=67 // pred_check
          %p1172 = pneg %p231
        $region74: #{competition_forward.14} parent=67 // pred_check_branch
          %1174 = sbr.rel (%p1172) target = $region76
        $region75: #{competition_forward.14} parent=67 // pred_region
          %p1175 = scmp.lt.s32.totalorder %s26, 1
          %s1176 = scalar_select %p1175, %s26, 1
          %s1177 = smul.addr %s1176, 2
          %s1178 = smul.addr %s1177, 8
          %s1179 = scalar_lea.vmem %s7, %s1178
        $region76: #{competition_forward.14} parent=67 // pred_fallthru
          _
        // Predicated region
        $region77: #{competition_forward.14} parent=67 // pred_check
          %p1180 = pneg %p257
        $region78: #{competition_forward.14} parent=67 // pred_check_branch
          %1182 = sbr.rel (%p1180) target = $region80
        $region79: #{competition_forward.14} parent=67 // pred_region
          %p1183 = scmp.lt.s32.totalorder %s26, 1
          %s1184 = scalar_select %p1183, %s26, 1
          %s1185 = smul.addr %s1184, 2
          %s1186 = scalar_lea.vmem %s8, %s1185
        $region80: #{competition_forward.14} parent=67 // pred_fallthru
          _
        // Predicated region
        $region81: #{competition_forward.14} parent=67 // pred_check
          %p1187 = pneg %p283
        $region82: #{competition_forward.14} parent=67 // pred_check_branch
          %1189 = sbr.rel (%p1187) target = $region84
        $region83: #{competition_forward.14} parent=67 // pred_region
          %p1190 = scmp.lt.s32.totalorder %s26, 1
          %s1191 = scalar_select %p1190, %s26, 1
          %s1192 = smul.addr %s1191, 4
          %s1193 = smul.addr %s1192, 8
          %s1194 = scalar_lea.vmem %s9, %s1193
        $region84: #{competition_forward.14} parent=67 // pred_fallthru
          _
        // Predicated region
        $region85: #{competition_forward.14} parent=67 // pred_check
          %p1195 = pneg %p309
        $region86: #{competition_forward.14} parent=67 // pred_check_branch
          %1197 = sbr.rel (%p1195) target = $region88
        $region87: #{competition_forward.14} parent=67 // pred_region
          %p1198 = scmp.lt.s32.totalorder %s26, 1
          %s1199 = scalar_select %p1198, %s26, 1
          %s1200 = smul.addr %s1199, 2
          %s1201 = smul.addr %s1200, 8
          %s1202 = scalar_lea.vmem %s10, %s1201
        $region88: #{competition_forward.14} parent=67 // pred_fallthru
          _
      $region68: #{competition_forward.14} parent=5 // pred_fallthru
        _
    $region6: #{competition_forward.14} parent=1 // loop_footer
      %s24 = sadd.s32 1, %s20
    $region7: #{competition_forward.14} parent=1 // loop_footer_branch
      %19 = sbr.rel target = $region3
    $region8: #{competition_forward.14} parent=1 // loop_exit
      _
    %1203 = vsyncpa [#allocation3], 1
    %s1204 = scalar_lea.sflag [#allocation3], 1
    %1205 = vsyncpa %s1204, 1

// kernel: competition_forward.15
$region0: #{competition_forward.15}
  #allocation0 [shape = 'u32[]', space=smem, size = 0x4, offset = 0x4, fixed_abs, tag = 'smem constant byte address 0x4 - core index']
  #allocation1 [shape = 'u32[72,128]{1,0:T(1,128)}', space=vmem, size = 0x9000, scoped, tag = 'internal scratch']
  %s0 = inlined_call_operand.vmem [shape: f32[2,16,2], index: 0, kind: input, shape index: {}]
  %s1 = inlined_call_operand.vmem [shape: f32[2,1,256], index: 1, kind: input, shape index: {}]
  %s2 = inlined_call_operand.vmem [shape: f32[2,256,8], index: 2, kind: input, shape index: {}]
  %s3 = inlined_call_operand.vmem [shape: f32[2,256], index: 3, kind: input, shape index: {}]
  %s4 = inlined_call_operand.vmem [shape: f32[2,16,8], index: 4, kind: input, shape index: {}]
  %s5 = inlined_call_operand.vmem [shape: f32[2,16,1], index: 5, kind: input, shape index: {}]
  %s6 = inlined_call_operand.vmem [shape: f32[2,16,8], index: 6, kind: output, shape index: {}]
  %s7 = sld [smem:[#allocation0]]
  $region57: #{competition_forward.15} parent=0
    _
  %s9 = ssub.s32 1, %s7
  %s10 = scalar_select 0, %s9, %s7
  loop: start=0, step=1, limit=4
  $region2: #{competition_forward.15} parent=0 // loop_pre_header
    _
  $region3: #{competition_forward.15} parent=0 // loop_header
    %s12 = sphi 0, %s16
    %p13 = scmp.ge.s32.totalorder %s12, 4
    %s22 = sphi 0, %s24
    %s25 = sphi 0, %s22
    %s26 = sphi 0, %s25
    %s42 = sphi 0, %s26
    %s48 = sphi 0, %s50
    %s51 = sphi 0, %s48
    %s52 = sphi 0, %s51
    %s68 = sphi 0, %s52
    %s74 = sphi 0, %s76
    %s77 = sphi 0, %s74
    %s78 = sphi 0, %s77
    %s94 = sphi 0, %s78
    %s98 = sphi 0, %s98
    %s100 = sphi 0, %s98
    %s101 = sphi 0, %s100
    %s115 = sphi 0, %s101
    %s121 = sphi 0, %s123
    %s124 = sphi 0, %s121
    %s125 = sphi 0, %s124
    %s141 = sphi 0, %s125
    %s147 = sphi 0, %s149
    %s150 = sphi 0, %s147
    %s151 = sphi 0, %s150
    %s167 = sphi 0, %s151
    %s173 = sphi 0, %s175
    %s176 = sphi 0, %s173
    %s177 = sphi 0, %s176
    %s193 = sphi 0, %s177
  $region4: #{competition_forward.15} parent=0 // loop_header_branch
    %15 = sbr.rel (%p13) target = $region8
  $region5: #{competition_forward.15} parent=0 // loop_body
    %s17 = ssub.s32 %s12, 1
    %s18 = ssub.s32 %s12, 2
    %s19 = sadd.s32 %s12, 1
    %s20 = ssub.s32 %s12, %s19
    %p21 = scmp.eq.s32.totalorder %s20, 0
    %s23 = sadd.s32 %s22, 1
    %s24 = scalar_select %p21, %s22, %s23
    %p27 = pneg %p21
    %p28 = scmp.eq.s32.totalorder %s12, 1
    %p29 = por %p27, %p28
    %p30 = scmp.ne.s32.totalorder %s22, %s25
    %p31 = scmp.eq.s32.totalorder %s12, 0
    %p32 = por %p30, %p31
    %p33 = scmp.ne.s32.totalorder %s22, %s25
    %p34 = scmp.eq.s32.totalorder %s17, 1
    %p35 = por %p33, %p34
    %p36 = scmp.ne.s32.totalorder %s25, %s26
    %p37 = scmp.eq.s32.totalorder %s17, 0
    %p38 = por %p36, %p37
    %p39 = scmp.ne.s32.totalorder %s25, %s26
    %p40 = scmp.eq.s32.totalorder %s18, 1
    %p41 = por %p39, %p40
    %p43 = scmp.ne.s32.totalorder %s26, %s42
    %p44 = scmp.eq.s32.totalorder %s18, 0
    %p45 = por %p43, %p44
    %s46 = ssub.s32 %s12, %s19
    %p47 = scmp.eq.s32.totalorder %s46, 0
    %s49 = sadd.s32 %s48, 1
    %s50 = scalar_select %p47, %s48, %s49
    %p53 = pneg %p47
    %p54 = scmp.eq.s32.totalorder %s12, 1
    %p55 = por %p53, %p54
    %p56 = scmp.ne.s32.totalorder %s48, %s51
    %p57 = scmp.eq.s32.totalorder %s12, 0
    %p58 = por %p56, %p57
    %p59 = scmp.ne.s32.totalorder %s48, %s51
    %p60 = scmp.eq.s32.totalorder %s17, 1
    %p61 = por %p59, %p60
    %p62 = scmp.ne.s32.totalorder %s51, %s52
    %p63 = scmp.eq.s32.totalorder %s17, 0
    %p64 = por %p62, %p63
    %p65 = scmp.ne.s32.totalorder %s51, %s52
    %p66 = scmp.eq.s32.totalorder %s18, 1
    %p67 = por %p65, %p66
    %p69 = scmp.ne.s32.totalorder %s52, %s68
    %p70 = scmp.eq.s32.totalorder %s18, 0
    %p71 = por %p69, %p70
    %s72 = ssub.s32 %s12, %s19
    %p73 = scmp.eq.s32.totalorder %s72, 0
    %s75 = sadd.s32 %s74, 1
    %s76 = scalar_select %p73, %s74, %s75
    %p79 = pneg %p73
    %p80 = scmp.eq.s32.totalorder %s12, 1
    %p81 = por %p79, %p80
    %p82 = scmp.ne.s32.totalorder %s74, %s77
    %p83 = scmp.eq.s32.totalorder %s12, 0
    %p84 = por %p82, %p83
    %p85 = scmp.ne.s32.totalorder %s74, %s77
    %p86 = scmp.eq.s32.totalorder %s17, 1
    %p87 = por %p85, %p86
    %p88 = scmp.ne.s32.totalorder %s77, %s78
    %p89 = scmp.eq.s32.totalorder %s17, 0
    %p90 = por %p88, %p89
    %p91 = scmp.ne.s32.totalorder %s77, %s78
    %p92 = scmp.eq.s32.totalorder %s18, 1
    %p93 = por %p91, %p92
    %p95 = scmp.ne.s32.totalorder %s78, %s94
    %p96 = scmp.eq.s32.totalorder %s18, 0
    %p97 = por %p95, %p96
    %s99 = sadd.s32 %s98, 1
    %p102 = scmp.eq.s32.totalorder %s12, 1
    %p103 = scmp.ne.s32.totalorder %s98, %s100
    %p104 = scmp.eq.s32.totalorder %s12, 0
    %p105 = por %p103, %p104
    %p106 = scmp.ne.s32.totalorder %s98, %s100
    %p107 = scmp.eq.s32.totalorder %s17, 1
    %p108 = por %p106, %p107
    %p109 = scmp.ne.s32.totalorder %s100, %s101
    %p110 = scmp.eq.s32.totalorder %s17, 0
    %p111 = por %p109, %p110
    %p112 = scmp.ne.s32.totalorder %s100, %s101
    %p113 = scmp.eq.s32.totalorder %s18, 1
    %p114 = por %p112, %p113
    %p116 = scmp.ne.s32.totalorder %s101, %s115
    %p117 = scmp.eq.s32.totalorder %s18, 0
    %p118 = por %p116, %p117
    %s119 = ssub.s32 %s12, %s19
    %p120 = scmp.eq.s32.totalorder %s119, 0
    %s122 = sadd.s32 %s121, 1
    %s123 = scalar_select %p120, %s121, %s122
    %p126 = pneg %p120
    %p127 = scmp.eq.s32.totalorder %s12, 1
    %p128 = por %p126, %p127
    %p129 = scmp.ne.s32.totalorder %s121, %s124
    %p130 = scmp.eq.s32.totalorder %s12, 0
    %p131 = por %p129, %p130
    %p132 = scmp.ne.s32.totalorder %s121, %s124
    %p133 = scmp.eq.s32.totalorder %s17, 1
    %p134 = por %p132, %p133
    %p135 = scmp.ne.s32.totalorder %s124, %s125
    %p136 = scmp.eq.s32.totalorder %s17, 0
    %p137 = por %p135, %p136
    %p138 = scmp.ne.s32.totalorder %s124, %s125
    %p139 = scmp.eq.s32.totalorder %s18, 1
    %p140 = por %p138, %p139
    %p142 = scmp.ne.s32.totalorder %s125, %s141
    %p143 = scmp.eq.s32.totalorder %s18, 0
    %p144 = por %p142, %p143
    %s145 = ssub.s32 %s12, %s19
    %p146 = scmp.eq.s32.totalorder %s145, 0
    %s148 = sadd.s32 %s147, 1
    %s149 = scalar_select %p146, %s147, %s148
    %p152 = pneg %p146
    %p153 = scmp.eq.s32.totalorder %s12, 1
    %p154 = por %p152, %p153
    %p155 = scmp.ne.s32.totalorder %s147, %s150
    %p156 = scmp.eq.s32.totalorder %s12, 0
    %p157 = por %p155, %p156
    %p158 = scmp.ne.s32.totalorder %s147, %s150
    %p159 = scmp.eq.s32.totalorder %s17, 1
    %p160 = por %p158, %p159
    %p161 = scmp.ne.s32.totalorder %s150, %s151
    %p162 = scmp.eq.s32.totalorder %s17, 0
    %p163 = por %p161, %p162
    %p164 = scmp.ne.s32.totalorder %s150, %s151
    %p165 = scmp.eq.s32.totalorder %s18, 1
    %p166 = por %p164, %p165
    %p168 = scmp.ne.s32.totalorder %s151, %s167
    %p169 = scmp.eq.s32.totalorder %s18, 0
    %p170 = por %p168, %p169
    %s171 = ssub.s32 %s12, %s19
    %p172 = scmp.eq.s32.totalorder %s171, 0
    %s174 = sadd.s32 %s173, 1
    %s175 = scalar_select %p172, %s173, %s174
    %p178 = pneg %p172
    %p179 = scmp.eq.s32.totalorder %s12, 1
    %p180 = por %p178, %p179
    %p181 = scmp.ne.s32.totalorder %s173, %s176
    %p182 = scmp.eq.s32.totalorder %s12, 0
    %p183 = por %p181, %p182
    %p184 = scmp.ne.s32.totalorder %s173, %s176
    %p185 = scmp.eq.s32.totalorder %s17, 1
    %p186 = por %p184, %p185
    %p187 = scmp.ne.s32.totalorder %s176, %s177
    %p188 = scmp.eq.s32.totalorder %s17, 0
    %p189 = por %p187, %p188
    %p190 = scmp.ne.s32.totalorder %s176, %s177
    %p191 = scmp.eq.s32.totalorder %s18, 1
    %p192 = por %p190, %p191
    %p194 = scmp.ne.s32.totalorder %s177, %s193
    %p195 = scmp.eq.s32.totalorder %s18, 0
    %p196 = por %p194, %p195
    %p197 = scmp.le.s32.totalorder 1, %s12
    %p198 = scmp.lt.s32.totalorder %s12, 3
    %p199 = pnand %p197, %p198
    %p200 = pneg %p199
    // Predicated region
    $region9: #{competition_forward.15} parent=5 // pred_check
      _
    $region10: #{competition_forward.15} parent=5 // pred_check_branch
      %202 = sbr.rel (%p199) target = $region12
    $region11: #{competition_forward.15} parent=5 // pred_region
      %s203 = ssub.s32 %s12, 1
      // Predicated region
      $region13: #{competition_forward.15} parent=11 // pred_check
        %p204 = pneg %p111
      $region14: #{competition_forward.15} parent=11 // pred_check_branch
        %206 = sbr.rel (%p204) target = $region16
      $region15: #{competition_forward.15} parent=11 // pred_region
        _
      $region16: #{competition_forward.15} parent=11 // pred_fallthru
        _
    $region12: #{competition_forward.15} parent=5 // pred_fallthru
      _
    %p207 = scmp.lt.s32.totalorder %s12, 2
    // Predicated region
    $region17: #{competition_forward.15} parent=5 // pred_check
      %p208 = pneg %p207
    $region18: #{competition_forward.15} parent=5 // pred_check_branch
      %210 = sbr.rel (%p208) target = $region20
    $region19: #{competition_forward.15} parent=5 // pred_region
      // Predicated region
      $region21: #{competition_forward.15} parent=19 // pred_check
        %p211 = pneg %p32
      $region22: #{competition_forward.15} parent=19 // pred_check_branch
        %213 = sbr.rel (%p211) target = $region24
      $region23: #{competition_forward.15} parent=19 // pred_region
        %p214 = scmp.lt.s32.totalorder %s12, 1
        %s215 = scalar_select %p214, %s12, 1
        %s216 = smul.addr %s215, 2
        %s217 = smul.addr %s216, 8
        %s218 = scalar_lea.vmem %s0, %s217
      $region24: #{competition_forward.15} parent=19 // pred_fallthru
        _
      // Predicated region
      $region25: #{competition_forward.15} parent=19 // pred_check
        %p219 = pneg %p58
      $region26: #{competition_forward.15} parent=19 // pred_check_branch
        %221 = sbr.rel (%p219) target = $region28
      $region27: #{competition_forward.15} parent=19 // pred_region
        %p222 = scmp.lt.s32.totalorder %s12, 1
        %s223 = scalar_select %p222, %s12, 1
        %s224 = smul.addr %s223, 2
        %s225 = scalar_lea.vmem %s1, %s224
      $region28: #{competition_forward.15} parent=19 // pred_fallthru
        _
      // Predicated region
      $region29: #{competition_forward.15} parent=19 // pred_check
        %p226 = pneg %p84
      $region30: #{competition_forward.15} parent=19 // pred_check_branch
        %228 = sbr.rel (%p226) target = $region32
      $region31: #{competition_forward.15} parent=19 // pred_region
        %p229 = scmp.lt.s32.totalorder %s12, 1
        %s230 = scalar_select %p229, %s12, 1
        %s231 = smul.addr %s230, 32
        %s232 = smul.addr %s231, 8
        %s233 = scalar_lea.vmem %s2, %s232
      $region32: #{competition_forward.15} parent=19 // pred_fallthru
        _
      // Predicated region
      $region33: #{competition_forward.15} parent=19 // pred_check
        %p234 = pneg %p131
      $region34: #{competition_forward.15} parent=19 // pred_check_branch
        %236 = sbr.rel (%p234) target = $region36
      $region35: #{competition_forward.15} parent=19 // pred_region
        %p237 = scmp.lt.s32.totalorder %s12, 1
        %s238 = scalar_select %p237, %s12, 1
        %s239 = smul.addr %s238, 2
        %s240 = smul.addr %s239, 8
        %s241 = scalar_lea.vmem %s4, %s240
      $region36: #{competition_forward.15} parent=19 // pred_fallthru
        _
      // Predicated region
      $region37: #{competition_forward.15} parent=19 // pred_check
        %p242 = pneg %p157
      $region38: #{competition_forward.15} parent=19 // pred_check_branch
        %244 = sbr.rel (%p242) target = $region40
      $region39: #{competition_forward.15} parent=19 // pred_region
        %p245 = scmp.lt.s32.totalorder %s12, 1
        %s246 = scalar_select %p245, %s12, 1
        %s247 = smul.addr %s246, 2
        %s248 = smul.addr %s247, 8
        %s249 = scalar_lea.vmem %s5, %s248
      $region40: #{competition_forward.15} parent=19 // pred_fallthru
        _
    $region20: #{competition_forward.15} parent=5 // pred_fallthru
      _
    %p250 = scmp.le.s32.totalorder 1, %s12
    %p251 = scmp.lt.s32.totalorder %s12, 3
    %p252 = pnand %p250, %p251
    %p253 = pneg %p252
    // Predicated region
    $region41: #{competition_forward.15} parent=5 // pred_check
      _
    $region42: #{competition_forward.15} parent=5 // pred_check_branch
      %255 = sbr.rel (%p252) target = $region44
    $region43: #{competition_forward.15} parent=5 // pred_region
      %s256 = ssub.s32 %s12, 1
      %p257 = scmp.lt.s32.totalorder %s17, 1
      %s258 = scalar_select %p257, %s17, 1
      %s259 = smul.addr %s258, 2
      %s260 = smul.addr %s259, 8
      %s261 = scalar_lea.vmem %s0, %s260
      %p262 = pneg %p38
      %p263 = pneg %p35
      %p264 = scmp.lt.s32.totalorder %s17, 1
      %s265 = scalar_select %p264, %s17, 1
      %s266 = smul.addr %s265, 2
      %s267 = scalar_lea.vmem %s1, %s266
      %p268 = pneg %p64
      %p269 = pneg %p61
      %p270 = scmp.lt.s32.totalorder %s17, 1
      %s271 = scalar_select %p270, %s17, 1
      %s272 = smul.addr %s271, 32
      %s273 = smul.addr %s272, 8
      %s274 = scalar_lea.vmem %s2, %s273
      %p275 = pneg %p90
      %p276 = pneg %p87
      %p277 = pneg %p111
      %p278 = pneg %p108
      %p279 = scmp.lt.s32.totalorder %s17, 1
      %s280 = scalar_select %p279, %s17, 1
      %s281 = smul.addr %s280, 2
      %s282 = smul.addr %s281, 8
      %s283 = scalar_lea.vmem %s4, %s282
      %p284 = pneg %p137
      %p285 = pneg %p134
      %p286 = scmp.lt.s32.totalorder %s17, 1
      %s287 = scalar_select %p286, %s17, 1
      %s288 = smul.addr %s287, 2
      %s289 = smul.addr %s288, 8
      %s290 = scalar_lea.vmem %s5, %s289
      %p291 = pneg %p163
      %p292 = pneg %p160
      %p293 = pneg %p189
      %p294 = pneg %p186
      %p295 = scmp.lt.s32.totalorder %s17, 1
      %s296 = scalar_select %p295, %s17, 1
      %s297 = smul.addr %s296, 2
      %s298 = smul.addr %s297, 8
      %s299 = scalar_lea.vmem %s6, %s298
      %p300 = scmp.lt.s32.totalorder %s17, 1
      %s301 = scalar_select %p300, %s17, 1
      %s302 = smul.addr %s301, 2
      %s303 = smul.addr %s302, 8
      %s304 = scalar_lea.vmem %s0, %s303
      %p305 = scmp.lt.s32.totalorder %s17, 1
      %s306 = scalar_select %p305, %s17, 1
      %s307 = smul.addr %s306, 2
      %s308 = scalar_lea.vmem %s1, %s307
      %p309 = scmp.lt.s32.totalorder %s17, 1
      %s310 = scalar_select %p309, %s17, 1
      %s311 = smul.addr %s310, 32
      %s312 = smul.addr %s311, 8
      %s313 = scalar_lea.vmem %s2, %s312
      %p314 = scmp.lt.s32.totalorder %s17, 1
      %s315 = scalar_select %p314, %s17, 1
      %s316 = smul.addr %s315, 2
      %s317 = smul.addr %s316, 8
      %s318 = scalar_lea.vmem %s4, %s317
      %p319 = scmp.lt.s32.totalorder %s17, 1
      %s320 = scalar_select %p319, %s17, 1
      %s321 = smul.addr %s320, 2
      %s322 = smul.addr %s321, 8
      %s323 = scalar_lea.vmem %s5, %s322
      %p324 = scmp.lt.s32.totalorder %s17, 1
      %s325 = scalar_select %p324, %s17, 1
      %s326 = smul.addr %s325, 2
      %s327 = smul.addr %s326, 8
      %s328 = scalar_lea.vmem %s6, %s327
      %v329 = vld [vmem:[%s304] sm:$0xff]
      %v330 = vld [vmem:[%s304 + $0x8] sm:$0xff]
      %v331 = vld [vmem:[%s3] ss:$2 sm:$0x3]
      %s332 = scalar_lea.vmem %s3, 1
      %v333 = vld [vmem:[%s332] ss:$2 sm:$0x3]
      %v335 = vperm.slane %v331, 0
      %v336 = vperm.slane %v331, 1
      %340 = vset.pattern.permute.xlu0 0
      %341 = vperm.xlu0 %340, %v329
      %v342 = vpop.permute.xlu0 %341
      %345 = vset.pattern.permute.xlu0 0
      %346 = vperm.xlu0 %345, %v330
      %v347 = vpop.permute.xlu0 %346
      %v349 = vsub.f32 %v335, %v342
      %v350 = vsub.f32 %v336, %v342
      %v351 = vsub.f32 %v335, %v347
      %v352 = vsub.f32 %v336, %v347
      %v354 = vperm.slane %v333, 0
      %v355 = vperm.slane %v333, 1
      %358 = vset.pattern.permute.xlu0 1
      %359 = vperm.xlu0 %358, %v329
      %v360 = vpop.permute.xlu0 %359
      %362 = vset.pattern.permute.xlu0 1
      %363 = vperm.xlu0 %362, %v330
      %v364 = vpop.permute.xlu0 %363
      %v366 = vsub.f32 %v354, %v360
      %v367 = vsub.f32 %v355, %v360
      %v368 = vsub.f32 %v354, %v364
      %v369 = vsub.f32 %v355, %v364
      %v370 = vmul.f32 %v349, %v349
      %v371 = vmul.f32 %v350, %v350
      %v372 = vmul.f32 %v351, %v351
      %v373 = vmul.f32 %v352, %v352
      %v374 = vmul.f32 %v366, %v366
      %v375 = vmul.f32 %v367, %v367
      %v376 = vmul.f32 %v368, %v368
      %v377 = vmul.f32 %v369, %v369
      %v378 = vadd.f32 %v370, %v374
      %v379 = vadd.f32 %v371, %v375
      %v380 = vadd.f32 %v372, %v376
      %v381 = vadd.f32 %v373, %v377
      %v382 = vadd.f32 %v378, 1e-08
      %v383 = vadd.f32 %v379, 1e-08
      %v384 = vadd.f32 %v380, 1e-08
      %v385 = vadd.f32 %v381, 1e-08
      %v386 = vrsqrt.pop %v382
      %v387 = vmul.f32 %v386, %v382
      %v388 = vmul.f32 %v387, %v386
      %v389 = vmul.f32 0.5, %v388
      %v390 = vsub.f32 1.5, %v389
      %v391 = vmul.f32 %v386, %v390
      %v392 = vmul.f32 %v382, %v391
      %vm393 = vcmp.eq.f32.partialorder %v382, inf
      %v394 = vsel %vm393, %v382, %v392
      %vm395 = vcmp.eq.f32.partialorder %v382, 0.0
      %v396 = vand.u32 %v382, 2147483648
      %v397 = vsel %vm395, %v396, %v394
      %v398 = vrsqrt.pop %v383
      %v399 = vmul.f32 %v398, %v383
      %v400 = vmul.f32 %v399, %v398
      %v401 = vmul.f32 0.5, %v400
      %v402 = vsub.f32 1.5, %v401
      %v403 = vmul.f32 %v398, %v402
      %v404 = vmul.f32 %v383, %v403
      %vm405 = vcmp.eq.f32.partialorder %v383, inf
      %v406 = vsel %vm405, %v383, %v404
      %vm407 = vcmp.eq.f32.partialorder %v383, 0.0
      %v408 = vand.u32 %v383, 2147483648
      %v409 = vsel %vm407, %v408, %v406
      %v410 = vrsqrt.pop %v384
      %v411 = vmul.f32 %v410, %v384
      %v412 = vmul.f32 %v411, %v410
      %v413 = vmul.f32 0.5, %v412
      %v414 = vsub.f32 1.5, %v413
      %v415 = vmul.f32 %v410, %v414
      %v416 = vmul.f32 %v384, %v415
      %vm417 = vcmp.eq.f32.partialorder %v384, inf
      %v418 = vsel %vm417, %v384, %v416
      %vm419 = vcmp.eq.f32.partialorder %v384, 0.0
      %v420 = vand.u32 %v384, 2147483648
      %v421 = vsel %vm419, %v420, %v418
      %v422 = vrsqrt.pop %v385
      %v423 = vmul.f32 %v422, %v385
      %v424 = vmul.f32 %v423, %v422
      %v425 = vmul.f32 0.5, %v424
      %v426 = vsub.f32 1.5, %v425
      %v427 = vmul.f32 %v422, %v426
      %v428 = vmul.f32 %v385, %v427
      %vm429 = vcmp.eq.f32.partialorder %v385, inf
      %v430 = vsel %vm429, %v385, %v428
      %vm431 = vcmp.eq.f32.partialorder %v385, 0.0
      %v432 = vand.u32 %v385, 2147483648
      %v433 = vsel %vm431, %v432, %v430
      %v434 = vadd.f32 %v397, 1e-08
      %v435 = vadd.f32 %v409, 1e-08
      %v436 = vadd.f32 %v421, 1e-08
      %v437 = vadd.f32 %v433, 1e-08
      %v438 = vrcp.pop %v434
      %v439 = vrcp.pop %v435
      %v440 = vrcp.pop %v436
      %v441 = vrcp.pop %v437
      %v442 = vmul.f32 %v438, 2.828427
      %v443 = vmul.f32 %v439, 2.828427
      %v444 = vmul.f32 %v440, 2.828427
      %v445 = vmul.f32 %v441, 2.828427
      %v446 = vmul.f32 %v442, 10.0
      %v447 = vmul.f32 %v443, 10.0
      %v448 = vmul.f32 %v444, 10.0
      %v449 = vmul.f32 %v445, 10.0
      %v450 = vld [vmem:[%s308] sm:$0x3]
      %v452 = vperm.slane %v450, 0
      %v453 = vperm.slane %v450, 1
      %v456 = vmul.f32 %v446, %v452
      %v457 = vmul.f32 %v447, %v453
      %v458 = vmul.f32 %v448, %v452
      %v459 = vmul.f32 %v449, %v453
      %v460 = vmax.f32 %v456, %v457
      %461 = vmax.xlane.f32.xlu0 %v460
      %v462 = vpop.xlane.xlu0 %461
      %v463 = vmax.f32 %v458, %v459
      %464 = vmax.xlane.f32.xlu0 %v463
      %v465 = vpop.xlane.xlu0 %464
      %v466 = vsub.f32 %v456, %v462
      %v467 = vsub.f32 %v457, %v462
      %v468 = vsub.f32 %v458, %v465
      %v469 = vsub.f32 %v459, %v465
      %v470 = vmul.f32 %v466, 1.442695
      %v471 = vpow.pop %v470
      %v472 = vmul.f32 %v467, 1.442695
      %v473 = vpow.pop %v472
      %v474 = vmul.f32 %v468, 1.442695
      %v475 = vpow.pop %v474
      %v476 = vmul.f32 %v469, 1.442695
      %v477 = vpow.pop %v476
      %v478 = vadd.f32 %v471, %v473
      %479 = vadd.xlane.f32.xlu0 %v478
      %v480 = vpop.xlane.xlu0 %479
      %v481 = vadd.f32 %v475, %v477
      %482 = vadd.xlane.f32.xlu0 %v481
      %v483 = vpop.xlane.xlu0 %482
      %v484 = vrcp.pop %v480
      %v485 = vrcp.pop %v483
      %v486 = vmul.f32 %v471, %v484
      %v487 = vmul.f32 %v473, %v484
      %v488 = vmul.f32 %v475, %v485
      %v489 = vmul.f32 %v477, %v485
      %v490 = vpack.c.bf16 %v488, %v486
      %v491 = vpack.c.bf16 %v489, %v487
      %v492 = vld [vmem:[%s313] sm:$0xff]
      %v493 = vld [vmem:[%s313 + $0x8] sm:$0xff]
      %v494 = vld [vmem:[%s313 + $0x10] sm:$0xff]
      %v495 = vld [vmem:[%s313 + $0x18] sm:$0xff]
      %v496 = vld [vmem:[%s313 + $0x20] sm:$0xff]
      %v497 = vld [vmem:[%s313 + $0x28] sm:$0xff]
      %v498 = vld [vmem:[%s313 + $0x30] sm:$0xff]
      %v499 = vld [vmem:[%s313 + $0x38] sm:$0xff]
      %v500 = vld [vmem:[%s313 + $0x40] sm:$0xff]
      %v501 = vld [vmem:[%s313 + $0x48] sm:$0xff]
      %v502 = vld [vmem:[%s313 + $0x50] sm:$0xff]
      %v503 = vld [vmem:[%s313 + $0x58] sm:$0xff]
      %v504 = vld [vmem:[%s313 + $0x60] sm:$0xff]
      %v505 = vld [vmem:[%s313 + $0x68] sm:$0xff]
      %v506 = vld [vmem:[%s313 + $0x70] sm:$0xff]
      %v507 = vld [vmem:[%s313 + $0x78] sm:$0xff]
      %v508 = vld [vmem:[%s313 + $0x80] sm:$0xff]
      %v509 = vld [vmem:[%s313 + $0x88] sm:$0xff]
      %v510 = vld [vmem:[%s313 + $0x90] sm:$0xff]
      %v511 = vld [vmem:[%s313 + $0x98] sm:$0xff]
      %v512 = vld [vmem:[%s313 + $0xa0] sm:$0xff]
      %v513 = vld [vmem:[%s313 + $0xa8] sm:$0xff]
      %v514 = vld [vmem:[%s313 + $0xb0] sm:$0xff]
      %v515 = vld [vmem:[%s313 + $0xb8] sm:$0xff]
      %v516 = vld [vmem:[%s313 + $0xc0] sm:$0xff]
      %v517 = vld [vmem:[%s313 + $0xc8] sm:$0xff]
      %v518 = vld [vmem:[%s313 + $0xd0] sm:$0xff]
      %v519 = vld [vmem:[%s313 + $0xd8] sm:$0xff]
      %v520 = vld [vmem:[%s313 + $0xe0] sm:$0xff]
      %v521 = vld [vmem:[%s313 + $0xe8] sm:$0xff]
      %v522 = vld [vmem:[%s313 + $0xf0] sm:$0xff]
      %v523 = vld [vmem:[%s313 + $0xf8] sm:$0xff]
      %v524 = vpack.c.bf16 %v493, %v492
      %v525 = vpack.c.bf16 %v495, %v494
      %v526 = vpack.c.bf16 %v497, %v496
      %v527 = vpack.c.bf16 %v499, %v498
      %v528 = vpack.c.bf16 %v501, %v500
      %v529 = vpack.c.bf16 %v503, %v502
      %v530 = vpack.c.bf16 %v505, %v504
      %v531 = vpack.c.bf16 %v507, %v506
      %v532 = vpack.c.bf16 %v509, %v508
      %v533 = vpack.c.bf16 %v511, %v510
      %v534 = vpack.c.bf16 %v513, %v512
      %v535 = vpack.c.bf16 %v515, %v514
      %v536 = vpack.c.bf16 %v517, %v516
      %v537 = vpack.c.bf16 %v519, %v518
      %v538 = vpack.c.bf16 %v521, %v520
      %v539 = vpack.c.bf16 %v523, %v522
      %540 = vmatpush.bf16.msra.mxu0 %v531
      %541 = vmatpush.bf16.msra.mxu0 %v530
      %542 = vmatpush.bf16.msra.mxu0 %v529
      %543 = vmatpush.bf16.msra.mxu0 %v528
      %544 = vmatpush.bf16.msra.mxu0 %v527
      %545 = vmatpush.bf16.msra.mxu0 %v526
      %546 = vmatpush.bf16.msra.mxu0 %v525
      %547 = vmatpush.bf16.msra.mxu0 %v524
      %548 = vmatmul.bf16.gmra.mxu0 %v490
      %v549 = vpop.f32.mrf.mxu0
      %v550 = vadd.f32 0.0, %v549
      %v551 = vpop.f32.mrf.mxu0
      %v552 = vadd.f32 0.0, %v551
      %553 = vdwg.mxu0
      %554 = vmatpush.bf16.msra.mxu0 %v539
      %555 = vmatpush.bf16.msra.mxu0 %v538
      %556 = vmatpush.bf16.msra.mxu0 %v537
      %557 = vmatpush.bf16.msra.mxu0 %v536
      %558 = vmatpush.bf16.msra.mxu0 %v535
      %559 = vmatpush.bf16.msra.mxu0 %v534
      %560 = vmatpush.bf16.msra.mxu0 %v533
      %561 = vmatpush.bf16.msra.mxu0 %v532
      %562 = vmatmul.bf16.gmra.mxu0 %v491
      %v563 = vpop.f32.mrf.mxu0
      %v564 = vadd.f32 %v550, %v563
      %v565 = vpop.f32.mrf.mxu0
      %v566 = vadd.f32 %v552, %v565
      %567 = vdwg.mxu0
      %v568 = vmul.f32 %v564, %v564
      %v569 = vmul.f32 %v566, %v566
      %vm570 = vcmask 64512
      %v571 = vsel %vm570, %v568, 0.0
      %572 = vadd.xlane.f32.xlu0 %v571
      %v573 = vpop.xlane.xlu0 %572
      %v574 = vsel %vm570, %v569, 0.0
      %575 = vadd.xlane.f32.xlu0 %v574
      %v576 = vpop.xlane.xlu0 %575
      %v577 = vrsqrt.pop %v573
      %v578 = vmul.f32 %v577, %v573
      %v579 = vmul.f32 %v578, %v577
      %v580 = vmul.f32 0.5, %v579
      %v581 = vsub.f32 1.5, %v580
      %v582 = vmul.f32 %v577, %v581
      %v583 = vmul.f32 %v573, %v582
      %vm584 = vcmp.eq.f32.partialorder %v573, inf
      %v585 = vsel %vm584, %v573, %v583
      %vm586 = vcmp.eq.f32.partialorder %v573, 0.0
      %v587 = vand.u32 %v573, 2147483648
      %v588 = vsel %vm586, %v587, %v585
      %v589 = vrsqrt.pop %v576
      %v590 = vmul.f32 %v589, %v576
      %v591 = vmul.f32 %v590, %v589
      %v592 = vmul.f32 0.5, %v591
      %v593 = vsub.f32 1.5, %v592
      %v594 = vmul.f32 %v589, %v593
      %v595 = vmul.f32 %v576, %v594
      %vm596 = vcmp.eq.f32.partialorder %v576, inf
      %v597 = vsel %vm596, %v576, %v595
      %vm598 = vcmp.eq.f32.partialorder %v576, 0.0
      %v599 = vand.u32 %v576, 2147483648
      %v600 = vsel %vm598, %v599, %v597
      %v601 = vmax.f32 %v588, 1e-06
      %v602 = vmax.f32 %v600, 1e-06
      %v603 = vrcp.pop %v601
      %v604 = vmul.f32 %v601, %v603
      %v605 = vsub.f32 1.0, %v604
      %v606 = vmul.f32 %v603, %v605
      %v607 = vadd.f32 %v603, %v606
      %vm608 = vweird.f32 %v601
      %vm609 = vweird.f32 %v603
      %vm610 = vmor %vm608, %vm609
      %v611 = vsel %vm610, %v603, %v607
      %v612 = vand.u32 2147483647, %v601
      %vm613 = vcmp.eq.f32.partialorder %v612, 8.507059e+37
      %v614 = vand.u32 %v601, 2147483648
      %v615 = vor.u32 1.1754944e-38, %v614
      %v616 = vsel %vm613, %v615, %v611
      %v617 = vmul.f32 %v564, %v616
      %v618 = vrcp.pop %v602
      %v619 = vmul.f32 %v602, %v618
      %v620 = vsub.f32 1.0, %v619
      %v621 = vmul.f32 %v618, %v620
      %v622 = vadd.f32 %v618, %v621
      %vm623 = vweird.f32 %v602
      %vm624 = vweird.f32 %v618
      %vm625 = vmor %vm623, %vm624
      %v626 = vsel %vm625, %v618, %v622
      %v627 = vand.u32 2147483647, %v602
      %vm628 = vcmp.eq.f32.partialorder %v627, 8.507059e+37
      %v629 = vand.u32 %v602, 2147483648
      %v630 = vor.u32 1.1754944e-38, %v629
      %v631 = vsel %vm628, %v630, %v626
      %v632 = vmul.f32 %v566, %v631
      %v633 = vld [vmem:[%s323] sm:$0xff]
      %v634 = vld [vmem:[%s323 + $0x8] sm:$0xff]
      %vm635 = vcmp.gt.f32.partialorder %v633, 0.5
      %vm636 = vcmp.gt.f32.partialorder %v634, 0.5
      %v637 = vsel %vm635, 1, 0
      %v638 = vsel %vm636, 1, 0
      %v639 = vcvt.s32.f32 %v637
      %v640 = vcvt.s32.f32 %v638
      %v641 = vld [vmem:[%s318] sm:$0xff]
      %v642 = vld [vmem:[%s318 + $0x8] sm:$0xff]
      %644 = vset.pattern.permute.xlu0 0
      %645 = vperm.xlu0 %644, %v639
      %v646 = vpop.permute.xlu0 %645
      %649 = vset.pattern.permute.xlu0 0
      %650 = vperm.xlu0 %649, %v640
      %v651 = vpop.permute.xlu0 %650
      %v653 = vmul.f32 %v646, %v641
      %v654 = vmul.f32 %v651, %v642
      %v655 = vsub.f32 1.0, %v639
      %v656 = vsub.f32 1.0, %v640
      %658 = vset.pattern.permute.xlu0 0
      %659 = vperm.xlu0 %658, %v655
      %v660 = vpop.permute.xlu0 %659
      %663 = vset.pattern.permute.xlu0 0
      %664 = vperm.xlu0 %663, %v656
      %v665 = vpop.permute.xlu0 %664
      %v667 = vmul.f32 %v660, %v617
      %v668 = vmul.f32 %v665, %v632
      %v669 = vadd.f32 %v653, %v667
      %v670 = vadd.f32 %v654, %v668
      %v671 = vmul.f32 %v669, %v669
      %v672 = vmul.f32 %v670, %v670
      %v673 = vsel %vm570, %v671, 0.0
      %674 = vadd.xlane.f32.xlu0 %v673
      %v675 = vpop.xlane.xlu0 %674
      %v676 = vsel %vm570, %v672, 0.0
      %677 = vadd.xlane.f32.xlu0 %v676
      %v678 = vpop.xlane.xlu0 %677
      %v679 = vrsqrt.pop %v675
      %v680 = vmul.f32 %v679, %v675
      %v681 = vmul.f32 %v680, %v679
      %v682 = vmul.f32 0.5, %v681
      %v683 = vsub.f32 1.5, %v682
      %v684 = vmul.f32 %v679, %v683
      %v685 = vmul.f32 %v675, %v684
      %vm686 = vcmp.eq.f32.partialorder %v675, inf
      %v687 = vsel %vm686, %v675, %v685
      %vm688 = vcmp.eq.f32.partialorder %v675, 0.0
      %v689 = vand.u32 %v675, 2147483648
      %v690 = vsel %vm688, %v689, %v687
      %v691 = vrsqrt.pop %v678
      %v692 = vmul.f32 %v691, %v678
      %v693 = vmul.f32 %v692, %v691
      %v694 = vmul.f32 0.5, %v693
      %v695 = vsub.f32 1.5, %v694
      %v696 = vmul.f32 %v691, %v695
      %v697 = vmul.f32 %v678, %v696
      %vm698 = vcmp.eq.f32.partialorder %v678, inf
      %v699 = vsel %vm698, %v678, %v697
      %vm700 = vcmp.eq.f32.partialorder %v678, 0.0
      %v701 = vand.u32 %v678, 2147483648
      %v702 = vsel %vm700, %v701, %v699
      %v703 = vmax.f32 %v690, 1e-06
      %v704 = vmax.f32 %v702, 1e-06
      %v705 = vrcp.pop %v703
      %v706 = vmul.f32 %v703, %v705
      %v707 = vsub.f32 1.0, %v706
      %v708 = vmul.f32 %v705, %v707
      %v709 = vadd.f32 %v705, %v708
      %vm710 = vweird.f32 %v703
      %vm711 = vweird.f32 %v705
      %vm712 = vmor %vm710, %vm711
      %v713 = vsel %vm712, %v705, %v709
      %v714 = vand.u32 2147483647, %v703
      %vm715 = vcmp.eq.f32.partialorder %v714, 8.507059e+37
      %v716 = vand.u32 %v703, 2147483648
      %v717 = vor.u32 1.1754944e-38, %v716
      %v718 = vsel %vm715, %v717, %v713
      %v719 = vmul.f32 %v669, %v718
      %v720 = vrcp.pop %v704
      %v721 = vmul.f32 %v704, %v720
      %v722 = vsub.f32 1.0, %v721
      %v723 = vmul.f32 %v720, %v722
      %v724 = vadd.f32 %v720, %v723
      %vm725 = vweird.f32 %v704
      %vm726 = vweird.f32 %v720
      %vm727 = vmor %vm725, %vm726
      %v728 = vsel %vm727, %v720, %v724
      %v729 = vand.u32 2147483647, %v704
      %vm730 = vcmp.eq.f32.partialorder %v729, 8.507059e+37
      %v731 = vand.u32 %v704, 2147483648
      %v732 = vor.u32 1.1754944e-38, %v731
      %v733 = vsel %vm730, %v732, %v728
      %v734 = vmul.f32 %v670, %v733
      %735 = vst.msk [vmem:[%s328] sm:$0xff] %vm570, %v719
      %736 = vst.msk [vmem:[%s328 + $0x8] sm:$0xff] %vm570, %v734
      %p737 = scmp.lt.s32.totalorder %s17, 1
      %s738 = scalar_select %p737, %s17, 1
      %s739 = smul.addr %s738, 2
      %s740 = smul.addr %s739, 8
      %s741 = scalar_lea.vmem %s6, %s740
      // Predicated region
      $region45: #{competition_forward.15} parent=43 // pred_check
        %p742 = pneg %p186
      $region46: #{competition_forward.15} parent=43 // pred_check_branch
        %744 = sbr.rel (%p742) target = $region48
      $region47: #{competition_forward.15} parent=43 // pred_region
        _
      $region48: #{competition_forward.15} parent=43 // pred_fallthru
        _
    $region44: #{competition_forward.15} parent=5 // pred_fallthru
      _
    %p745 = scmp.le.s32.totalorder 2, %s12
    // Predicated region
    $region49: #{competition_forward.15} parent=5 // pred_check
      %p746 = pneg %p745
    $region50: #{competition_forward.15} parent=5 // pred_check_branch
      %748 = sbr.rel (%p746) target = $region52
    $region51: #{competition_forward.15} parent=5 // pred_region
      %s749 = ssub.s32 %s12, 2
      // Predicated region
      $region53: #{competition_forward.15} parent=51 // pred_check
        %p750 = pneg %p192
      $region54: #{competition_forward.15} parent=51 // pred_check_branch
        %752 = sbr.rel (%p750) target = $region56
      $region55: #{competition_forward.15} parent=51 // pred_region
        %p753 = scmp.lt.s32.totalorder %s18, 1
        %s754 = scalar_select %p753, %s18, 1
        %s755 = smul.addr %s754, 2
        %s756 = smul.addr %s755, 8
        %s757 = scalar_lea.vmem %s6, %s756
      $region56: #{competition_forward.15} parent=51 // pred_fallthru
        _
    $region52: #{competition_forward.15} parent=5 // pred_fallthru
      _
  $region6: #{competition_forward.15} parent=0 // loop_footer
    %s16 = sadd.s32 1, %s12
  $region7: #{competition_forward.15} parent=0 // loop_footer_branch
    %11 = sbr.rel target = $region3
  $region8: #{competition_forward.15} parent=0 // loop_exit
    _

// kernel: competition_forward.22
$region0: #{competition_forward.22}
  #allocation0 [shape = 'u32[]', space=smem, size = 0x4, offset = 0x4, fixed_abs, tag = 'smem constant byte address 0x4 - core index']
  #allocation1 [shape = 'u32[72,128]{1,0:T(1,128)}', space=vmem, size = 0x9000, scoped, tag = 'internal scratch']
  %s0 = inlined_call_operand.vmem [shape: f32[2,256,8], index: 0, kind: input, shape index: {}]
  %s1 = inlined_call_operand.vmem [shape: f32[2,16,8], index: 1, kind: input, shape index: {}]
  %s2 = inlined_call_operand.vmem [shape: f32[2,16,1], index: 2, kind: input, shape index: {}]
  %s3 = inlined_call_operand.vmem [shape: f32[2,16,1], index: 3, kind: input, shape index: {}]
  %s4 = inlined_call_operand.vmem [shape: f32[2,16,1], index: 4, kind: input, shape index: {}]
  %s5 = inlined_call_operand.vmem [shape: f32[2,16,8], index: 5, kind: input, shape index: {}]
  %s6 = inlined_call_operand.vmem [shape: f32[2,16,256], index: 6, kind: output, shape index: {0}]
  %s7 = inlined_call_operand.vmem [shape: f32[2,16,1], index: 7, kind: output, shape index: {1}]
  %s8 = inlined_call_operand.vmem [shape: f32[2,1,256], index: 8, kind: output, shape index: {2}]
  %s9 = inlined_call_operand.hbm [shape: f32[2,16,256], index: 9, kind: output, shape index: {3}]
  %s10 = inlined_call_operand.vmem [shape: f32[2,16,8], index: 10, kind: output, shape index: {4}]
  %11 = xla_tuple %s6, %s7, %s8, %s9, %s10
  %s12 = sld [smem:[#allocation0]]
  $region89: #{competition_forward.22} parent=0
    _
  %s14 = ssub.s32 1, %s12
  %s15 = scalar_select 0, %s14, %s12
  $region1: #{competition_forward.22} parent=0
    #allocation2 [shape = 'u8[32768]{0}', space=vmem, size = 0x8000, scoped, tag = 'output window, operand 3']
    #allocation3 [shape = 's32[2]{0}', space=sflag, size = 0x8, scoped, tag = 'scoped memory for competition_forward.22']
    %16 = vsyncpa [#allocation3], 0
    %s17 = scalar_lea.sflag [#allocation3], 1
    %18 = vsyncpa %s17, 0
    loop: start=0, step=1, limit=4
    $region2: #{competition_forward.22} parent=1 // loop_pre_header
      _
    $region3: #{competition_forward.22} parent=1 // loop_header
      %s20 = sphi 0, %s24
      %p21 = scmp.ge.s32.totalorder %s20, 4
      %s30 = sphi 0, %s32
      %s33 = sphi 0, %s30
      %s34 = sphi 0, %s33
      %s50 = sphi 0, %s34
      %s56 = sphi 0, %s58
      %s59 = sphi 0, %s56
      %s60 = sphi 0, %s59
      %s76 = sphi 0, %s60
      %s82 = sphi 0, %s84
      %s85 = sphi 0, %s82
      %s86 = sphi 0, %s85
      %s102 = sphi 0, %s86
      %s108 = sphi 0, %s110
      %s111 = sphi 0, %s108
      %s112 = sphi 0, %s111
      %s128 = sphi 0, %s112
      %s134 = sphi 0, %s136
      %s137 = sphi 0, %s134
      %s138 = sphi 0, %s137
      %s154 = sphi 0, %s138
      %s160 = sphi 0, %s162
      %s163 = sphi 0, %s160
      %s164 = sphi 0, %s163
      %s180 = sphi 0, %s164
      %s186 = sphi 0, %s188
      %s189 = sphi 0, %s186
      %s190 = sphi 0, %s189
      %s206 = sphi 0, %s190
      %s212 = sphi 0, %s214
      %s215 = sphi 0, %s212
      %s216 = sphi 0, %s215
      %s232 = sphi 0, %s216
      %s238 = sphi 0, %s240
      %s241 = sphi 0, %s238
      %s242 = sphi 0, %s241
      %s258 = sphi 0, %s242
      %s264 = sphi 0, %s266
      %s267 = sphi 0, %s264
      %s268 = sphi 0, %s267
      %s284 = sphi 0, %s268
      %s290 = sphi 0, %s292
      %s293 = sphi 0, %s290
      %s294 = sphi 0, %s293
      %s310 = sphi 0, %s294
    $region4: #{competition_forward.22} parent=1 // loop_header_branch
      %23 = sbr.rel (%p21) target = $region8
    $region5: #{competition_forward.22} parent=1 // loop_body
      %s25 = ssub.s32 %s20, 1
      %s26 = ssub.s32 %s20, 2
      %s27 = sadd.s32 %s20, 1
      %s28 = ssub.s32 %s20, %s27
      %p29 = scmp.eq.s32.totalorder %s28, 0
      %s31 = sadd.s32 %s30, 1
      %s32 = scalar_select %p29, %s30, %s31
      %p35 = pneg %p29
      %p36 = scmp.eq.s32.totalorder %s20, 1
      %p37 = por %p35, %p36
      %p38 = scmp.ne.s32.totalorder %s30, %s33
      %p39 = scmp.eq.s32.totalorder %s20, 0
      %p40 = por %p38, %p39
      %p41 = scmp.ne.s32.totalorder %s30, %s33
      %p42 = scmp.eq.s32.totalorder %s25, 1
      %p43 = por %p41, %p42
      %p44 = scmp.ne.s32.totalorder %s33, %s34
      %p45 = scmp.eq.s32.totalorder %s25, 0
      %p46 = por %p44, %p45
      %p47 = scmp.ne.s32.totalorder %s33, %s34
      %p48 = scmp.eq.s32.totalorder %s26, 1
      %p49 = por %p47, %p48
      %p51 = scmp.ne.s32.totalorder %s34, %s50
      %p52 = scmp.eq.s32.totalorder %s26, 0
      %p53 = por %p51, %p52
      %s54 = ssub.s32 %s20, %s27
      %p55 = scmp.eq.s32.totalorder %s54, 0
      %s57 = sadd.s32 %s56, 1
      %s58 = scalar_select %p55, %s56, %s57
      %p61 = pneg %p55
      %p62 = scmp.eq.s32.totalorder %s20, 1
      %p63 = por %p61, %p62
      %p64 = scmp.ne.s32.totalorder %s56, %s59
      %p65 = scmp.eq.s32.totalorder %s20, 0
      %p66 = por %p64, %p65
      %p67 = scmp.ne.s32.totalorder %s56, %s59
      %p68 = scmp.eq.s32.totalorder %s25, 1
      %p69 = por %p67, %p68
      %p70 = scmp.ne.s32.totalorder %s59, %s60
      %p71 = scmp.eq.s32.totalorder %s25, 0
      %p72 = por %p70, %p71
      %p73 = scmp.ne.s32.totalorder %s59, %s60
      %p74 = scmp.eq.s32.totalorder %s26, 1
      %p75 = por %p73, %p74
      %p77 = scmp.ne.s32.totalorder %s60, %s76
      %p78 = scmp.eq.s32.totalorder %s26, 0
      %p79 = por %p77, %p78
      %s80 = ssub.s32 %s20, %s27
      %p81 = scmp.eq.s32.totalorder %s80, 0
      %s83 = sadd.s32 %s82, 1
      %s84 = scalar_select %p81, %s82, %s83
      %p87 = pneg %p81
      %p88 = scmp.eq.s32.totalorder %s20, 1
      %p89 = por %p87, %p88
      %p90 = scmp.ne.s32.totalorder %s82, %s85
      %p91 = scmp.eq.s32.totalorder %s20, 0
      %p92 = por %p90, %p91
      %p93 = scmp.ne.s32.totalorder %s82, %s85
      %p94 = scmp.eq.s32.totalorder %s25, 1
      %p95 = por %p93, %p94
      %p96 = scmp.ne.s32.totalorder %s85, %s86
      %p97 = scmp.eq.s32.totalorder %s25, 0
      %p98 = por %p96, %p97
      %p99 = scmp.ne.s32.totalorder %s85, %s86
      %p100 = scmp.eq.s32.totalorder %s26, 1
      %p101 = por %p99, %p100
      %p103 = scmp.ne.s32.totalorder %s86, %s102
      %p104 = scmp.eq.s32.totalorder %s26, 0
      %p105 = por %p103, %p104
      %s106 = ssub.s32 %s20, %s27
      %p107 = scmp.eq.s32.totalorder %s106, 0
      %s109 = sadd.s32 %s108, 1
      %s110 = scalar_select %p107, %s108, %s109
      %p113 = pneg %p107
      %p114 = scmp.eq.s32.totalorder %s20, 1
      %p115 = por %p113, %p114
      %p116 = scmp.ne.s32.totalorder %s108, %s111
      %p117 = scmp.eq.s32.totalorder %s20, 0
      %p118 = por %p116, %p117
      %p119 = scmp.ne.s32.totalorder %s108, %s111
      %p120 = scmp.eq.s32.totalorder %s25, 1
      %p121 = por %p119, %p120
      %p122 = scmp.ne.s32.totalorder %s111, %s112
      %p123 = scmp.eq.s32.totalorder %s25, 0
      %p124 = por %p122, %p123
      %p125 = scmp.ne.s32.totalorder %s111, %s112
      %p126 = scmp.eq.s32.totalorder %s26, 1
      %p127 = por %p125, %p126
      %p129 = scmp.ne.s32.totalorder %s112, %s128
      %p130 = scmp.eq.s32.totalorder %s26, 0
      %p131 = por %p129, %p130
      %s132 = ssub.s32 %s20, %s27
      %p133 = scmp.eq.s32.totalorder %s132, 0
      %s135 = sadd.s32 %s134, 1
      %s136 = scalar_select %p133, %s134, %s135
      %p139 = pneg %p133
      %p140 = scmp.eq.s32.totalorder %s20, 1
      %p141 = por %p139, %p140
      %p142 = scmp.ne.s32.totalorder %s134, %s137
      %p143 = scmp.eq.s32.totalorder %s20, 0
      %p144 = por %p142, %p143
      %p145 = scmp.ne.s32.totalorder %s134, %s137
      %p146 = scmp.eq.s32.totalorder %s25, 1
      %p147 = por %p145, %p146
      %p148 = scmp.ne.s32.totalorder %s137, %s138
      %p149 = scmp.eq.s32.totalorder %s25, 0
      %p150 = por %p148, %p149
      %p151 = scmp.ne.s32.totalorder %s137, %s138
      %p152 = scmp.eq.s32.totalorder %s26, 1
      %p153 = por %p151, %p152
      %p155 = scmp.ne.s32.totalorder %s138, %s154
      %p156 = scmp.eq.s32.totalorder %s26, 0
      %p157 = por %p155, %p156
      %s158 = ssub.s32 %s20, %s27
      %p159 = scmp.eq.s32.totalorder %s158, 0
      %s161 = sadd.s32 %s160, 1
      %s162 = scalar_select %p159, %s160, %s161
      %p165 = pneg %p159
      %p166 = scmp.eq.s32.totalorder %s20, 1
      %p167 = por %p165, %p166
      %p168 = scmp.ne.s32.totalorder %s160, %s163
      %p169 = scmp.eq.s32.totalorder %s20, 0
      %p170 = por %p168, %p169
      %p171 = scmp.ne.s32.totalorder %s160, %s163
      %p172 = scmp.eq.s32.totalorder %s25, 1
      %p173 = por %p171, %p172
      %p174 = scmp.ne.s32.totalorder %s163, %s164
      %p175 = scmp.eq.s32.totalorder %s25, 0
      %p176 = por %p174, %p175
      %p177 = scmp.ne.s32.totalorder %s163, %s164
      %p178 = scmp.eq.s32.totalorder %s26, 1
      %p179 = por %p177, %p178
      %p181 = scmp.ne.s32.totalorder %s164, %s180
      %p182 = scmp.eq.s32.totalorder %s26, 0
      %p183 = por %p181, %p182
      %s184 = ssub.s32 %s20, %s27
      %p185 = scmp.eq.s32.totalorder %s184, 0
      %s187 = sadd.s32 %s186, 1
      %s188 = scalar_select %p185, %s186, %s187
      %p191 = pneg %p185
      %p192 = scmp.eq.s32.totalorder %s20, 1
      %p193 = por %p191, %p192
      %p194 = scmp.ne.s32.totalorder %s186, %s189
      %p195 = scmp.eq.s32.totalorder %s20, 0
      %p196 = por %p194, %p195
      %p197 = scmp.ne.s32.totalorder %s186, %s189
      %p198 = scmp.eq.s32.totalorder %s25, 1
      %p199 = por %p197, %p198
      %p200 = scmp.ne.s32.totalorder %s189, %s190
      %p201 = scmp.eq.s32.totalorder %s25, 0
      %p202 = por %p200, %p201
      %p203 = scmp.ne.s32.totalorder %s189, %s190
      %p204 = scmp.eq.s32.totalorder %s26, 1
      %p205 = por %p203, %p204
      %p207 = scmp.ne.s32.totalorder %s190, %s206
      %p208 = scmp.eq.s32.totalorder %s26, 0
      %p209 = por %p207, %p208
      %s210 = ssub.s32 %s20, %s27
      %p211 = scmp.eq.s32.totalorder %s210, 0
      %s213 = sadd.s32 %s212, 1
      %s214 = scalar_select %p211, %s212, %s213
      %p217 = pneg %p211
      %p218 = scmp.eq.s32.totalorder %s20, 1
      %p219 = por %p217, %p218
      %p220 = scmp.ne.s32.totalorder %s212, %s215
      %p221 = scmp.eq.s32.totalorder %s20, 0
      %p222 = por %p220, %p221
      %p223 = scmp.ne.s32.totalorder %s212, %s215
      %p224 = scmp.eq.s32.totalorder %s25, 1
      %p225 = por %p223, %p224
      %p226 = scmp.ne.s32.totalorder %s215, %s216
      %p227 = scmp.eq.s32.totalorder %s25, 0
      %p228 = por %p226, %p227
      %p229 = scmp.ne.s32.totalorder %s215, %s216
      %p230 = scmp.eq.s32.totalorder %s26, 1
      %p231 = por %p229, %p230
      %p233 = scmp.ne.s32.totalorder %s216, %s232
      %p234 = scmp.eq.s32.totalorder %s26, 0
      %p235 = por %p233, %p234
      %s236 = ssub.s32 %s20, %s27
      %p237 = scmp.eq.s32.totalorder %s236, 0
      %s239 = sadd.s32 %s238, 1
      %s240 = scalar_select %p237, %s238, %s239
      %p243 = pneg %p237
      %p244 = scmp.eq.s32.totalorder %s20, 1
      %p245 = por %p243, %p244
      %p246 = scmp.ne.s32.totalorder %s238, %s241
      %p247 = scmp.eq.s32.totalorder %s20, 0
      %p248 = por %p246, %p247
      %p249 = scmp.ne.s32.totalorder %s238, %s241
      %p250 = scmp.eq.s32.totalorder %s25, 1
      %p251 = por %p249, %p250
      %p252 = scmp.ne.s32.totalorder %s241, %s242
      %p253 = scmp.eq.s32.totalorder %s25, 0
      %p254 = por %p252, %p253
      %p255 = scmp.ne.s32.totalorder %s241, %s242
      %p256 = scmp.eq.s32.totalorder %s26, 1
      %p257 = por %p255, %p256
      %p259 = scmp.ne.s32.totalorder %s242, %s258
      %p260 = scmp.eq.s32.totalorder %s26, 0
      %p261 = por %p259, %p260
      %s262 = ssub.s32 %s20, %s27
      %p263 = scmp.eq.s32.totalorder %s262, 0
      %s265 = sadd.s32 %s264, 1
      %s266 = scalar_select %p263, %s264, %s265
      %p269 = pneg %p263
      %p270 = scmp.eq.s32.totalorder %s20, 1
      %p271 = por %p269, %p270
      %p272 = scmp.ne.s32.totalorder %s264, %s267
      %p273 = scmp.eq.s32.totalorder %s20, 0
      %p274 = por %p272, %p273
      %p275 = scmp.ne.s32.totalorder %s264, %s267
      %p276 = scmp.eq.s32.totalorder %s25, 1
      %p277 = por %p275, %p276
      %p278 = scmp.ne.s32.totalorder %s267, %s268
      %p279 = scmp.eq.s32.totalorder %s25, 0
      %p280 = por %p278, %p279
      %p281 = scmp.ne.s32.totalorder %s267, %s268
      %p282 = scmp.eq.s32.totalorder %s26, 1
      %p283 = por %p281, %p282
      %p285 = scmp.ne.s32.totalorder %s268, %s284
      %p286 = scmp.eq.s32.totalorder %s26, 0
      %p287 = por %p285, %p286
      %s288 = ssub.s32 %s20, %s27
      %p289 = scmp.eq.s32.totalorder %s288, 0
      %s291 = sadd.s32 %s290, 1
      %s292 = scalar_select %p289, %s290, %s291
      %p295 = pneg %p289
      %p296 = scmp.eq.s32.totalorder %s20, 1
      %p297 = por %p295, %p296
      %p298 = scmp.ne.s32.totalorder %s290, %s293
      %p299 = scmp.eq.s32.totalorder %s20, 0
      %p300 = por %p298, %p299
      %p301 = scmp.ne.s32.totalorder %s290, %s293
      %p302 = scmp.eq.s32.totalorder %s25, 1
      %p303 = por %p301, %p302
      %p304 = scmp.ne.s32.totalorder %s293, %s294
      %p305 = scmp.eq.s32.totalorder %s25, 0
      %p306 = por %p304, %p305
      %p307 = scmp.ne.s32.totalorder %s293, %s294
      %p308 = scmp.eq.s32.totalorder %s26, 1
      %p309 = por %p307, %p308
      %p311 = scmp.ne.s32.totalorder %s294, %s310
      %p312 = scmp.eq.s32.totalorder %s26, 0
      %p313 = por %p311, %p312
      %p314 = scmp.le.s32.totalorder 1, %s20
      %p315 = scmp.lt.s32.totalorder %s20, 3
      %p316 = pnand %p314, %p315
      %p317 = pneg %p316
      // Predicated region
      $region9: #{competition_forward.22} parent=5 // pred_check
        _
      $region10: #{competition_forward.22} parent=5 // pred_check_branch
        %319 = sbr.rel (%p316) target = $region12
      $region11: #{competition_forward.22} parent=5 // pred_region
        %s320 = ssub.s32 %s20, 1
      $region12: #{competition_forward.22} parent=5 // pred_fallthru
        _
      %p321 = scmp.lt.s32.totalorder %s20, 2
      // Predicated region
      $region13: #{competition_forward.22} parent=5 // pred_check
        %p322 = pneg %p321
      $region14: #{competition_forward.22} parent=5 // pred_check_branch
        %324 = sbr.rel (%p322) target = $region16
      $region15: #{competition_forward.22} parent=5 // pred_region
        // Predicated region
        $region17: #{competition_forward.22} parent=15 // pred_check
          %p325 = pneg %p40
        $region18: #{competition_forward.22} parent=15 // pred_check_branch
          %327 = sbr.rel (%p325) target = $region20
        $region19: #{competition_forward.22} parent=15 // pred_region
          %p328 = scmp.lt.s32.totalorder %s20, 1
          %s329 = scalar_select %p328, %s20, 1
          %s330 = smul.addr %s329, 32
          %s331 = smul.addr %s330, 8
          %s332 = scalar_lea.vmem %s0, %s331
        $region20: #{competition_forward.22} parent=15 // pred_fallthru
          _
        // Predicated region
        $region21: #{competition_forward.22} parent=15 // pred_check
          %p333 = pneg %p66
        $region22: #{competition_forward.22} parent=15 // pred_check_branch
          %335 = sbr.rel (%p333) target = $region24
        $region23: #{competition_forward.22} parent=15 // pred_region
          %p336 = scmp.lt.s32.totalorder %s20, 1
          %s337 = scalar_select %p336, %s20, 1
          %s338 = smul.addr %s337, 2
          %s339 = smul.addr %s338, 8
          %s340 = scalar_lea.vmem %s1, %s339
        $region24: #{competition_forward.22} parent=15 // pred_fallthru
          _
        // Predicated region
        $region25: #{competition_forward.22} parent=15 // pred_check
          %p341 = pneg %p92
        $region26: #{competition_forward.22} parent=15 // pred_check_branch
          %343 = sbr.rel (%p341) target = $region28
        $region27: #{competition_forward.22} parent=15 // pred_region
          %p344 = scmp.lt.s32.totalorder %s20, 1
          %s345 = scalar_select %p344, %s20, 1
          %s346 = smul.addr %s345, 2
          %s347 = smul.addr %s346, 8
          %s348 = scalar_lea.vmem %s2, %s347
        $region28: #{competition_forward.22} parent=15 // pred_fallthru
          _
        // Predicated region
        $region29: #{competition_forward.22} parent=15 // pred_check
          %p349 = pneg %p118
        $region30: #{competition_forward.22} parent=15 // pred_check_branch
          %351 = sbr.rel (%p349) target = $region32
        $region31: #{competition_forward.22} parent=15 // pred_region
          %p352 = scmp.lt.s32.totalorder %s20, 1
          %s353 = scalar_select %p352, %s20, 1
          %s354 = smul.addr %s353, 2
          %s355 = smul.addr %s354, 8
          %s356 = scalar_lea.vmem %s3, %s355
        $region32: #{competition_forward.22} parent=15 // pred_fallthru
          _
        // Predicated region
        $region33: #{competition_forward.22} parent=15 // pred_check
          %p357 = pneg %p144
        $region34: #{competition_forward.22} parent=15 // pred_check_branch
          %359 = sbr.rel (%p357) target = $region36
        $region35: #{competition_forward.22} parent=15 // pred_region
          %p360 = scmp.lt.s32.totalorder %s20, 1
          %s361 = scalar_select %p360, %s20, 1
          %s362 = smul.addr %s361, 2
          %s363 = smul.addr %s362, 8
          %s364 = scalar_lea.vmem %s4, %s363
        $region36: #{competition_forward.22} parent=15 // pred_fallthru
          _
        // Predicated region
        $region37: #{competition_forward.22} parent=15 // pred_check
          %p365 = pneg %p170
        $region38: #{competition_forward.22} parent=15 // pred_check_branch
          %367 = sbr.rel (%p365) target = $region40
        $region39: #{competition_forward.22} parent=15 // pred_region
          %p368 = scmp.lt.s32.totalorder %s20, 1
          %s369 = scalar_select %p368, %s20, 1
          %s370 = smul.addr %s369, 2
          %s371 = smul.addr %s370, 8
          %s372 = scalar_lea.vmem %s5, %s371
        $region40: #{competition_forward.22} parent=15 // pred_fallthru
          _
      $region16: #{competition_forward.22} parent=5 // pred_fallthru
        _
      %p373 = scmp.le.s32.totalorder 1, %s20
      %p374 = scmp.lt.s32.totalorder %s20, 3
      %p375 = pnand %p373, %p374
      %p376 = pneg %p375
      // Predicated region
      $region41: #{competition_forward.22} parent=5 // pred_check
        _
      $region42: #{competition_forward.22} parent=5 // pred_check_branch
        %378 = sbr.rel (%p375) target = $region44
      $region43: #{competition_forward.22} parent=5 // pred_region
        %s379 = ssub.s32 %s20, 1
        %p380 = scmp.lt.s32.totalorder %s25, 1
        %s381 = scalar_select %p380, %s25, 1
        %s382 = smul.addr %s381, 32
        %s383 = smul.addr %s382, 8
        %s384 = scalar_lea.vmem %s0, %s383
        %p385 = pneg %p46
        %p386 = pneg %p43
        %p387 = scmp.lt.s32.totalorder %s25, 1
        %s388 = scalar_select %p387, %s25, 1
        %s389 = smul.addr %s388, 2
        %s390 = smul.addr %s389, 8
        %s391 = scalar_lea.vmem %s1, %s390
        %p392 = pneg %p72
        %p393 = pneg %p69
        %p394 = scmp.lt.s32.totalorder %s25, 1
        %s395 = scalar_select %p394, %s25, 1
        %s396 = smul.addr %s395, 2
        %s397 = smul.addr %s396, 8
        %s398 = scalar_lea.vmem %s2, %s397
        %p399 = pneg %p98
        %p400 = pneg %p95
        %p401 = scmp.lt.s32.totalorder %s25, 1
        %s402 = scalar_select %p401, %s25, 1
        %s403 = smul.addr %s402, 2
        %s404 = smul.addr %s403, 8
        %s405 = scalar_lea.vmem %s3, %s404
        %p406 = pneg %p124
        %p407 = pneg %p121
        %p408 = scmp.lt.s32.totalorder %s25, 1
        %s409 = scalar_select %p408, %s25, 1
        %s410 = smul.addr %s409, 2
        %s411 = smul.addr %s410, 8
        %s412 = scalar_lea.vmem %s4, %s411
        %p413 = pneg %p150
        %p414 = pneg %p147
        %p415 = scmp.lt.s32.totalorder %s25, 1
        %s416 = scalar_select %p415, %s25, 1
        %s417 = smul.addr %s416, 2
        %s418 = smul.addr %s417, 8
        %s419 = scalar_lea.vmem %s5, %s418
        %p420 = pneg %p176
        %p421 = pneg %p173
        %p422 = pneg %p202
        %p423 = pneg %p199
        %p424 = scmp.lt.s32.totalorder %s25, 1
        %s425 = scalar_select %p424, %s25, 1
        %s426 = smul.addr %s425, 4
        %s427 = smul.addr %s426, 8
        %s428 = scalar_lea.vmem %s6, %s427
        %p429 = pneg %p228
        %p430 = pneg %p225
        %p431 = scmp.lt.s32.totalorder %s25, 1
        %s432 = scalar_select %p431, %s25, 1
        %s433 = smul.addr %s432, 2
        %s434 = smul.addr %s433, 8
        %s435 = scalar_lea.vmem %s7, %s434
        %p436 = pneg %p254
        %p437 = pneg %p251
        %p438 = scmp.lt.s32.totalorder %s25, 1
        %s439 = scalar_select %p438, %s25, 1
        %s440 = smul.addr %s439, 2
        %s441 = scalar_lea.vmem %s8, %s440
        %p442 = pneg %p280
        %p443 = pneg %p277
        %s444 = sand.u32 %s267, 1
        %s445 = scalar_lea.sflag [#allocation3], %s444
        %s446 = sand.u32 %s267, 1
        %s447 = smul.addr %s446, 32
        %s448 = scalar_lea.vmem [#allocation2], %s447
        %p449 = pneg %p306
        %p450 = pneg %p303
        %p451 = scmp.lt.s32.totalorder %s25, 1
        %s452 = scalar_select %p451, %s25, 1
        %s453 = smul.addr %s452, 2
        %s454 = smul.addr %s453, 8
        %s455 = scalar_lea.vmem %s10, %s454
        %p456 = scmp.lt.s32.totalorder %s25, 1
        %s457 = scalar_select %p456, %s25, 1
        %s458 = smul.addr %s457, 32
        %s459 = smul.addr %s458, 8
        %s460 = scalar_lea.vmem %s0, %s459
        %p461 = scmp.lt.s32.totalorder %s25, 1
        %s462 = scalar_select %p461, %s25, 1
        %s463 = smul.addr %s462, 2
        %s464 = smul.addr %s463, 8
        %s465 = scalar_lea.vmem %s1, %s464
        %p466 = scmp.lt.s32.totalorder %s25, 1
        %s467 = scalar_select %p466, %s25, 1
        %s468 = smul.addr %s467, 2
        %s469 = smul.addr %s468, 8
        %s470 = scalar_lea.vmem %s2, %s469
        %p471 = scmp.lt.s32.totalorder %s25, 1
        %s472 = scalar_select %p471, %s25, 1
        %s473 = smul.addr %s472, 2
        %s474 = smul.addr %s473, 8
        %s475 = scalar_lea.vmem %s3, %s474
        %p476 = scmp.lt.s32.totalorder %s25, 1
        %s477 = scalar_select %p476, %s25, 1
        %s478 = smul.addr %s477, 2
        %s479 = smul.addr %s478, 8
        %s480 = scalar_lea.vmem %s4, %s479
        %p481 = scmp.lt.s32.totalorder %s25, 1
        %s482 = scalar_select %p481, %s25, 1
        %s483 = smul.addr %s482, 2
        %s484 = smul.addr %s483, 8
        %s485 = scalar_lea.vmem %s5, %s484
        %p486 = scmp.lt.s32.totalorder %s25, 1
        %s487 = scalar_select %p486, %s25, 1
        %s488 = smul.addr %s487, 4
        %s489 = smul.addr %s488, 8
        %s490 = scalar_lea.vmem %s6, %s489
        %p491 = scmp.lt.s32.totalorder %s25, 1
        %s492 = scalar_select %p491, %s25, 1
        %s493 = smul.addr %s492, 2
        %s494 = smul.addr %s493, 8
        %s495 = scalar_lea.vmem %s7, %s494
        %p496 = scmp.lt.s32.totalorder %s25, 1
        %s497 = scalar_select %p496, %s25, 1
        %s498 = smul.addr %s497, 2
        %s499 = scalar_lea.vmem %s8, %s498
        %p500 = scmp.lt.s32.totalorder %s25, 1
        %s501 = scalar_select %p500, %s25, 1
        %s502 = smul.addr %s501, 2
        %s503 = smul.addr %s502, 8
        %s504 = scalar_lea.vmem %s10, %s503
        %v506 = vld [vmem:[%s460] sm:$0xff]
        %v507 = vld [vmem:[%s460 + $0x8] sm:$0xff]
        %v508 = vld [vmem:[%s460 + $0x10] sm:$0xff]
        %v509 = vld [vmem:[%s460 + $0x18] sm:$0xff]
        %v510 = vld [vmem:[%s460 + $0x20] sm:$0xff]
        %v511 = vld [vmem:[%s460 + $0x28] sm:$0xff]
        %v512 = vld [vmem:[%s460 + $0x30] sm:$0xff]
        %v513 = vld [vmem:[%s460 + $0x38] sm:$0xff]
        %v514 = vld [vmem:[%s460 + $0x40] sm:$0xff]
        %v515 = vld [vmem:[%s460 + $0x48] sm:$0xff]
        %v516 = vld [vmem:[%s460 + $0x50] sm:$0xff]
        %v517 = vld [vmem:[%s460 + $0x58] sm:$0xff]
        %v518 = vld [vmem:[%s460 + $0x60] sm:$0xff]
        %v519 = vld [vmem:[%s460 + $0x68] sm:$0xff]
        %v520 = vld [vmem:[%s460 + $0x70] sm:$0xff]
        %v521 = vld [vmem:[%s460 + $0x78] sm:$0xff]
        %v522 = vld [vmem:[%s460 + $0x80] sm:$0xff]
        %v523 = vld [vmem:[%s460 + $0x88] sm:$0xff]
        %v524 = vld [vmem:[%s460 + $0x90] sm:$0xff]
        %v525 = vld [vmem:[%s460 + $0x98] sm:$0xff]
        %v526 = vld [vmem:[%s460 + $0xa0] sm:$0xff]
        %v527 = vld [vmem:[%s460 + $0xa8] sm:$0xff]
        %v528 = vld [vmem:[%s460 + $0xb0] sm:$0xff]
        %v529 = vld [vmem:[%s460 + $0xb8] sm:$0xff]
        %v530 = vld [vmem:[%s460 + $0xc0] sm:$0xff]
        %v531 = vld [vmem:[%s460 + $0xc8] sm:$0xff]
        %v532 = vld [vmem:[%s460 + $0xd0] sm:$0xff]
        %v533 = vld [vmem:[%s460 + $0xd8] sm:$0xff]
        %v534 = vld [vmem:[%s460 + $0xe0] sm:$0xff]
        %v535 = vld [vmem:[%s460 + $0xe8] sm:$0xff]
        %v536 = vld [vmem:[%s460 + $0xf0] sm:$0xff]
        %v537 = vld [vmem:[%s460 + $0xf8] sm:$0xff]
        %v538 = vld [vmem:[%s465] sm:$0xff]
        %v539 = vld [vmem:[%s465 + $0x8] sm:$0xff]
        %v540 = vmul.f32 %v538, %v538
        %v541 = vmul.f32 %v539, %v539
        %vm542 = vcmask 64512
        %v543 = vsel %vm542, %v540, 0.0
        %544 = vadd.xlane.f32.xlu0 %v543
        %v545 = vpop.xlane.xlu0 %544
        %v546 = vsel %vm542, %v541, 0.0
        %547 = vadd.xlane.f32.xlu0 %v546
        %v548 = vpop.xlane.xlu0 %547
        %v549 = vrsqrt.pop %v545
        %v550 = vmul.f32 %v549, %v545
        %v551 = vmul.f32 %v550, %v549
        %v552 = vmul.f32 0.5, %v551
        %v553 = vsub.f32 1.5, %v552
        %v554 = vmul.f32 %v549, %v553
        %v555 = vmul.f32 %v545, %v554
        %vm556 = vcmp.eq.f32.partialorder %v545, inf
        %v557 = vsel %vm556, %v545, %v555
        %vm558 = vcmp.eq.f32.partialorder %v545, 0.0
        %v559 = vand.u32 %v545, 2147483648
        %v560 = vsel %vm558, %v559, %v557
        %v561 = vrsqrt.pop %v548
        %v562 = vmul.f32 %v561, %v548
        %v563 = vmul.f32 %v562, %v561
        %v564 = vmul.f32 0.5, %v563
        %v565 = vsub.f32 1.5, %v564
        %v566 = vmul.f32 %v561, %v565
        %v567 = vmul.f32 %v548, %v566
        %vm568 = vcmp.eq.f32.partialorder %v548, inf
        %v569 = vsel %vm568, %v548, %v567
        %vm570 = vcmp.eq.f32.partialorder %v548, 0.0
        %v571 = vand.u32 %v548, 2147483648
        %v572 = vsel %vm570, %v571, %v569
        %v573 = vmax.f32 %v560, 1e-08
        %v574 = vmax.f32 %v572, 1e-08
        %v575 = vrcp.pop %v573
        %v576 = vmul.f32 %v573, %v575
        %v577 = vsub.f32 1.0, %v576
        %v578 = vmul.f32 %v575, %v577
        %v579 = vadd.f32 %v575, %v578
        %vm580 = vweird.f32 %v573
        %vm581 = vweird.f32 %v575
        %vm582 = vmor %vm580, %vm581
        %v583 = vsel %vm582, %v575, %v579
        %v584 = vand.u32 2147483647, %v573
        %vm585 = vcmp.eq.f32.partialorder %v584, 8.507059e+37
        %v586 = vand.u32 %v573, 2147483648
        %v587 = vor.u32 1.1754944e-38, %v586
        %v588 = vsel %vm585, %v587, %v583
        %v589 = vmul.f32 %v538, %v588
        %v590 = vrcp.pop %v574
        %v591 = vmul.f32 %v574, %v590
        %v592 = vsub.f32 1.0, %v591
        %v593 = vmul.f32 %v590, %v592
        %v594 = vadd.f32 %v590, %v593
        %vm595 = vweird.f32 %v574
        %vm596 = vweird.f32 %v590
        %vm597 = vmor %vm595, %vm596
        %v598 = vsel %vm597, %v590, %v594
        %v599 = vand.u32 2147483647, %v574
        %vm600 = vcmp.eq.f32.partialorder %v599, 8.507059e+37
        %v601 = vand.u32 %v574, 2147483648
        %v602 = vor.u32 1.1754944e-38, %v601
        %v603 = vsel %vm600, %v602, %v598
        %v604 = vmul.f32 %v539, %v603
        %v605 = vpack.c.bf16 %v604, %v589
        %v606 = vpack.c.bf16 %v507, %v506
        %v607 = vpack.c.bf16 %v509, %v508
        %v608 = vpack.c.bf16 %v511, %v510
        %v609 = vpack.c.bf16 %v513, %v512
        %v610 = vpack.c.bf16 %v515, %v514
        %v611 = vpack.c.bf16 %v517, %v516
        %v612 = vpack.c.bf16 %v519, %v518
        %v613 = vpack.c.bf16 %v521, %v520
        %v614 = vpack.c.bf16 %v523, %v522
        %v615 = vpack.c.bf16 %v525, %v524
        %v616 = vpack.c.bf16 %v527, %v526
        %v617 = vpack.c.bf16 %v529, %v528
        %v618 = vpack.c.bf16 %v531, %v530
        %v619 = vpack.c.bf16 %v533, %v532
        %v620 = vpack.c.bf16 %v535, %v534
        %v621 = vpack.c.bf16 %v537, %v536
        %v623 = vsel %vm542, %v605, 0
        %v626 = vsel %vm542, %v606, 0
        %v629 = vsel %vm542, %v607, 0
        %v632 = vsel %vm542, %v608, 0
        %v635 = vsel %vm542, %v609, 0
        %v638 = vsel %vm542, %v610, 0
        %v641 = vsel %vm542, %v611, 0
        %v644 = vsel %vm542, %v612, 0
        %v647 = vsel %vm542, %v613, 0
        %v650 = vsel %vm542, %v614, 0
        %v653 = vsel %vm542, %v615, 0
        %v656 = vsel %vm542, %v616, 0
        %v659 = vsel %vm542, %v617, 0
        %v662 = vsel %vm542, %v618, 0
        %v665 = vsel %vm542, %v619, 0
        %v668 = vsel %vm542, %v620, 0
        %v671 = vsel %vm542, %v621, 0
        %673 = vmatpush.bf16.xpose.msra.mxu0 %v647
        %674 = vmatpush.bf16.xpose.msra.mxu0 %v644
        %675 = vmatpush.bf16.xpose.msra.mxu0 %v641
        %676 = vmatpush.bf16.xpose.msra.mxu0 %v638
        %677 = vmatpush.bf16.xpose.msra.mxu0 %v635
        %678 = vmatpush.bf16.xpose.msra.mxu0 %v632
        %679 = vmatpush.bf16.xpose.msra.mxu0 %v629
        %680 = vmatpush.bf16.xpose.msra.mxu0 %v626
        %681 = vmatmul.bf16.gmra.mxu0 %v623
        %v682 = vpop.f32.mrf.mxu0
        %v683 = vadd.f32 0.0, %v682
        %v684 = vpop.f32.mrf.mxu0
        %v685 = vadd.f32 0.0, %v684
        %686 = vdwg.mxu0
        %687 = vmatpush.bf16.xpose.msra.mxu0 %v671
        %688 = vmatpush.bf16.xpose.msra.mxu0 %v668
        %689 = vmatpush.bf16.xpose.msra.mxu0 %v665
        %690 = vmatpush.bf16.xpose.msra.mxu0 %v662
        %691 = vmatpush.bf16.xpose.msra.mxu0 %v659
        %692 = vmatpush.bf16.xpose.msra.mxu0 %v656
        %693 = vmatpush.bf16.xpose.msra.mxu0 %v653
        %694 = vmatpush.bf16.xpose.msra.mxu0 %v650
        %695 = vmatmul.bf16.gmra.mxu0 %v623
        %v696 = vpop.f32.mrf.mxu0
        %v697 = vadd.f32 0.0, %v696
        %v698 = vpop.f32.mrf.mxu0
        %v699 = vadd.f32 0.0, %v698
        %700 = vdwg.mxu0
        %701 = vst [vmem:[%s490] sm:$0xff] %v683
        %702 = vst [vmem:[%s490 + $0x8] sm:$0xff] %v697
        %703 = vst [vmem:[%s490 + $0x10] sm:$0xff] %v685
        %704 = vst [vmem:[%s490 + $0x18] sm:$0xff] %v699
        %v705 = vlaneseq
        %v706 = vshrl.u32 %v705, 7
        %v707 = vadd.s32 %v706, 8
        %v708 = vlaneseq
        %v709 = vand.u32 %v708, 127
        %vm710 = vcmp.eq.s32.totalorder %v706, %v709
        %vm711 = vcmp.eq.s32.totalorder %v707, %v709
        %v712 = vsel %vm710, 1, 0
        %v713 = vsel %vm711, 1, 0
        %v714 = vcvt.s32.f32 %v712
        %v715 = vcvt.s32.f32 %v713
        %vm716 = vcmp.gt.f32.partialorder %v683, 0.5
        %vm717 = vcmp.gt.f32.partialorder %v697, 0.5
        %vm718 = vcmp.gt.f32.partialorder %v685, 0.5
        %vm719 = vcmp.gt.f32.partialorder %v699, 0.5
        %v720 = vsel %vm716, 1, 0
        %v721 = vsel %vm717, 1, 0
        %v722 = vsel %vm718, 1, 0
        %v723 = vsel %vm719, 1, 0
        %v724 = vcvt.s32.f32 %v720
        %v725 = vcvt.s32.f32 %v721
        %v726 = vcvt.s32.f32 %v722
        %v727 = vcvt.s32.f32 %v723
        %v728 = vpack.c.bf16 %v726, %v724
        %v729 = vpack.c.bf16 %v727, %v725
        %730 = vmatpush.bf16.xpose.msra.mxu0 0
        %731 = vmatpush.bf16.xpose.msra.mxu0 0
        %732 = vmatpush.bf16.xpose.msra.mxu0 0
        %733 = vmatpush.bf16.xpose.msra.mxu0 0
        %734 = vmatpush.bf16.xpose.msra.mxu0 0
        %735 = vmatpush.bf16.xpose.msra.mxu0 0
        %736 = vmatpush.bf16.xpose.msra.mxu0 0
        %737 = vmatpush.bf16.xpose.msra.mxu0 %v728
        %738 = vmatmul.bf16.gmra.mxu0 %v728
        %v739 = vpop.f32.mrf.mxu0
        %v740 = vadd.f32 0.0, %v739
        %v741 = vpop.f32.mrf.mxu0
        %v742 = vadd.f32 0.0, %v741
        %743 = vdwg.mxu0
        %744 = vmatpush.bf16.xpose.msra.mxu0 0
        %745 = vmatpush.bf16.xpose.msra.mxu0 0
        %746 = vmatpush.bf16.xpose.msra.mxu0 0
        %747 = vmatpush.bf16.xpose.msra.mxu0 0
        %748 = vmatpush.bf16.xpose.msra.mxu0 0
        %749 = vmatpush.bf16.xpose.msra.mxu0 0
        %750 = vmatpush.bf16.xpose.msra.mxu0 0
        %751 = vmatpush.bf16.xpose.msra.mxu0 %v729
        %752 = vmatmul.bf16.gmra.mxu0 %v729
        %v753 = vpop.f32.mrf.mxu0
        %v754 = vadd.f32 %v740, %v753
        %v755 = vpop.f32.mrf.mxu0
        %v756 = vadd.f32 %v742, %v755
        %757 = vdwg.mxu0
        %v758 = vadd.f32 %v724, %v725
        %759 = vadd.xlane.f32.xlu0 %v758
        %v760 = vpop.xlane.xlu0 %759
        %v761 = vadd.f32 %v726, %v727
        %762 = vadd.xlane.f32.xlu0 %v761
        %v763 = vpop.xlane.xlu0 %762
        %v764 = vmul.f32 %v760, %v714
        %v765 = vmul.f32 %v763, %v715
        %vm766 = vcmask 130048
        %v767 = vsel %vm766, %v764, 0.0
        %v768 = vsel %vm766, %v765, 0.0
        %v769 = vadd.f32 %v767, %v768
        %v770 = vrot.slane %v769, 4
        %v771 = vadd.f32 %v769, %v770
        %v772 = vrot.slane %v771, 2
        %v773 = vadd.f32 %v771, %v772
        %v774 = vrot.slane %v773, 1
        %v775 = vadd.f32 %v773, %v774
        %v776 = vadd.f32 %v760, %v775
        %v777 = vadd.f32 %v763, %v775
        %v778 = vsub.f32 %v776, %v754
        %v779 = vsub.f32 %v777, %v756
        %v780 = vmax.f32 %v778, 1e-06
        %v781 = vmax.f32 %v779, 1e-06
        %v782 = vrcp.pop %v780
        %v783 = vmul.f32 %v780, %v782
        %v784 = vsub.f32 1.0, %v783
        %v785 = vmul.f32 %v782, %v784
        %v786 = vadd.f32 %v782, %v785
        %vm787 = vweird.f32 %v780
        %vm788 = vweird.f32 %v782
        %vm789 = vmor %vm787, %vm788
        %v790 = vsel %vm789, %v782, %v786
        %v791 = vand.u32 2147483647, %v780
        %vm792 = vcmp.eq.f32.partialorder %v791, 8.507059e+37
        %v793 = vand.u32 %v780, 2147483648
        %v794 = vor.u32 1.1754944e-38, %v793
        %v795 = vsel %vm792, %v794, %v790
        %v796 = vmul.f32 %v754, %v795
        %v797 = vrcp.pop %v781
        %v798 = vmul.f32 %v781, %v797
        %v799 = vsub.f32 1.0, %v798
        %v800 = vmul.f32 %v797, %v799
        %v801 = vadd.f32 %v797, %v800
        %vm802 = vweird.f32 %v781
        %vm803 = vweird.f32 %v797
        %vm804 = vmor %vm802, %vm803
        %v805 = vsel %vm804, %v797, %v801
        %v806 = vand.u32 2147483647, %v781
        %vm807 = vcmp.eq.f32.partialorder %v806, 8.507059e+37
        %v808 = vand.u32 %v781, 2147483648
        %v809 = vor.u32 1.1754944e-38, %v808
        %v810 = vsel %vm807, %v809, %v805
        %v811 = vmul.f32 %v756, %v810
        %vm812 = vcmp.gt.f32.partialorder %v796, 0.2
        %vm813 = vcmp.gt.f32.partialorder %v811, 0.2
        %vm814 = vmxor %vm710, 1
        %vm815 = vmxor %vm711, 1
        %vm816 = vmand %vm812, %vm814
        %vm817 = vmand %vm813, %vm815
        %v818 = vld [vmem:[%s470] sm:$0xff]
        %v819 = vld [vmem:[%s470 + $0x8] sm:$0xff]
        %821 = vset.pattern.permute.xlu0 0
        %822 = vperm.xlu0 %821, %v818
        %v823 = vpop.permute.xlu0 %822
        %826 = vset.pattern.permute.xlu0 0
        %827 = vperm.xlu0 %826, %v819
        %v828 = vpop.permute.xlu0 %827
        %v830 = vmul.f32 %v823, %v714
        %v831 = vmul.f32 %v828, %v715
        %v832 = vsel %vm766, %v830, 0.0
        %v833 = vsel %vm766, %v831, 0.0
        %v834 = vadd.f32 %v832, %v833
        %v835 = vrot.slane %v834, 4
        %v836 = vadd.f32 %v834, %v835
        %v837 = vrot.slane %v836, 2
        %v838 = vadd.f32 %v836, %v837
        %v839 = vrot.slane %v838, 1
        %v840 = vadd.f32 %v838, %v839
        %vm841 = vcmp.lt.f32.partialorder %v823, %v840
        %vm842 = vcmp.lt.f32.partialorder %v828, %v840
        %vm843 = vmand %vm816, %vm841
        %vm844 = vmand %vm817, %vm842
        %v845 = vld [vmem:[%s475] sm:$0xff]
        %v846 = vld [vmem:[%s475 + $0x8] sm:$0xff]
        %848 = vset.pattern.permute.xlu0 0
        %849 = vperm.xlu0 %848, %v845
        %v850 = vpop.permute.xlu0 %849
        %853 = vset.pattern.permute.xlu0 0
        %854 = vperm.xlu0 %853, %v846
        %v855 = vpop.permute.xlu0 %854
        %v857 = vmul.f32 %v850, %v714
        %v858 = vmul.f32 %v855, %v715
        %v859 = vsel %vm766, %v857, 0.0
        %v860 = vsel %vm766, %v858, 0.0
        %v861 = vadd.f32 %v859, %v860
        %v862 = vrot.slane %v861, 4
        %v863 = vadd.f32 %v861, %v862
        %v864 = vrot.slane %v863, 2
        %v865 = vadd.f32 %v863, %v864
        %v866 = vrot.slane %v865, 1
        %v867 = vadd.f32 %v865, %v866
        %vm868 = vcmp.gt.f32.partialorder %v845, 0.5
        %vm869 = vcmp.gt.f32.partialorder %v846, 0.5
        %vm870 = vcmp.gt.f32.partialorder %v867, 0.5
        %vm871 = vmxor %vm868, 1
        %vm872 = vmxor %vm869, 1
        %vm873 = vmxor %vm870, 1
        %v874 = vsel %vm868, 1, 0
        %v875 = vsel %vm869, 1, 0
        %876 = vset.pattern.permute.xlu0 0
        %877 = vperm.xlu0 %876, %v874
        %v878 = vpop.permute.xlu0 %877
        %879 = vset.pattern.permute.xlu0 0
        %880 = vperm.xlu0 %879, %v875
        %v881 = vpop.permute.xlu0 %880
        %vm882 = vcmp.eq.s32.totalorder %v878, 1
        %vm883 = vcmp.eq.s32.totalorder %v881, 1
        %v884 = vsel %vm873, 1, 0
        %vm885 = vcmp.eq.s32.totalorder %v884, 1
        %vm886 = vmand %vm882, %vm885
        %vm887 = vmand %vm883, %vm885
        %vm888 = vmxor %vm886, 1
        %vm889 = vmxor %vm887, 1
        %vm890 = vmand %vm843, %vm888
        %vm891 = vmand %vm844, %vm889
        %v892 = vsel %vm871, 1, 0
        %v893 = vsel %vm872, 1, 0
        %894 = vset.pattern.permute.xlu0 0
        %895 = vperm.xlu0 %894, %v892
        %v896 = vpop.permute.xlu0 %895
        %897 = vset.pattern.permute.xlu0 0
        %898 = vperm.xlu0 %897, %v893
        %v899 = vpop.permute.xlu0 %898
        %vm900 = vcmp.eq.s32.totalorder %v896, 1
        %vm901 = vcmp.eq.s32.totalorder %v899, 1
        %v902 = vsel %vm870, 1, 0
        %vm903 = vcmp.eq.s32.totalorder %v902, 1
        %vm904 = vmand %vm900, %vm903
        %vm905 = vmand %vm901, %vm903
        %vm906 = vmand %vm904, %vm816
        %vm907 = vmand %vm905, %vm817
        %vm908 = vmor %vm890, %vm906
        %vm909 = vmor %vm891, %vm907
        %v910 = vsel %vm908, 1.0, 0.0
        %v911 = vsel %vm909, 1.0, 0.0
        %v912 = vsel %vm766, %v910, -inf
        %913 = vmax.xlane.f32.xlu0 %v912
        %v914 = vpop.xlane.xlu0 %913
        %v915 = vsel %vm766, %v911, -inf
        %916 = vmax.xlane.f32.xlu0 %v915
        %v917 = vpop.xlane.xlu0 %916
        %vm918 = vcmp.gt.f32.partialorder %v914, 0.0
        %vm919 = vcmp.gt.f32.partialorder %v917, 0.0
        %vm920 = vmxor %vm918, 1
        %vm921 = vmxor %vm919, 1
        %v922 = vsel %vm920, 1, 0
        %v923 = vsel %vm921, 1, 0
        %v924 = vcvt.s32.f32 %v922
        %v925 = vcvt.s32.f32 %v923
        %v926 = vld [vmem:[%s480] sm:$0xff]
        %v927 = vld [vmem:[%s480 + $0x8] sm:$0xff]
        %v928 = vmul.f32 %v924, %v926
        %v929 = vmul.f32 %v925, %v927
        %vm930 = vcmask 7168
        %931 = vst.msk [vmem:[%s495] sm:$0xff] %vm930, %v928
        %932 = vst.msk [vmem:[%s495 + $0x8] sm:$0xff] %vm930, %v929
        %934 = vset.pattern.permute.xlu0 0
        %935 = vperm.xlu0 %934, %v928
        %v936 = vpop.permute.xlu0 %935
        %939 = vset.pattern.permute.xlu0 0
        %940 = vperm.xlu0 %939, %v929
        %v941 = vpop.permute.xlu0 %940
        %v943 = vmul.f32 %v683, %v936
        %v944 = vmul.f32 %v697, %v936
        %v945 = vmul.f32 %v685, %v941
        %v946 = vmul.f32 %v699, %v941
        %v947 = vmax.f32 %v943, %v945
        %v948 = vrot.slane %v947, 4
        %v949 = vmax.f32 %v947, %v948
        %v950 = vrot.slane %v949, 2
        %v951 = vmax.f32 %v949, %v950
        %v952 = vrot.slane %v951, 1
        %v953 = vmax.f32 %v951, %v952
        %v954 = vmax.f32 %v944, %v946
        %v955 = vrot.slane %v954, 4
        %v956 = vmax.f32 %v954, %v955
        %v957 = vrot.slane %v956, 2
        %v958 = vmax.f32 %v956, %v957
        %v959 = vrot.slane %v958, 1
        %v960 = vmax.f32 %v958, %v959
        %v961 = vmin.f32 %v953, 1.0
        %v962 = vmin.f32 %v960, 1.0
        %v963 = vsub.f32 1.0, %v961
        %v964 = vsub.f32 1.0, %v962
        %v967 = vrot.slane %v964, 7
        %vm968 = vcmask 1040384
        %v969 = vsel %vm968, %v963, %v967
        %v971 = vlaneseq
        %vm972 = vcmp.ge.s32.totalorder %v971, 0
        %vm973 = vcmp.lt.s32.totalorder %v971, 256
        %vm974 = vmand %vm972, %vm973
        %975 = vst.msk [vmem:[%s499] sm:$0x3] %vm974, %v969
        %v976 = vsub.f32 1.0, %v928
        %v977 = vsub.f32 1.0, %v929
        %979 = vset.pattern.permute.xlu0 0
        %980 = vperm.xlu0 %979, %v976
        %v981 = vpop.permute.xlu0 %980
        %984 = vset.pattern.permute.xlu0 0
        %985 = vperm.xlu0 %984, %v977
        %v986 = vpop.permute.xlu0 %985
        %v988 = vmul.f32 %v981, %v963
        %v989 = vmul.f32 %v981, %v964
        %v990 = vmul.f32 %v986, %v963
        %v991 = vmul.f32 %v986, %v964
        %v992 = vadd.f32 %v943, %v988
        %v993 = vadd.f32 %v944, %v989
        %v994 = vadd.f32 %v945, %v990
        %v995 = vadd.f32 %v946, %v991
        %996 = vst [vmem:[%s448] sm:$0xff] %v992
        %997 = vst [vmem:[%s448 + $0x8] sm:$0xff] %v993
        %998 = vst [vmem:[%s448 + $0x10] sm:$0xff] %v994
        %999 = vst [vmem:[%s448 + $0x18] sm:$0xff] %v995
        %1000 = vmatpush.bf16.msra.mxu0 %v613
        %1001 = vmatpush.bf16.msra.mxu0 %v612
        %1002 = vmatpush.bf16.msra.mxu0 %v611
        %1003 = vmatpush.bf16.msra.mxu0 %v610
        %1004 = vmatpush.bf16.msra.mxu0 %v609
        %1005 = vmatpush.bf16.msra.mxu0 %v608
        %1006 = vmatpush.bf16.msra.mxu0 %v607
        %1007 = vmatpush.bf16.msra.mxu0 %v606
        %1008 = vmatmul.bf16.gmra.mxu0 %v728
        %v1009 = vpop.f32.mrf.mxu0
        %v1010 = vadd.f32 0.0, %v1009
        %v1011 = vpop.f32.mrf.mxu0
        %v1012 = vadd.f32 0.0, %v1011
        %1013 = vdwg.mxu0
        %1014 = vmatpush.bf16.msra.mxu0 %v621
        %1015 = vmatpush.bf16.msra.mxu0 %v620
        %1016 = vmatpush.bf16.msra.mxu0 %v619
        %1017 = vmatpush.bf16.msra.mxu0 %v618
        %1018 = vmatpush.bf16.msra.mxu0 %v617
        %1019 = vmatpush.bf16.msra.mxu0 %v616
        %1020 = vmatpush.bf16.msra.mxu0 %v615
        %1021 = vmatpush.bf16.msra.mxu0 %v614
        %1022 = vmatmul.bf16.gmra.mxu0 %v729
        %v1023 = vpop.f32.mrf.mxu0
        %v1024 = vadd.f32 %v1010, %v1023
        %v1025 = vpop.f32.mrf.mxu0
        %v1026 = vadd.f32 %v1012, %v1025
        %1027 = vdwg.mxu0
        %v1028 = vmul.f32 %v1024, 0.00390625
        %v1029 = vmul.f32 %v1026, 0.00390625
        %v1030 = vmul.f32 %v1028, %v1028
        %v1031 = vmul.f32 %v1029, %v1029
        %v1032 = vsel %vm542, %v1030, 0.0
        %1033 = vadd.xlane.f32.xlu0 %v1032
        %v1034 = vpop.xlane.xlu0 %1033
        %v1035 = vsel %vm542, %v1031, 0.0
        %1036 = vadd.xlane.f32.xlu0 %v1035
        %v1037 = vpop.xlane.xlu0 %1036
        %v1038 = vrsqrt.pop %v1034
        %v1039 = vmul.f32 %v1038, %v1034
        %v1040 = vmul.f32 %v1039, %v1038
        %v1041 = vmul.f32 0.5, %v1040
        %v1042 = vsub.f32 1.5, %v1041
        %v1043 = vmul.f32 %v1038, %v1042
        %v1044 = vmul.f32 %v1034, %v1043
        %vm1045 = vcmp.eq.f32.partialorder %v1034, inf
        %v1046 = vsel %vm1045, %v1034, %v1044
        %vm1047 = vcmp.eq.f32.partialorder %v1034, 0.0
        %v1048 = vand.u32 %v1034, 2147483648
        %v1049 = vsel %vm1047, %v1048, %v1046
        %v1050 = vrsqrt.pop %v1037
        %v1051 = vmul.f32 %v1050, %v1037
        %v1052 = vmul.f32 %v1051, %v1050
        %v1053 = vmul.f32 0.5, %v1052
        %v1054 = vsub.f32 1.5, %v1053
        %v1055 = vmul.f32 %v1050, %v1054
        %v1056 = vmul.f32 %v1037, %v1055
        %vm1057 = vcmp.eq.f32.partialorder %v1037, inf
        %v1058 = vsel %vm1057, %v1037, %v1056
        %vm1059 = vcmp.eq.f32.partialorder %v1037, 0.0
        %v1060 = vand.u32 %v1037, 2147483648
        %v1061 = vsel %vm1059, %v1060, %v1058
        %v1062 = vmax.f32 %v1049, 1e-06
        %v1063 = vmax.f32 %v1061, 1e-06
        %v1064 = vrcp.pop %v1062
        %v1065 = vmul.f32 %v1062, %v1064
        %v1066 = vsub.f32 1.0, %v1065
        %v1067 = vmul.f32 %v1064, %v1066
        %v1068 = vadd.f32 %v1064, %v1067
        %vm1069 = vweird.f32 %v1062
        %vm1070 = vweird.f32 %v1064
        %vm1071 = vmor %vm1069, %vm1070
        %v1072 = vsel %vm1071, %v1064, %v1068
        %v1073 = vand.u32 2147483647, %v1062
        %vm1074 = vcmp.eq.f32.partialorder %v1073, 8.507059e+37
        %v1075 = vand.u32 %v1062, 2147483648
        %v1076 = vor.u32 1.1754944e-38, %v1075
        %v1077 = vsel %vm1074, %v1076, %v1072
        %v1078 = vmul.f32 %v1028, %v1077
        %v1079 = vrcp.pop %v1063
        %v1080 = vmul.f32 %v1063, %v1079
        %v1081 = vsub.f32 1.0, %v1080
        %v1082 = vmul.f32 %v1079, %v1081
        %v1083 = vadd.f32 %v1079, %v1082
        %vm1084 = vweird.f32 %v1063
        %vm1085 = vweird.f32 %v1079
        %vm1086 = vmor %vm1084, %vm1085
        %v1087 = vsel %vm1086, %v1079, %v1083
        %v1088 = vand.u32 2147483647, %v1063
        %vm1089 = vcmp.eq.f32.partialorder %v1088, 8.507059e+37
        %v1090 = vand.u32 %v1063, 2147483648
        %v1091 = vor.u32 1.1754944e-38, %v1090
        %v1092 = vsel %vm1089, %v1091, %v1087
        %v1093 = vmul.f32 %v1029, %v1092
        %v1094 = vld [vmem:[%s485] sm:$0xff]
        %v1095 = vld [vmem:[%s485 + $0x8] sm:$0xff]
        %v1096 = vmul.f32 %v936, %v1078
        %v1097 = vmul.f32 %v941, %v1093
        %v1098 = vmul.f32 %v1096, 100.0
        %v1099 = vmul.f32 %v1097, 100.0
        %v1100 = vadd.f32 %v1094, %v1098
        %v1101 = vadd.f32 %v1095, %v1099
        %1102 = vst.msk [vmem:[%s504] sm:$0xff] %vm542, %v1100
        %1103 = vst.msk [vmem:[%s504 + $0x8] sm:$0xff] %vm542, %v1101
        %p1104 = scmp.lt.s32.totalorder %s25, 1
        %s1105 = scalar_select %p1104, %s25, 1
        %s1106 = smul.addr %s1105, 4
        %s1107 = smul.addr %s1106, 8
        %s1108 = scalar_lea.vmem %s6, %s1107
        %p1109 = scmp.lt.s32.totalorder %s25, 1
        %s1110 = scalar_select %p1109, %s25, 1
        %s1111 = smul.addr %s1110, 2
        %s1112 = smul.addr %s1111, 8
        %s1113 = scalar_lea.vmem %s7, %s1112
        %p1114 = scmp.lt.s32.totalorder %s25, 1
        %s1115 = scalar_select %p1114, %s25, 1
        %s1116 = smul.addr %s1115, 2
        %s1117 = scalar_lea.vmem %s8, %s1116
        %s1118 = sand.u32 %s267, 1
        %s1119 = scalar_lea.sflag [#allocation3], %s1118
        %s1120 = sand.u32 %s267, 1
        %s1121 = smul.addr %s1120, 32
        %s1122 = scalar_lea.vmem [#allocation2], %s1121
        %p1123 = scmp.lt.s32.totalorder %s25, 1
        %s1124 = scalar_select %p1123, %s25, 1
        %s1125 = smul.addr %s1124, 2
        %s1126 = smul.addr %s1125, 8
        %s1127 = scalar_lea.vmem %s10, %s1126
        // Predicated region
        $region45: #{competition_forward.22} parent=43 // pred_check
          %p1128 = pneg %p199
        $region46: #{competition_forward.22} parent=43 // pred_check_branch
          %1130 = sbr.rel (%p1128) target = $region48
        $region47: #{competition_forward.22} parent=43 // pred_region
          _
        $region48: #{competition_forward.22} parent=43 // pred_fallthru
          _
        // Predicated region
        $region49: #{competition_forward.22} parent=43 // pred_check
          %p1131 = pneg %p225
        $region50: #{competition_forward.22} parent=43 // pred_check_branch
          %1133 = sbr.rel (%p1131) target = $region52
        $region51: #{competition_forward.22} parent=43 // pred_region
          _
        $region52: #{competition_forward.22} parent=43 // pred_fallthru
          _
        // Predicated region
        $region53: #{competition_forward.22} parent=43 // pred_check
          %p1134 = pneg %p251
        $region54: #{competition_forward.22} parent=43 // pred_check_branch
          %1136 = sbr.rel (%p1134) target = $region56
        $region55: #{competition_forward.22} parent=43 // pred_region
          _
        $region56: #{competition_forward.22} parent=43 // pred_fallthru
          _
        // Predicated region
        $region57: #{competition_forward.22} parent=43 // pred_check
          %p1137 = pneg %p277
        $region58: #{competition_forward.22} parent=43 // pred_check_branch
          %1139 = sbr.rel (%p1137) target = $region60
        $region59: #{competition_forward.22} parent=43 // pred_region
          %1141 = vsyncadd %s1119, 0
          %s1142 = smul.addr %s25, 4
          %s1143 = smul.addr %s1142, 8
          %s1144 = scalar_lea.hbm %s9, %s1143
          %s1145 = sshll.u32 %s1122, 4
          %s1146 = int_to_ptr.vmem [resolvable:$true] %s1145
          %s1147 = sshll.u32 %s1144, 4
          %s1148 = int_to_ptr.hbm [resolvable:$true] %s1147
          %1153 = dma.vmem_to_hbm [thread:$0]  %s1146, 512, %s1148, %s1119, 256, 256, 16
        $region60: #{competition_forward.22} parent=43 // pred_fallthru
          _
        // Predicated region
        $region61: #{competition_forward.22} parent=43 // pred_check
          %p1154 = pneg %p303
        $region62: #{competition_forward.22} parent=43 // pred_check_branch
          %1156 = sbr.rel (%p1154) target = $region64
        $region63: #{competition_forward.22} parent=43 // pred_region
          _
        $region64: #{competition_forward.22} parent=43 // pred_fallthru
          _
      $region44: #{competition_forward.22} parent=5 // pred_fallthru
        _
      %p1157 = scmp.le.s32.totalorder 2, %s20
      // Predicated region
      $region65: #{competition_forward.22} parent=5 // pred_check
        %p1158 = pneg %p1157
      $region66: #{competition_forward.22} parent=5 // pred_check_branch
        %1160 = sbr.rel (%p1158) target = $region68
      $region67: #{competition_forward.22} parent=5 // pred_region
        %s1161 = ssub.s32 %s20, 2
        // Predicated region
        $region69: #{competition_forward.22} parent=67 // pred_check
          %p1162 = pneg %p205
        $region70: #{competition_forward.22} parent=67 // pred_check_branch
          %1164 = sbr.rel (%p1162) target = $region72
        $region71: #{competition_forward.22} parent=67 // pred_region
          %p1165 = scmp.lt.s32.totalorder %s26, 1
          %s1166 = scalar_select %p1165, %s26, 1
          %s1167 = smul.addr %s1166, 4
          %s1168 = smul.addr %s1167, 8
          %s1169 = scalar_lea.vmem %s6, %s1168
        $region72: #{competition_forward.22} parent=67 // pred_fallthru
          _
        // Predicated region
        $region73: #{competition_forward.22} parent=67 // pred_check
          %p1170 = pneg %p231
        $region74: #{competition_forward.22} parent=67 // pred_check_branch
          %1172 = sbr.rel (%p1170) target = $region76
        $region75: #{competition_forward.22} parent=67 // pred_region
          %p1173 = scmp.lt.s32.totalorder %s26, 1
          %s1174 = scalar_select %p1173, %s26, 1
          %s1175 = smul.addr %s1174, 2
          %s1176 = smul.addr %s1175, 8
          %s1177 = scalar_lea.vmem %s7, %s1176
        $region76: #{competition_forward.22} parent=67 // pred_fallthru
          _
        // Predicated region
        $region77: #{competition_forward.22} parent=67 // pred_check
          %p1178 = pneg %p257
        $region78: #{competition_forward.22} parent=67 // pred_check_branch
          %1180 = sbr.rel (%p1178) target = $region80
        $region79: #{competition_forward.22} parent=67 // pred_region
          %p1181 = scmp.lt.s32.totalorder %s26, 1
          %s1182 = scalar_select %p1181, %s26, 1
          %s1183 = smul.addr %s1182, 2
          %s1184 = scalar_lea.vmem %s8, %s1183
        $region80: #{competition_forward.22} parent=67 // pred_fallthru
          _
        // Predicated region
        $region81: #{competition_forward.22} parent=67 // pred_check
          %p1185 = pneg %p283
        $region82: #{competition_forward.22} parent=67 // pred_check_branch
          %1187 = sbr.rel (%p1185) target = $region84
        $region83: #{competition_forward.22} parent=67 // pred_region
          %s1188 = sand.u32 %s268, 1
          %s1189 = scalar_lea.sflag [#allocation3], %s1188
          %s1190 = sand.u32 %s268, 1
          %s1191 = smul.addr %s1190, 32
          %s1192 = scalar_lea.vmem [#allocation2], %s1191
          %1194 = dma.done %s1189, 512
        $region84: #{competition_forward.22} parent=67 // pred_fallthru
          _
        // Predicated region
        $region85: #{competition_forward.22} parent=67 // pred_check
          %p1195 = pneg %p309
        $region86: #{competition_forward.22} parent=67 // pred_check_branch
          %1197 = sbr.rel (%p1195) target = $region88
        $region87: #{competition_forward.22} parent=67 // pred_region
          %p1198 = scmp.lt.s32.totalorder %s26, 1
          %s1199 = scalar_select %p1198, %s26, 1
          %s1200 = smul.addr %s1199, 2
          %s1201 = smul.addr %s1200, 8
          %s1202 = scalar_lea.vmem %s10, %s1201
        $region88: #{competition_forward.22} parent=67 // pred_fallthru
          _
      $region68: #{competition_forward.22} parent=5 // pred_fallthru
        _
    $region6: #{competition_forward.22} parent=1 // loop_footer
      %s24 = sadd.s32 1, %s20
    $region7: #{competition_forward.22} parent=1 // loop_footer_branch
      %19 = sbr.rel target = $region3
    $region8: #{competition_forward.22} parent=1 // loop_exit
      _
    %1203 = vsyncpa [#allocation3], 1
    %s1204 = scalar_lea.sflag [#allocation3], 1
    %1205 = vsyncpa %s1204, 1

</llo_original>
